<compile_context>
chip_gen: v6e
topology: v6e:2x2x1
jax: 0.10.0
libtpu: 0.0.40
codegen_flags: <defaults>
</compile_context>

<pallas_src>
import functools

import jax
import jax.numpy as jnp
from jax.experimental import pallas as pl
from jax.experimental.pallas import tpu as pltpu


def _round_up(x, m):
    return ((x + m - 1) // m) * m


def _pad_to(a, shape):
    pads = [(0, s - d) for d, s in zip(a.shape, shape)]
    return jnp.pad(a, pads)


def _make_bigru_router_kernel(num_layers, h_pad, k_pad):
    """Fused: folded input-gate matmul -> bidirectional GRU -> batched output proj."""
    L, H, K = num_layers, h_pad, k_pad
    G = 3 * H  # one (direction, layer) gate block: [r | z | n], each 128-lane aligned

    def _sigmoid(v):
        # exp on EUP + approx reciprocal on EUP: no f32 divide on the serial chain
        return pl.reciprocal(1.0 + jnp.exp(-v), approx=True)

    def kernel(x_ref, wfold_ref, bfold_ref,
               whhf_ref, bhhf_ref, whhb_ref, bhhb_ref,
               wpf_ref, wpb_ref, bp_ref,
               o_ref, gi_ref):
        bpad = x_ref.shape[0]

        # (1) All input-side gate pre-activations for both directions and all L steps in a
        #     single throughput matmul; result parked in VMEM scratch, sliced per step.
        gi_ref[...] = (jnp.dot(x_ref[...], wfold_ref[...],
                               preferred_element_type=jnp.float32)
                       + jnp.broadcast_to(bfold_ref[...], (bpad, 2 * L * G)))

        # hoisted bias broadcasts for the recurrent matmuls
        bh_f = jnp.broadcast_to(bhhf_ref[...], (bpad, G))
        bh_b = jnp.broadcast_to(bhhb_ref[...], (bpad, G))

        def cell(gi, h, whh_ref, bh):
            # single data-dependent matmul per step; bf16 single-pass MXU, f32 accumulate
            gh = jnp.dot(h.astype(jnp.bfloat16), whh_ref[...],
                         preferred_element_type=jnp.float32) + bh
            r = _sigmoid(gi[:, 0:H] + gh[:, 0:H])
            z = _sigmoid(gi[:, H:2 * H] + gh[:, H:2 * H])
            n = jnp.tanh(gi[:, 2 * H:3 * H] + r * gh[:, 2 * H:3 * H])
            return (1.0 - z) * n + z * h

        # forward direction (static unroll; L is tiny)
        h = jnp.zeros((bpad, H), jnp.float32)
        h_fwd = []
        for t in range(L):
            h = cell(gi_ref[:, t * G:(t + 1) * G], h, whhf_ref, bh_f)
            h_fwd.append(h)

        # backward direction
        h = jnp.zeros((bpad, H), jnp.float32)
        h_bwd = [None] * L
        for t in range(L - 1, -1, -1):
            h = cell(gi_ref[:, (L + t) * G:(L + t + 1) * G], h, whhb_ref, bh_b)
            h_bwd[t] = h

        # (2) Batched output projection off the recurrent chain: two M = L*B_pad matmuls
        #     and one contiguous lane-dense store.
        hf = jnp.concatenate(h_fwd, axis=0)          # (L*B_pad, H)
        hb = jnp.concatenate(h_bwd, axis=0)          # (L*B_pad, H)
        out = (jnp.dot(hf, wpf_ref[...], preferred_element_type=jnp.float32)
               + jnp.dot(hb, wpb_ref[...], preferred_element_type=jnp.float32)
               + jnp.broadcast_to(bp_ref[...], (L * bpad, K)))
        o_ref[...] = out.reshape(L, bpad, K).astype(o_ref.dtype)

    return kernel


def prepare_router_params(raw, *, num_layers, hidden_dim, input_dim, n_blocks):
    """One-time packing of torch-layout parameters into the kernel's lane-dense layout,
    including folding of the layer-specific projection into the GRU input weights.

    torch layouts:
      lsp_w (L*H, D), lsp_b (L*H,)
      w_ih / w_hh (3H, H) with gates stacked [r; z; n], b_ih / b_hh (3H,)
      proj_w (K, 2H) acting on [h_fwd, h_bwd], proj_b (K,)
    """
    H, D, K, L = hidden_dim, input_dim, n_blocks, num_layers
    H_pad = _round_up(H, 128)
    D_pad = _round_up(D, 128)
    K_pad = _round_up(K, 128)

    lsp_w = raw["lsp_w"].reshape(L, H, D)        # W1_l  (per-layer projection block)
    lsp_b = raw["lsp_b"].reshape(L, H)           # b1_l

    def fold_dir(wih, bih):
        # gi_l = x_l @ wih.T + bih = te @ (W1_l.T @ wih.T) + (b1_l @ wih.T + bih)
        wt = wih.T                                                     # (H, 3H)
        wfold = jnp.einsum('lhd,hg->ldg', lsp_w, wt)                   # (L, D, 3H)
        bfold = lsp_b @ wt + bih                                       # (L, 3H)
        wfold = _pad_to(wfold.reshape(L, D, 3, H), (L, D_pad, 3, H_pad))
        wfold = (wfold.reshape(L, D_pad, 3 * H_pad)
                 .transpose(1, 0, 2).reshape(D_pad, L * 3 * H_pad))
        bfold = _pad_to(bfold.reshape(L, 3, H), (L, 3, H_pad)).reshape(1, L * 3 * H_pad)
        return wfold, bfold

    wf_f, bf_f = fold_dir(raw["wih_f"], raw["bih_f"])
    wf_b, bf_b = fold_dir(raw["wih_b"], raw["bib_b"] if "bib_b" in raw else raw["bih_b"])
    # column layout: [forward: layer 0..L-1][backward: layer 0..L-1], each block = 3*H_pad
    wfold = jnp.concatenate([wf_f, wf_b], axis=1)        # (D_pad, 2*L*3*H_pad)
    bfold = jnp.concatenate([bf_f, bf_b], axis=1)        # (1,    2*L*3*H_pad)

    def pack_hh_w(w):                                    # (3H, H) -> (H_pad, 3*H_pad) bf16
        wt = w.T.reshape(H, 3, H)
        return (_pad_to(wt, (H_pad, 3, H_pad))
                .reshape(H_pad, 3 * H_pad).astype(jnp.bfloat16))

    def pack_hh_b(b):                                    # (3H,) -> (1, 3*H_pad) f32
        return _pad_to(b.reshape(3, H), (3, H_pad)).reshape(1, 3 * H_pad)

    pw = raw["proj_w"].T                                 # (2H, K)
    return {
        "wfold": wfold, "bfold": bfold,
        "whh_f": pack_hh_w(raw["whh_f"]), "bhh_f": pack_hh_b(raw["bhh_f"]),
        "whh_b": pack_hh_w(raw["whh_b"]), "bhh_b": pack_hh_b(raw["bhh_b"]),
        "wpf": _pad_to(pw[:H], (H_pad, K_pad)),
        "wpb": _pad_to(pw[H:], (H_pad, K_pad)),
        "bp": _pad_to(raw["proj_b"].reshape(1, K), (1, K_pad)),
    }


@functools.partial(jax.jit,
                   static_argnames=("encoder_layers", "decoder_layers", "n_blocks"))
def recurrent_router_forward(task_embed, kparams, *, encoder_layers, decoder_layers,
                             n_blocks):
    """Returns (encoder_block_distribution, decoder_block_distribution):
       shapes (encoder_layers, B, n_blocks) and (decoder_layers, B, n_blocks)."""
    B, _ = task_embed.shape
    L = encoder_layers + decoder_layers
    D_pad = kparams["wfold"].shape[0]
    H_pad = kparams["wpf"].shape[0]
    K_pad = kparams["wpf"].shape[1]
    G = 3 * H_pad
    assert kparams["wfold"].shape[1] == 2 * L * G
    B_pad = _round_up(B, 8)

    x = _pad_to(task_embed.astype(jnp.float32), (B_pad, D_pad))

    inputs = (x, kparams["wfold"], kparams["bfold"],
              kparams["whh_f"], kparams["bhh_f"],
              kparams["whh_b"], kparams["bhh_b"],
              kparams["wpf"], kparams["wpb"], kparams["bp"])

    flops = (2 * B_pad * D_pad * (2 * L * G)              # folded input-gate matmul
             + 2 * L * (2 * B_pad * H_pad * G)            # recurrent gh matmuls (2 dirs)
             + 2 * (2 * (L * B_pad) * H_pad * K_pad))     # batched output projection
    transcendentals = 2 * L * 3 * B_pad * H_pad           # 2 sigmoid + 1 tanh per step/dir
    bytes_accessed = (L * B_pad * K_pad * 4
                      + sum(int(a.size) * a.dtype.itemsize for a in inputs))

    out = pl.pallas_call(
        _make_bigru_router_kernel(L, H_pad, K_pad),
        out_shape=jax.ShapeDtypeStruct((L, B_pad, K_pad), jnp.float32),
        in_specs=[pl.BlockSpec(memory_space=pltpu.MemorySpace.VMEM)] * len(inputs),
        out_specs=pl.BlockSpec(memory_space=pltpu.MemorySpace.VMEM),
        scratch_shapes=[pltpu.VMEM((B_pad, 2 * L * G), jnp.float32)],  # gi for all steps
        compiler_params=pltpu.CompilerParams(vmem_limit_bytes=8 * 1024 * 1024),
        cost_estimate=pl.CostEstimate(flops=int(flops),
                                      transcendentals=int(transcendentals),
                                      bytes_accessed=int(bytes_accessed)),
    )(*inputs)

    out = out[:, :B, :n_blocks]          # strip sublane / lane padding (pure slicing)
    return out[:encoder_layers], out[encoder_layers:]


def _reference_forward(task_embed, raw, *, num_layers, hidden_dim, encoder_layers):
    """Pure-JAX f32 reference mirroring the PyTorch module (GRU variant)."""
    H, L = hidden_dim, num_layers
    x = task_embed @ raw["lsp_w"].T + raw["lsp_b"]
    x = x.reshape(-1, L, H)

    def sig(v):
        return 1.0 / (1.0 + jnp.exp(-v))

    def cell(x_t, h, wih, whh, bih, bhh):
        gi = x_t @ wih.T + bih
        gh = h @ whh.T + bhh
        r = sig(gi[:, :H] + gh[:, :H])
        z = sig(gi[:, H:2 * H] + gh[:, H:2 * H])
        n = jnp.tanh(gi[:, 2 * H:] + r * gh[:, 2 * H:])
        return (1.0 - z) * n + z * h

    B = x.shape[0]
    h = jnp.zeros((B, H), jnp.float32)
    fwd = []
    for t in range(L):
        h = cell(x[:, t], h, raw["wih_f"], raw["whh_f"], raw["bih_f"], raw["bhh_f"])
        fwd.append(h)
    h = jnp.zeros((B, H), jnp.float32)
    bwd = [None] * L
    for t in range(L - 1, -1, -1):
        h = cell(x[:, t], h, raw["wih_b"], raw["whh_b"], raw["bih_b"], raw["bhh_b"])
        bwd[t] = h
    y = jnp.concatenate([jnp.stack(fwd, 1), jnp.stack(bwd, 1)], axis=-1)   # (B, L, 2H)
    o = y @ raw["proj_w"].T + raw["proj_b"]                                # (B, L, K)
    o = jnp.transpose(o, (1, 0, 2))                                        # (L, B, K)
    return o[:encoder_layers], o[encoder_layers:]


if __name__ == "__main__":
    # small config consistent with the module
    B = 2
    router_input_dim = 32
    router_hidden_dim = 32
    encoder_layers = 3
    decoder_layers = 3
    n_blocks = 4
    L = encoder_layers + decoder_layers
    H = router_hidden_dim

    key = jax.random.PRNGKey(0)
    keys = jax.random.split(key, 13)

    def u(k, shape, fan_in):
        s = 1.0 / float(fan_in) ** 0.5
        return jax.random.uniform(k, shape, jnp.float32, -s, s)

    raw = {
        "lsp_w": u(keys[0], (L * H, router_input_dim), router_input_dim),
        "lsp_b": u(keys[1], (L * H,), router_input_dim),
        "wih_f": u(keys[2], (3 * H, H), H),
        "whh_f": u(keys[3], (3 * H, H), H),
        "bih_f": u(keys[4], (3 * H,), H),
        "bhh_f": u(keys[5], (3 * H,), H),
        "wih_b": u(keys[6], (3 * H, H), H),
        "whh_b": u(keys[7], (3 * H, H), H),
        "bih_b": u(keys[8], (3 * H,), H),
        "bhh_b": u(keys[9], (3 * H,), H),
        "proj_w": u(keys[10], (n_blocks, 2 * H), 2 * H),
        "proj_b": u(keys[11], (n_blocks,), 2 * H),
    }
    task_embed = jax.random.normal(keys[12], (B, router_input_dim), jnp.float32)

    # one-time parameter packing/folding into the padded, lane-dense kernel layout
    kparams = prepare_router_params(raw, num_layers=L, hidden_dim=H,
                                    input_dim=router_input_dim, n_blocks=n_blocks)

    enc, dec = recurrent_router_forward(task_embed, kparams,
                                        encoder_layers=encoder_layers,
                                        decoder_layers=decoder_layers,
                                        n_blocks=n_blocks)
    enc = jax.block_until_ready(enc)
    dec = jax.block_until_ready(dec)

    enc_ref, dec_ref = _reference_forward(task_embed, raw, num_layers=L, hidden_dim=H,
                                          encoder_layers=encoder_layers)

    assert enc.shape == (encoder_layers, B, n_blocks)
    assert dec.shape == (decoder_layers, B, n_blocks)
    # tolerance accounts for bf16 recurrent matmuls + approx-reciprocal sigmoid in-kernel
    assert jnp.allclose(enc, enc_ref, atol=2e-2, rtol=2e-2), \
        float(jnp.max(jnp.abs(enc - enc_ref)))
    assert jnp.allclose(dec, dec_ref, atol=2e-2, rtol=2e-2), \
        float(jnp.max(jnp.abs(dec - dec_ref)))

    print("KERNEL_OK")
</pallas_src>

<mosaic_0001>
module attributes {stable_mosaic.version = 11 : i64} {
  func.func @kernel(%arg0: memref<8x128xf32, #tpu.memory_space<vmem>>, %arg1: memref<128x4608xf32, #tpu.memory_space<vmem>>, %arg2: memref<1x4608xf32, #tpu.memory_space<vmem>>, %arg3: memref<128x384xbf16, #tpu.memory_space<vmem>>, %arg4: memref<1x384xf32, #tpu.memory_space<vmem>>, %arg5: memref<128x384xbf16, #tpu.memory_space<vmem>>, %arg6: memref<1x384xf32, #tpu.memory_space<vmem>>, %arg7: memref<128x128xf32, #tpu.memory_space<vmem>>, %arg8: memref<128x128xf32, #tpu.memory_space<vmem>>, %arg9: memref<1x128xf32, #tpu.memory_space<vmem>>, %arg10: memref<6x8x128xf32, #tpu.memory_space<vmem>>, %arg11: memref<8x4608xf32, #tpu.memory_space<vmem>>) attributes {dimension_semantics = [], scalar_prefetch = 0 : i64, scratch_operands = 1 : i64, tpu.core_type = #tpu.core_type<tc>} {
    %c0 = arith.constant 0 : index
    %c0_0 = arith.constant 0 : index
    %0 = vector.load %arg0[%c0, %c0_0] : memref<8x128xf32, #tpu.memory_space<vmem>>, vector<8x128xf32>
    %c0_1 = arith.constant 0 : index
    %c0_2 = arith.constant 0 : index
    %1 = vector.load %arg1[%c0_1, %c0_2] : memref<128x4608xf32, #tpu.memory_space<vmem>>, vector<128x4608xf32>
    %cst = arith.constant dense<0.000000e+00> : vector<8x4608xf32>
    %2 = tpu.matmul %0, %1, %cst {dimension_numbers = #tpu.dot_dimension_numbers<[1], [0], [0], [1], [0, 0, 1, 1], [], []>} : vector<8x128xf32>, vector<128x4608xf32>, vector<8x4608xf32> -> vector<8x4608xf32>
    %c0_3 = arith.constant 0 : index
    %c0_4 = arith.constant 0 : index
    %3 = vector.load %arg2[%c0_3, %c0_4] : memref<1x4608xf32, #tpu.memory_space<vmem>>, vector<1x4608xf32>
    %4 = vector.shape_cast %3 : vector<1x4608xf32> to vector<1x4608xf32>
    %5 = vector.broadcast %4 : vector<1x4608xf32> to vector<8x4608xf32>
    %6 = arith.addf %2, %5 : vector<8x4608xf32>
    %c0_5 = arith.constant 0 : index
    %c0_6 = arith.constant 0 : index
    %7 = vector.load %arg11[%c0_5, %c0_6] : memref<8x4608xf32, #tpu.memory_space<vmem>>, vector<8x4608xf32>
    tpu.vector_store %arg11[%c0_5, %c0_6], %6 {strides = array<i32>} : memref<8x4608xf32, #tpu.memory_space<vmem>>, vector<8x4608xf32>,
    %c0_7 = arith.constant 0 : index
    %c0_8 = arith.constant 0 : index
    %8 = vector.load %arg4[%c0_7, %c0_8] : memref<1x384xf32, #tpu.memory_space<vmem>>, vector<1x384xf32>
    %9 = vector.shape_cast %8 : vector<1x384xf32> to vector<1x384xf32>
    %10 = vector.broadcast %9 : vector<1x384xf32> to vector<8x384xf32>
    %c0_9 = arith.constant 0 : index
    %c0_10 = arith.constant 0 : index
    %11 = vector.load %arg6[%c0_9, %c0_10] : memref<1x384xf32, #tpu.memory_space<vmem>>, vector<1x384xf32>
    %12 = vector.shape_cast %11 : vector<1x384xf32> to vector<1x384xf32>
    %13 = vector.broadcast %12 : vector<1x384xf32> to vector<8x384xf32>
    %cst_11 = arith.constant 0.000000e+00 : f32
    %14 = vector.broadcast %cst_11 : f32 to vector<8x128xf32>
    %c0_12 = arith.constant 0 : index
    %c0_13 = arith.constant 0 : index
    %15 = vector.load %arg11[%c0_12, %c0_13] : memref<8x4608xf32, #tpu.memory_space<vmem>>, vector<8x384xf32>
    %16 = arith.truncf %14 : vector<8x128xf32> to vector<8x128xbf16>
    %c0_14 = arith.constant 0 : index
    %c0_15 = arith.constant 0 : index
    %17 = vector.load %arg3[%c0_14, %c0_15] : memref<128x384xbf16, #tpu.memory_space<vmem>>, vector<128x384xbf16>
    %cst_16 = arith.constant dense<0.000000e+00> : vector<8x384xf32>
    %18 = tpu.matmul %16, %17, %cst_16 {dimension_numbers = #tpu.dot_dimension_numbers<[1], [0], [0], [1], [0, 0, 1, 1], [], []>} : vector<8x128xbf16>, vector<128x384xbf16>, vector<8x384xf32> -> vector<8x384xf32>
    %19 = arith.addf %18, %10 : vector<8x384xf32>
    %20 = vector.extract_strided_slice %15 {offsets = [0, 0], sizes = [8, 128], strides = [1, 1]} : vector<8x384xf32> to vector<8x128xf32>
    %21 = vector.extract_strided_slice %19 {offsets = [0, 0], sizes = [8, 128], strides = [1, 1]} : vector<8x384xf32> to vector<8x128xf32>
    %22 = arith.addf %20, %21 : vector<8x128xf32>
    %cst_17 = arith.constant 0.000000e+00 : f32
    %23 = vector.broadcast %cst_17 : f32 to vector<8x128xf32>
    %24 = arith.subf %23, %22 : vector<8x128xf32>
    %25 = math.exp %24 : vector<8x128xf32>
    %cst_18 = arith.constant 1.000000e+00 : f32
    %26 = vector.broadcast %cst_18 : f32 to vector<8x128xf32>
    %27 = arith.addf %26, %25 : vector<8x128xf32>
    %28 = tpu.reciprocal %27 {approx = true} : vector<8x128xf32> -> vector<8x128xf32>
    %29 = vector.extract_strided_slice %15 {offsets = [0, 128], sizes = [8, 128], strides = [1, 1]} : vector<8x384xf32> to vector<8x128xf32>
    %30 = vector.extract_strided_slice %19 {offsets = [0, 128], sizes = [8, 128], strides = [1, 1]} : vector<8x384xf32> to vector<8x128xf32>
    %31 = arith.addf %29, %30 : vector<8x128xf32>
    %cst_19 = arith.constant 0.000000e+00 : f32
    %32 = vector.broadcast %cst_19 : f32 to vector<8x128xf32>
    %33 = arith.subf %32, %31 : vector<8x128xf32>
    %34 = math.exp %33 : vector<8x128xf32>
    %cst_20 = arith.constant 1.000000e+00 : f32
    %35 = vector.broadcast %cst_20 : f32 to vector<8x128xf32>
    %36 = arith.addf %35, %34 : vector<8x128xf32>
    %37 = tpu.reciprocal %36 {approx = true} : vector<8x128xf32> -> vector<8x128xf32>
    %38 = vector.extract_strided_slice %15 {offsets = [0, 256], sizes = [8, 128], strides = [1, 1]} : vector<8x384xf32> to vector<8x128xf32>
    %39 = vector.extract_strided_slice %19 {offsets = [0, 256], sizes = [8, 128], strides = [1, 1]} : vector<8x384xf32> to vector<8x128xf32>
    %40 = arith.mulf %28, %39 : vector<8x128xf32>
    %41 = arith.addf %38, %40 : vector<8x128xf32>
    %42 = math.tanh %41 : vector<8x128xf32>
    %cst_21 = arith.constant 1.000000e+00 : f32
    %43 = vector.broadcast %cst_21 : f32 to vector<8x128xf32>
    %44 = arith.subf %43, %37 : vector<8x128xf32>
    %45 = arith.mulf %44, %42 : vector<8x128xf32>
    %46 = arith.mulf %37, %14 : vector<8x128xf32>
    %47 = arith.addf %45, %46 : vector<8x128xf32>
    %c0_22 = arith.constant 0 : index
    %c384 = arith.constant 384 : index
    %48 = vector.load %arg11[%c0_22, %c384] : memref<8x4608xf32, #tpu.memory_space<vmem>>, vector<8x384xf32>
    %49 = arith.truncf %47 : vector<8x128xf32> to vector<8x128xbf16>
    %c0_23 = arith.constant 0 : index
    %c0_24 = arith.constant 0 : index
    %50 = vector.load %arg3[%c0_23, %c0_24] : memref<128x384xbf16, #tpu.memory_space<vmem>>, vector<128x384xbf16>
    %cst_25 = arith.constant dense<0.000000e+00> : vector<8x384xf32>
    %51 = tpu.matmul %49, %50, %cst_25 {dimension_numbers = #tpu.dot_dimension_numbers<[1], [0], [0], [1], [0, 0, 1, 1], [], []>} : vector<8x128xbf16>, vector<128x384xbf16>, vector<8x384xf32> -> vector<8x384xf32>
    %52 = arith.addf %51, %10 : vector<8x384xf32>
    %53 = vector.extract_strided_slice %48 {offsets = [0, 0], sizes = [8, 128], strides = [1, 1]} : vector<8x384xf32> to vector<8x128xf32>
    %54 = vector.extract_strided_slice %52 {offsets = [0, 0], sizes = [8, 128], strides = [1, 1]} : vector<8x384xf32> to vector<8x128xf32>
    %55 = arith.addf %53, %54 : vector<8x128xf32>
    %cst_26 = arith.constant 0.000000e+00 : f32
    %56 = vector.broadcast %cst_26 : f32 to vector<8x128xf32>
    %57 = arith.subf %56, %55 : vector<8x128xf32>
    %58 = math.exp %57 : vector<8x128xf32>
    %cst_27 = arith.constant 1.000000e+00 : f32
    %59 = vector.broadcast %cst_27 : f32 to vector<8x128xf32>
    %60 = arith.addf %59, %58 : vector<8x128xf32>
    %61 = tpu.reciprocal %60 {approx = true} : vector<8x128xf32> -> vector<8x128xf32>
    %62 = vector.extract_strided_slice %48 {offsets = [0, 128], sizes = [8, 128], strides = [1, 1]} : vector<8x384xf32> to vector<8x128xf32>
    %63 = vector.extract_strided_slice %52 {offsets = [0, 128], sizes = [8, 128], strides = [1, 1]} : vector<8x384xf32> to vector<8x128xf32>
    %64 = arith.addf %62, %63 : vector<8x128xf32>
    %cst_28 = arith.constant 0.000000e+00 : f32
    %65 = vector.broadcast %cst_28 : f32 to vector<8x128xf32>
    %66 = arith.subf %65, %64 : vector<8x128xf32>
    %67 = math.exp %66 : vector<8x128xf32>
    %cst_29 = arith.constant 1.000000e+00 : f32
    %68 = vector.broadcast %cst_29 : f32 to vector<8x128xf32>
    %69 = arith.addf %68, %67 : vector<8x128xf32>
    %70 = tpu.reciprocal %69 {approx = true} : vector<8x128xf32> -> vector<8x128xf32>
    %71 = vector.extract_strided_slice %48 {offsets = [0, 256], sizes = [8, 128], strides = [1, 1]} : vector<8x384xf32> to vector<8x128xf32>
    %72 = vector.extract_strided_slice %52 {offsets = [0, 256], sizes = [8, 128], strides = [1, 1]} : vector<8x384xf32> to vector<8x128xf32>
    %73 = arith.mulf %61, %72 : vector<8x128xf32>
    %74 = arith.addf %71, %73 : vector<8x128xf32>
    %75 = math.tanh %74 : vector<8x128xf32>
    %cst_30 = arith.constant 1.000000e+00 : f32
    %76 = vector.broadcast %cst_30 : f32 to vector<8x128xf32>
    %77 = arith.subf %76, %70 : vector<8x128xf32>
    %78 = arith.mulf %77, %75 : vector<8x128xf32>
    %79 = arith.mulf %70, %47 : vector<8x128xf32>
    %80 = arith.addf %78, %79 : vector<8x128xf32>
    %c0_31 = arith.constant 0 : index
    %c768 = arith.constant 768 : index
    %81 = vector.load %arg11[%c0_31, %c768] : memref<8x4608xf32, #tpu.memory_space<vmem>>, vector<8x384xf32>
    %82 = arith.truncf %80 : vector<8x128xf32> to vector<8x128xbf16>
    %c0_32 = arith.constant 0 : index
    %c0_33 = arith.constant 0 : index
    %83 = vector.load %arg3[%c0_32, %c0_33] : memref<128x384xbf16, #tpu.memory_space<vmem>>, vector<128x384xbf16>
    %cst_34 = arith.constant dense<0.000000e+00> : vector<8x384xf32>
    %84 = tpu.matmul %82, %83, %cst_34 {dimension_numbers = #tpu.dot_dimension_numbers<[1], [0], [0], [1], [0, 0, 1, 1], [], []>} : vector<8x128xbf16>, vector<128x384xbf16>, vector<8x384xf32> -> vector<8x384xf32>
    %85 = arith.addf %84, %10 : vector<8x384xf32>
    %86 = vector.extract_strided_slice %81 {offsets = [0, 0], sizes = [8, 128], strides = [1, 1]} : vector<8x384xf32> to vector<8x128xf32>
    %87 = vector.extract_strided_slice %85 {offsets = [0, 0], sizes = [8, 128], strides = [1, 1]} : vector<8x384xf32> to vector<8x128xf32>
    %88 = arith.addf %86, %87 : vector<8x128xf32>
    %cst_35 = arith.constant 0.000000e+00 : f32
    %89 = vector.broadcast %cst_35 : f32 to vector<8x128xf32>
    %90 = arith.subf %89, %88 : vector<8x128xf32>
    %91 = math.exp %90 : vector<8x128xf32>
    %cst_36 = arith.constant 1.000000e+00 : f32
    %92 = vector.broadcast %cst_36 : f32 to vector<8x128xf32>
    %93 = arith.addf %92, %91 : vector<8x128xf32>
    %94 = tpu.reciprocal %93 {approx = true} : vector<8x128xf32> -> vector<8x128xf32>
    %95 = vector.extract_strided_slice %81 {offsets = [0, 128], sizes = [8, 128], strides = [1, 1]} : vector<8x384xf32> to vector<8x128xf32>
    %96 = vector.extract_strided_slice %85 {offsets = [0, 128], sizes = [8, 128], strides = [1, 1]} : vector<8x384xf32> to vector<8x128xf32>
    %97 = arith.addf %95, %96 : vector<8x128xf32>
    %cst_37 = arith.constant 0.000000e+00 : f32
    %98 = vector.broadcast %cst_37 : f32 to vector<8x128xf32>
    %99 = arith.subf %98, %97 : vector<8x128xf32>
    %100 = math.exp %99 : vector<8x128xf32>
    %cst_38 = arith.constant 1.000000e+00 : f32
    %101 = vector.broadcast %cst_38 : f32 to vector<8x128xf32>
    %102 = arith.addf %101, %100 : vector<8x128xf32>
    %103 = tpu.reciprocal %102 {approx = true} : vector<8x128xf32> -> vector<8x128xf32>
    %104 = vector.extract_strided_slice %81 {offsets = [0, 256], sizes = [8, 128], strides = [1, 1]} : vector<8x384xf32> to vector<8x128xf32>
    %105 = vector.extract_strided_slice %85 {offsets = [0, 256], sizes = [8, 128], strides = [1, 1]} : vector<8x384xf32> to vector<8x128xf32>
    %106 = arith.mulf %94, %105 : vector<8x128xf32>
    %107 = arith.addf %104, %106 : vector<8x128xf32>
    %108 = math.tanh %107 : vector<8x128xf32>
    %cst_39 = arith.constant 1.000000e+00 : f32
    %109 = vector.broadcast %cst_39 : f32 to vector<8x128xf32>
    %110 = arith.subf %109, %103 : vector<8x128xf32>
    %111 = arith.mulf %110, %108 : vector<8x128xf32>
    %112 = arith.mulf %103, %80 : vector<8x128xf32>
    %113 = arith.addf %111, %112 : vector<8x128xf32>
    %c0_40 = arith.constant 0 : index
    %c1152 = arith.constant 1152 : index
    %114 = vector.load %arg11[%c0_40, %c1152] : memref<8x4608xf32, #tpu.memory_space<vmem>>, vector<8x384xf32>
    %115 = arith.truncf %113 : vector<8x128xf32> to vector<8x128xbf16>
    %c0_41 = arith.constant 0 : index
    %c0_42 = arith.constant 0 : index
    %116 = vector.load %arg3[%c0_41, %c0_42] : memref<128x384xbf16, #tpu.memory_space<vmem>>, vector<128x384xbf16>
    %cst_43 = arith.constant dense<0.000000e+00> : vector<8x384xf32>
    %117 = tpu.matmul %115, %116, %cst_43 {dimension_numbers = #tpu.dot_dimension_numbers<[1], [0], [0], [1], [0, 0, 1, 1], [], []>} : vector<8x128xbf16>, vector<128x384xbf16>, vector<8x384xf32> -> vector<8x384xf32>
    %118 = arith.addf %117, %10 : vector<8x384xf32>
    %119 = vector.extract_strided_slice %114 {offsets = [0, 0], sizes = [8, 128], strides = [1, 1]} : vector<8x384xf32> to vector<8x128xf32>
    %120 = vector.extract_strided_slice %118 {offsets = [0, 0], sizes = [8, 128], strides = [1, 1]} : vector<8x384xf32> to vector<8x128xf32>
    %121 = arith.addf %119, %120 : vector<8x128xf32>
    %cst_44 = arith.constant 0.000000e+00 : f32
    %122 = vector.broadcast %cst_44 : f32 to vector<8x128xf32>
    %123 = arith.subf %122, %121 : vector<8x128xf32>
    %124 = math.exp %123 : vector<8x128xf32>
    %cst_45 = arith.constant 1.000000e+00 : f32
    %125 = vector.broadcast %cst_45 : f32 to vector<8x128xf32>
    %126 = arith.addf %125, %124 : vector<8x128xf32>
    %127 = tpu.reciprocal %126 {approx = true} : vector<8x128xf32> -> vector<8x128xf32>
    %128 = vector.extract_strided_slice %114 {offsets = [0, 128], sizes = [8, 128], strides = [1, 1]} : vector<8x384xf32> to vector<8x128xf32>
    %129 = vector.extract_strided_slice %118 {offsets = [0, 128], sizes = [8, 128], strides = [1, 1]} : vector<8x384xf32> to vector<8x128xf32>
    %130 = arith.addf %128, %129 : vector<8x128xf32>
    %cst_46 = arith.constant 0.000000e+00 : f32
    %131 = vector.broadcast %cst_46 : f32 to vector<8x128xf32>
    %132 = arith.subf %131, %130 : vector<8x128xf32>
    %133 = math.exp %132 : vector<8x128xf32>
    %cst_47 = arith.constant 1.000000e+00 : f32
    %134 = vector.broadcast %cst_47 : f32 to vector<8x128xf32>
    %135 = arith.addf %134, %133 : vector<8x128xf32>
    %136 = tpu.reciprocal %135 {approx = true} : vector<8x128xf32> -> vector<8x128xf32>
    %137 = vector.extract_strided_slice %114 {offsets = [0, 256], sizes = [8, 128], strides = [1, 1]} : vector<8x384xf32> to vector<8x128xf32>
    %138 = vector.extract_strided_slice %118 {offsets = [0, 256], sizes = [8, 128], strides = [1, 1]} : vector<8x384xf32> to vector<8x128xf32>
    %139 = arith.mulf %127, %138 : vector<8x128xf32>
    %140 = arith.addf %137, %139 : vector<8x128xf32>
    %141 = math.tanh %140 : vector<8x128xf32>
    %cst_48 = arith.constant 1.000000e+00 : f32
    %142 = vector.broadcast %cst_48 : f32 to vector<8x128xf32>
    %143 = arith.subf %142, %136 : vector<8x128xf32>
    %144 = arith.mulf %143, %141 : vector<8x128xf32>
    %145 = arith.mulf %136, %113 : vector<8x128xf32>
    %146 = arith.addf %144, %145 : vector<8x128xf32>
    %c0_49 = arith.constant 0 : index
    %c1536 = arith.constant 1536 : index
    %147 = vector.load %arg11[%c0_49, %c1536] : memref<8x4608xf32, #tpu.memory_space<vmem>>, vector<8x384xf32>
    %148 = arith.truncf %146 : vector<8x128xf32> to vector<8x128xbf16>
    %c0_50 = arith.constant 0 : index
    %c0_51 = arith.constant 0 : index
    %149 = vector.load %arg3[%c0_50, %c0_51] : memref<128x384xbf16, #tpu.memory_space<vmem>>, vector<128x384xbf16>
    %cst_52 = arith.constant dense<0.000000e+00> : vector<8x384xf32>
    %150 = tpu.matmul %148, %149, %cst_52 {dimension_numbers = #tpu.dot_dimension_numbers<[1], [0], [0], [1], [0, 0, 1, 1], [], []>} : vector<8x128xbf16>, vector<128x384xbf16>, vector<8x384xf32> -> vector<8x384xf32>
    %151 = arith.addf %150, %10 : vector<8x384xf32>
    %152 = vector.extract_strided_slice %147 {offsets = [0, 0], sizes = [8, 128], strides = [1, 1]} : vector<8x384xf32> to vector<8x128xf32>
    %153 = vector.extract_strided_slice %151 {offsets = [0, 0], sizes = [8, 128], strides = [1, 1]} : vector<8x384xf32> to vector<8x128xf32>
    %154 = arith.addf %152, %153 : vector<8x128xf32>
    %cst_53 = arith.constant 0.000000e+00 : f32
    %155 = vector.broadcast %cst_53 : f32 to vector<8x128xf32>
    %156 = arith.subf %155, %154 : vector<8x128xf32>
    %157 = math.exp %156 : vector<8x128xf32>
    %cst_54 = arith.constant 1.000000e+00 : f32
    %158 = vector.broadcast %cst_54 : f32 to vector<8x128xf32>
    %159 = arith.addf %158, %157 : vector<8x128xf32>
    %160 = tpu.reciprocal %159 {approx = true} : vector<8x128xf32> -> vector<8x128xf32>
    %161 = vector.extract_strided_slice %147 {offsets = [0, 128], sizes = [8, 128], strides = [1, 1]} : vector<8x384xf32> to vector<8x128xf32>
    %162 = vector.extract_strided_slice %151 {offsets = [0, 128], sizes = [8, 128], strides = [1, 1]} : vector<8x384xf32> to vector<8x128xf32>
    %163 = arith.addf %161, %162 : vector<8x128xf32>
    %cst_55 = arith.constant 0.000000e+00 : f32
    %164 = vector.broadcast %cst_55 : f32 to vector<8x128xf32>
    %165 = arith.subf %164, %163 : vector<8x128xf32>
    %166 = math.exp %165 : vector<8x128xf32>
    %cst_56 = arith.constant 1.000000e+00 : f32
    %167 = vector.broadcast %cst_56 : f32 to vector<8x128xf32>
    %168 = arith.addf %167, %166 : vector<8x128xf32>
    %169 = tpu.reciprocal %168 {approx = true} : vector<8x128xf32> -> vector<8x128xf32>
    %170 = vector.extract_strided_slice %147 {offsets = [0, 256], sizes = [8, 128], strides = [1, 1]} : vector<8x384xf32> to vector<8x128xf32>
    %171 = vector.extract_strided_slice %151 {offsets = [0, 256], sizes = [8, 128], strides = [1, 1]} : vector<8x384xf32> to vector<8x128xf32>
    %172 = arith.mulf %160, %171 : vector<8x128xf32>
    %173 = arith.addf %170, %172 : vector<8x128xf32>
    %174 = math.tanh %173 : vector<8x128xf32>
    %cst_57 = arith.constant 1.000000e+00 : f32
    %175 = vector.broadcast %cst_57 : f32 to vector<8x128xf32>
    %176 = arith.subf %175, %169 : vector<8x128xf32>
    %177 = arith.mulf %176, %174 : vector<8x128xf32>
    %178 = arith.mulf %169, %146 : vector<8x128xf32>
    %179 = arith.addf %177, %178 : vector<8x128xf32>
    %c0_58 = arith.constant 0 : index
    %c1920 = arith.constant 1920 : index
    %180 = vector.load %arg11[%c0_58, %c1920] : memref<8x4608xf32, #tpu.memory_space<vmem>>, vector<8x384xf32>
    %181 = arith.truncf %179 : vector<8x128xf32> to vector<8x128xbf16>
    %c0_59 = arith.constant 0 : index
    %c0_60 = arith.constant 0 : index
    %182 = vector.load %arg3[%c0_59, %c0_60] : memref<128x384xbf16, #tpu.memory_space<vmem>>, vector<128x384xbf16>
    %cst_61 = arith.constant dense<0.000000e+00> : vector<8x384xf32>
    %183 = tpu.matmul %181, %182, %cst_61 {dimension_numbers = #tpu.dot_dimension_numbers<[1], [0], [0], [1], [0, 0, 1, 1], [], []>} : vector<8x128xbf16>, vector<128x384xbf16>, vector<8x384xf32> -> vector<8x384xf32>
    %184 = arith.addf %183, %10 : vector<8x384xf32>
    %185 = vector.extract_strided_slice %180 {offsets = [0, 0], sizes = [8, 128], strides = [1, 1]} : vector<8x384xf32> to vector<8x128xf32>
    %186 = vector.extract_strided_slice %184 {offsets = [0, 0], sizes = [8, 128], strides = [1, 1]} : vector<8x384xf32> to vector<8x128xf32>
    %187 = arith.addf %185, %186 : vector<8x128xf32>
    %cst_62 = arith.constant 0.000000e+00 : f32
    %188 = vector.broadcast %cst_62 : f32 to vector<8x128xf32>
    %189 = arith.subf %188, %187 : vector<8x128xf32>
    %190 = math.exp %189 : vector<8x128xf32>
    %cst_63 = arith.constant 1.000000e+00 : f32
    %191 = vector.broadcast %cst_63 : f32 to vector<8x128xf32>
    %192 = arith.addf %191, %190 : vector<8x128xf32>
    %193 = tpu.reciprocal %192 {approx = true} : vector<8x128xf32> -> vector<8x128xf32>
    %194 = vector.extract_strided_slice %180 {offsets = [0, 128], sizes = [8, 128], strides = [1, 1]} : vector<8x384xf32> to vector<8x128xf32>
    %195 = vector.extract_strided_slice %184 {offsets = [0, 128], sizes = [8, 128], strides = [1, 1]} : vector<8x384xf32> to vector<8x128xf32>
    %196 = arith.addf %194, %195 : vector<8x128xf32>
    %cst_64 = arith.constant 0.000000e+00 : f32
    %197 = vector.broadcast %cst_64 : f32 to vector<8x128xf32>
    %198 = arith.subf %197, %196 : vector<8x128xf32>
    %199 = math.exp %198 : vector<8x128xf32>
    %cst_65 = arith.constant 1.000000e+00 : f32
    %200 = vector.broadcast %cst_65 : f32 to vector<8x128xf32>
    %201 = arith.addf %200, %199 : vector<8x128xf32>
    %202 = tpu.reciprocal %201 {approx = true} : vector<8x128xf32> -> vector<8x128xf32>
    %203 = vector.extract_strided_slice %180 {offsets = [0, 256], sizes = [8, 128], strides = [1, 1]} : vector<8x384xf32> to vector<8x128xf32>
    %204 = vector.extract_strided_slice %184 {offsets = [0, 256], sizes = [8, 128], strides = [1, 1]} : vector<8x384xf32> to vector<8x128xf32>
    %205 = arith.mulf %193, %204 : vector<8x128xf32>
    %206 = arith.addf %203, %205 : vector<8x128xf32>
    %207 = math.tanh %206 : vector<8x128xf32>
    %cst_66 = arith.constant 1.000000e+00 : f32
    %208 = vector.broadcast %cst_66 : f32 to vector<8x128xf32>
    %209 = arith.subf %208, %202 : vector<8x128xf32>
    %210 = arith.mulf %209, %207 : vector<8x128xf32>
    %211 = arith.mulf %202, %179 : vector<8x128xf32>
    %212 = arith.addf %210, %211 : vector<8x128xf32>
    %cst_67 = arith.constant 0.000000e+00 : f32
    %213 = vector.broadcast %cst_67 : f32 to vector<8x128xf32>
    %c0_68 = arith.constant 0 : index
    %c4224 = arith.constant 4224 : index
    %214 = vector.load %arg11[%c0_68, %c4224] : memref<8x4608xf32, #tpu.memory_space<vmem>>, vector<8x384xf32>
    %215 = arith.truncf %213 : vector<8x128xf32> to vector<8x128xbf16>
    %c0_69 = arith.constant 0 : index
    %c0_70 = arith.constant 0 : index
    %216 = vector.load %arg5[%c0_69, %c0_70] : memref<128x384xbf16, #tpu.memory_space<vmem>>, vector<128x384xbf16>
    %cst_71 = arith.constant dense<0.000000e+00> : vector<8x384xf32>
    %217 = tpu.matmul %215, %216, %cst_71 {dimension_numbers = #tpu.dot_dimension_numbers<[1], [0], [0], [1], [0, 0, 1, 1], [], []>} : vector<8x128xbf16>, vector<128x384xbf16>, vector<8x384xf32> -> vector<8x384xf32>
    %218 = arith.addf %217, %13 : vector<8x384xf32>
    %219 = vector.extract_strided_slice %214 {offsets = [0, 0], sizes = [8, 128], strides = [1, 1]} : vector<8x384xf32> to vector<8x128xf32>
    %220 = vector.extract_strided_slice %218 {offsets = [0, 0], sizes = [8, 128], strides = [1, 1]} : vector<8x384xf32> to vector<8x128xf32>
    %221 = arith.addf %219, %220 : vector<8x128xf32>
    %cst_72 = arith.constant 0.000000e+00 : f32
    %222 = vector.broadcast %cst_72 : f32 to vector<8x128xf32>
    %223 = arith.subf %222, %221 : vector<8x128xf32>
    %224 = math.exp %223 : vector<8x128xf32>
    %cst_73 = arith.constant 1.000000e+00 : f32
    %225 = vector.broadcast %cst_73 : f32 to vector<8x128xf32>
    %226 = arith.addf %225, %224 : vector<8x128xf32>
    %227 = tpu.reciprocal %226 {approx = true} : vector<8x128xf32> -> vector<8x128xf32>
    %228 = vector.extract_strided_slice %214 {offsets = [0, 128], sizes = [8, 128], strides = [1, 1]} : vector<8x384xf32> to vector<8x128xf32>
    %229 = vector.extract_strided_slice %218 {offsets = [0, 128], sizes = [8, 128], strides = [1, 1]} : vector<8x384xf32> to vector<8x128xf32>
    %230 = arith.addf %228, %229 : vector<8x128xf32>
    %cst_74 = arith.constant 0.000000e+00 : f32
    %231 = vector.broadcast %cst_74 : f32 to vector<8x128xf32>
    %232 = arith.subf %231, %230 : vector<8x128xf32>
    %233 = math.exp %232 : vector<8x128xf32>
    %cst_75 = arith.constant 1.000000e+00 : f32
    %234 = vector.broadcast %cst_75 : f32 to vector<8x128xf32>
    %235 = arith.addf %234, %233 : vector<8x128xf32>
    %236 = tpu.reciprocal %235 {approx = true} : vector<8x128xf32> -> vector<8x128xf32>
    %237 = vector.extract_strided_slice %214 {offsets = [0, 256], sizes = [8, 128], strides = [1, 1]} : vector<8x384xf32> to vector<8x128xf32>
    %238 = vector.extract_strided_slice %218 {offsets = [0, 256], sizes = [8, 128], strides = [1, 1]} : vector<8x384xf32> to vector<8x128xf32>
    %239 = arith.mulf %227, %238 : vector<8x128xf32>
    %240 = arith.addf %237, %239 : vector<8x128xf32>
    %241 = math.tanh %240 : vector<8x128xf32>
    %cst_76 = arith.constant 1.000000e+00 : f32
    %242 = vector.broadcast %cst_76 : f32 to vector<8x128xf32>
    %243 = arith.subf %242, %236 : vector<8x128xf32>
    %244 = arith.mulf %243, %241 : vector<8x128xf32>
    %245 = arith.mulf %236, %213 : vector<8x128xf32>
    %246 = arith.addf %244, %245 : vector<8x128xf32>
    %c0_77 = arith.constant 0 : index
    %c3840 = arith.constant 3840 : index
    %247 = vector.load %arg11[%c0_77, %c3840] : memref<8x4608xf32, #tpu.memory_space<vmem>>, vector<8x384xf32>
    %248 = arith.truncf %246 : vector<8x128xf32> to vector<8x128xbf16>
    %c0_78 = arith.constant 0 : index
    %c0_79 = arith.constant 0 : index
    %249 = vector.load %arg5[%c0_78, %c0_79] : memref<128x384xbf16, #tpu.memory_space<vmem>>, vector<128x384xbf16>
    %cst_80 = arith.constant dense<0.000000e+00> : vector<8x384xf32>
    %250 = tpu.matmul %248, %249, %cst_80 {dimension_numbers = #tpu.dot_dimension_numbers<[1], [0], [0], [1], [0, 0, 1, 1], [], []>} : vector<8x128xbf16>, vector<128x384xbf16>, vector<8x384xf32> -> vector<8x384xf32>
    %251 = arith.addf %250, %13 : vector<8x384xf32>
    %252 = vector.extract_strided_slice %247 {offsets = [0, 0], sizes = [8, 128], strides = [1, 1]} : vector<8x384xf32> to vector<8x128xf32>
    %253 = vector.extract_strided_slice %251 {offsets = [0, 0], sizes = [8, 128], strides = [1, 1]} : vector<8x384xf32> to vector<8x128xf32>
    %254 = arith.addf %252, %253 : vector<8x128xf32>
    %cst_81 = arith.constant 0.000000e+00 : f32
    %255 = vector.broadcast %cst_81 : f32 to vector<8x128xf32>
    %256 = arith.subf %255, %254 : vector<8x128xf32>
    %257 = math.exp %256 : vector<8x128xf32>
    %cst_82 = arith.constant 1.000000e+00 : f32
    %258 = vector.broadcast %cst_82 : f32 to vector<8x128xf32>
    %259 = arith.addf %258, %257 : vector<8x128xf32>
    %260 = tpu.reciprocal %259 {approx = true} : vector<8x128xf32> -> vector<8x128xf32>
    %261 = vector.extract_strided_slice %247 {offsets = [0, 128], sizes = [8, 128], strides = [1, 1]} : vector<8x384xf32> to vector<8x128xf32>
    %262 = vector.extract_strided_slice %251 {offsets = [0, 128], sizes = [8, 128], strides = [1, 1]} : vector<8x384xf32> to vector<8x128xf32>
    %263 = arith.addf %261, %262 : vector<8x128xf32>
    %cst_83 = arith.constant 0.000000e+00 : f32
    %264 = vector.broadcast %cst_83 : f32 to vector<8x128xf32>
    %265 = arith.subf %264, %263 : vector<8x128xf32>
    %266 = math.exp %265 : vector<8x128xf32>
    %cst_84 = arith.constant 1.000000e+00 : f32
    %267 = vector.broadcast %cst_84 : f32 to vector<8x128xf32>
    %268 = arith.addf %267, %266 : vector<8x128xf32>
    %269 = tpu.reciprocal %268 {approx = true} : vector<8x128xf32> -> vector<8x128xf32>
    %270 = vector.extract_strided_slice %247 {offsets = [0, 256], sizes = [8, 128], strides = [1, 1]} : vector<8x384xf32> to vector<8x128xf32>
    %271 = vector.extract_strided_slice %251 {offsets = [0, 256], sizes = [8, 128], strides = [1, 1]} : vector<8x384xf32> to vector<8x128xf32>
    %272 = arith.mulf %260, %271 : vector<8x128xf32>
    %273 = arith.addf %270, %272 : vector<8x128xf32>
    %274 = math.tanh %273 : vector<8x128xf32>
    %cst_85 = arith.constant 1.000000e+00 : f32
    %275 = vector.broadcast %cst_85 : f32 to vector<8x128xf32>
    %276 = arith.subf %275, %269 : vector<8x128xf32>
    %277 = arith.mulf %276, %274 : vector<8x128xf32>
    %278 = arith.mulf %269, %246 : vector<8x128xf32>
    %279 = arith.addf %277, %278 : vector<8x128xf32>
    %c0_86 = arith.constant 0 : index
    %c3456 = arith.constant 3456 : index
    %280 = vector.load %arg11[%c0_86, %c3456] : memref<8x4608xf32, #tpu.memory_space<vmem>>, vector<8x384xf32>
    %281 = arith.truncf %279 : vector<8x128xf32> to vector<8x128xbf16>
    %c0_87 = arith.constant 0 : index
    %c0_88 = arith.constant 0 : index
    %282 = vector.load %arg5[%c0_87, %c0_88] : memref<128x384xbf16, #tpu.memory_space<vmem>>, vector<128x384xbf16>
    %cst_89 = arith.constant dense<0.000000e+00> : vector<8x384xf32>
    %283 = tpu.matmul %281, %282, %cst_89 {dimension_numbers = #tpu.dot_dimension_numbers<[1], [0], [0], [1], [0, 0, 1, 1], [], []>} : vector<8x128xbf16>, vector<128x384xbf16>, vector<8x384xf32> -> vector<8x384xf32>
    %284 = arith.addf %283, %13 : vector<8x384xf32>
    %285 = vector.extract_strided_slice %280 {offsets = [0, 0], sizes = [8, 128], strides = [1, 1]} : vector<8x384xf32> to vector<8x128xf32>
    %286 = vector.extract_strided_slice %284 {offsets = [0, 0], sizes = [8, 128], strides = [1, 1]} : vector<8x384xf32> to vector<8x128xf32>
    %287 = arith.addf %285, %286 : vector<8x128xf32>
    %cst_90 = arith.constant 0.000000e+00 : f32
    %288 = vector.broadcast %cst_90 : f32 to vector<8x128xf32>
    %289 = arith.subf %288, %287 : vector<8x128xf32>
    %290 = math.exp %289 : vector<8x128xf32>
    %cst_91 = arith.constant 1.000000e+00 : f32
    %291 = vector.broadcast %cst_91 : f32 to vector<8x128xf32>
    %292 = arith.addf %291, %290 : vector<8x128xf32>
    %293 = tpu.reciprocal %292 {approx = true} : vector<8x128xf32> -> vector<8x128xf32>
    %294 = vector.extract_strided_slice %280 {offsets = [0, 128], sizes = [8, 128], strides = [1, 1]} : vector<8x384xf32> to vector<8x128xf32>
    %295 = vector.extract_strided_slice %284 {offsets = [0, 128], sizes = [8, 128], strides = [1, 1]} : vector<8x384xf32> to vector<8x128xf32>
    %296 = arith.addf %294, %295 : vector<8x128xf32>
    %cst_92 = arith.constant 0.000000e+00 : f32
    %297 = vector.broadcast %cst_92 : f32 to vector<8x128xf32>
    %298 = arith.subf %297, %296 : vector<8x128xf32>
    %299 = math.exp %298 : vector<8x128xf32>
    %cst_93 = arith.constant 1.000000e+00 : f32
    %300 = vector.broadcast %cst_93 : f32 to vector<8x128xf32>
    %301 = arith.addf %300, %299 : vector<8x128xf32>
    %302 = tpu.reciprocal %301 {approx = true} : vector<8x128xf32> -> vector<8x128xf32>
    %303 = vector.extract_strided_slice %280 {offsets = [0, 256], sizes = [8, 128], strides = [1, 1]} : vector<8x384xf32> to vector<8x128xf32>
    %304 = vector.extract_strided_slice %284 {offsets = [0, 256], sizes = [8, 128], strides = [1, 1]} : vector<8x384xf32> to vector<8x128xf32>
    %305 = arith.mulf %293, %304 : vector<8x128xf32>
    %306 = arith.addf %303, %305 : vector<8x128xf32>
    %307 = math.tanh %306 : vector<8x128xf32>
    %cst_94 = arith.constant 1.000000e+00 : f32
    %308 = vector.broadcast %cst_94 : f32 to vector<8x128xf32>
    %309 = arith.subf %308, %302 : vector<8x128xf32>
    %310 = arith.mulf %309, %307 : vector<8x128xf32>
    %311 = arith.mulf %302, %279 : vector<8x128xf32>
    %312 = arith.addf %310, %311 : vector<8x128xf32>
    %c0_95 = arith.constant 0 : index
    %c3072 = arith.constant 3072 : index
    %313 = vector.load %arg11[%c0_95, %c3072] : memref<8x4608xf32, #tpu.memory_space<vmem>>, vector<8x384xf32>
    %314 = arith.truncf %312 : vector<8x128xf32> to vector<8x128xbf16>
    %c0_96 = arith.constant 0 : index
    %c0_97 = arith.constant 0 : index
    %315 = vector.load %arg5[%c0_96, %c0_97] : memref<128x384xbf16, #tpu.memory_space<vmem>>, vector<128x384xbf16>
    %cst_98 = arith.constant dense<0.000000e+00> : vector<8x384xf32>
    %316 = tpu.matmul %314, %315, %cst_98 {dimension_numbers = #tpu.dot_dimension_numbers<[1], [0], [0], [1], [0, 0, 1, 1], [], []>} : vector<8x128xbf16>, vector<128x384xbf16>, vector<8x384xf32> -> vector<8x384xf32>
    %317 = arith.addf %316, %13 : vector<8x384xf32>
    %318 = vector.extract_strided_slice %313 {offsets = [0, 0], sizes = [8, 128], strides = [1, 1]} : vector<8x384xf32> to vector<8x128xf32>
    %319 = vector.extract_strided_slice %317 {offsets = [0, 0], sizes = [8, 128], strides = [1, 1]} : vector<8x384xf32> to vector<8x128xf32>
    %320 = arith.addf %318, %319 : vector<8x128xf32>
    %cst_99 = arith.constant 0.000000e+00 : f32
    %321 = vector.broadcast %cst_99 : f32 to vector<8x128xf32>
    %322 = arith.subf %321, %320 : vector<8x128xf32>
    %323 = math.exp %322 : vector<8x128xf32>
    %cst_100 = arith.constant 1.000000e+00 : f32
    %324 = vector.broadcast %cst_100 : f32 to vector<8x128xf32>
    %325 = arith.addf %324, %323 : vector<8x128xf32>
    %326 = tpu.reciprocal %325 {approx = true} : vector<8x128xf32> -> vector<8x128xf32>
    %327 = vector.extract_strided_slice %313 {offsets = [0, 128], sizes = [8, 128], strides = [1, 1]} : vector<8x384xf32> to vector<8x128xf32>
    %328 = vector.extract_strided_slice %317 {offsets = [0, 128], sizes = [8, 128], strides = [1, 1]} : vector<8x384xf32> to vector<8x128xf32>
    %329 = arith.addf %327, %328 : vector<8x128xf32>
    %cst_101 = arith.constant 0.000000e+00 : f32
    %330 = vector.broadcast %cst_101 : f32 to vector<8x128xf32>
    %331 = arith.subf %330, %329 : vector<8x128xf32>
    %332 = math.exp %331 : vector<8x128xf32>
    %cst_102 = arith.constant 1.000000e+00 : f32
    %333 = vector.broadcast %cst_102 : f32 to vector<8x128xf32>
    %334 = arith.addf %333, %332 : vector<8x128xf32>
    %335 = tpu.reciprocal %334 {approx = true} : vector<8x128xf32> -> vector<8x128xf32>
    %336 = vector.extract_strided_slice %313 {offsets = [0, 256], sizes = [8, 128], strides = [1, 1]} : vector<8x384xf32> to vector<8x128xf32>
    %337 = vector.extract_strided_slice %317 {offsets = [0, 256], sizes = [8, 128], strides = [1, 1]} : vector<8x384xf32> to vector<8x128xf32>
    %338 = arith.mulf %326, %337 : vector<8x128xf32>
    %339 = arith.addf %336, %338 : vector<8x128xf32>
    %340 = math.tanh %339 : vector<8x128xf32>
    %cst_103 = arith.constant 1.000000e+00 : f32
    %341 = vector.broadcast %cst_103 : f32 to vector<8x128xf32>
    %342 = arith.subf %341, %335 : vector<8x128xf32>
    %343 = arith.mulf %342, %340 : vector<8x128xf32>
    %344 = arith.mulf %335, %312 : vector<8x128xf32>
    %345 = arith.addf %343, %344 : vector<8x128xf32>
    %c0_104 = arith.constant 0 : index
    %c2688 = arith.constant 2688 : index
    %346 = vector.load %arg11[%c0_104, %c2688] : memref<8x4608xf32, #tpu.memory_space<vmem>>, vector<8x384xf32>
    %347 = arith.truncf %345 : vector<8x128xf32> to vector<8x128xbf16>
    %c0_105 = arith.constant 0 : index
    %c0_106 = arith.constant 0 : index
    %348 = vector.load %arg5[%c0_105, %c0_106] : memref<128x384xbf16, #tpu.memory_space<vmem>>, vector<128x384xbf16>
    %cst_107 = arith.constant dense<0.000000e+00> : vector<8x384xf32>
    %349 = tpu.matmul %347, %348, %cst_107 {dimension_numbers = #tpu.dot_dimension_numbers<[1], [0], [0], [1], [0, 0, 1, 1], [], []>} : vector<8x128xbf16>, vector<128x384xbf16>, vector<8x384xf32> -> vector<8x384xf32>
    %350 = arith.addf %349, %13 : vector<8x384xf32>
    %351 = vector.extract_strided_slice %346 {offsets = [0, 0], sizes = [8, 128], strides = [1, 1]} : vector<8x384xf32> to vector<8x128xf32>
    %352 = vector.extract_strided_slice %350 {offsets = [0, 0], sizes = [8, 128], strides = [1, 1]} : vector<8x384xf32> to vector<8x128xf32>
    %353 = arith.addf %351, %352 : vector<8x128xf32>
    %cst_108 = arith.constant 0.000000e+00 : f32
    %354 = vector.broadcast %cst_108 : f32 to vector<8x128xf32>
    %355 = arith.subf %354, %353 : vector<8x128xf32>
    %356 = math.exp %355 : vector<8x128xf32>
    %cst_109 = arith.constant 1.000000e+00 : f32
    %357 = vector.broadcast %cst_109 : f32 to vector<8x128xf32>
    %358 = arith.addf %357, %356 : vector<8x128xf32>
    %359 = tpu.reciprocal %358 {approx = true} : vector<8x128xf32> -> vector<8x128xf32>
    %360 = vector.extract_strided_slice %346 {offsets = [0, 128], sizes = [8, 128], strides = [1, 1]} : vector<8x384xf32> to vector<8x128xf32>
    %361 = vector.extract_strided_slice %350 {offsets = [0, 128], sizes = [8, 128], strides = [1, 1]} : vector<8x384xf32> to vector<8x128xf32>
    %362 = arith.addf %360, %361 : vector<8x128xf32>
    %cst_110 = arith.constant 0.000000e+00 : f32
    %363 = vector.broadcast %cst_110 : f32 to vector<8x128xf32>
    %364 = arith.subf %363, %362 : vector<8x128xf32>
    %365 = math.exp %364 : vector<8x128xf32>
    %cst_111 = arith.constant 1.000000e+00 : f32
    %366 = vector.broadcast %cst_111 : f32 to vector<8x128xf32>
    %367 = arith.addf %366, %365 : vector<8x128xf32>
    %368 = tpu.reciprocal %367 {approx = true} : vector<8x128xf32> -> vector<8x128xf32>
    %369 = vector.extract_strided_slice %346 {offsets = [0, 256], sizes = [8, 128], strides = [1, 1]} : vector<8x384xf32> to vector<8x128xf32>
    %370 = vector.extract_strided_slice %350 {offsets = [0, 256], sizes = [8, 128], strides = [1, 1]} : vector<8x384xf32> to vector<8x128xf32>
    %371 = arith.mulf %359, %370 : vector<8x128xf32>
    %372 = arith.addf %369, %371 : vector<8x128xf32>
    %373 = math.tanh %372 : vector<8x128xf32>
    %cst_112 = arith.constant 1.000000e+00 : f32
    %374 = vector.broadcast %cst_112 : f32 to vector<8x128xf32>
    %375 = arith.subf %374, %368 : vector<8x128xf32>
    %376 = arith.mulf %375, %373 : vector<8x128xf32>
    %377 = arith.mulf %368, %345 : vector<8x128xf32>
    %378 = arith.addf %376, %377 : vector<8x128xf32>
    %c0_113 = arith.constant 0 : index
    %c2304 = arith.constant 2304 : index
    %379 = vector.load %arg11[%c0_113, %c2304] : memref<8x4608xf32, #tpu.memory_space<vmem>>, vector<8x384xf32>
    %380 = arith.truncf %378 : vector<8x128xf32> to vector<8x128xbf16>
    %c0_114 = arith.constant 0 : index
    %c0_115 = arith.constant 0 : index
    %381 = vector.load %arg5[%c0_114, %c0_115] : memref<128x384xbf16, #tpu.memory_space<vmem>>, vector<128x384xbf16>
    %cst_116 = arith.constant dense<0.000000e+00> : vector<8x384xf32>
    %382 = tpu.matmul %380, %381, %cst_116 {dimension_numbers = #tpu.dot_dimension_numbers<[1], [0], [0], [1], [0, 0, 1, 1], [], []>} : vector<8x128xbf16>, vector<128x384xbf16>, vector<8x384xf32> -> vector<8x384xf32>
    %383 = arith.addf %382, %13 : vector<8x384xf32>
    %384 = vector.extract_strided_slice %379 {offsets = [0, 0], sizes = [8, 128], strides = [1, 1]} : vector<8x384xf32> to vector<8x128xf32>
    %385 = vector.extract_strided_slice %383 {offsets = [0, 0], sizes = [8, 128], strides = [1, 1]} : vector<8x384xf32> to vector<8x128xf32>
    %386 = arith.addf %384, %385 : vector<8x128xf32>
    %cst_117 = arith.constant 0.000000e+00 : f32
    %387 = vector.broadcast %cst_117 : f32 to vector<8x128xf32>
    %388 = arith.subf %387, %386 : vector<8x128xf32>
    %389 = math.exp %388 : vector<8x128xf32>
    %cst_118 = arith.constant 1.000000e+00 : f32
    %390 = vector.broadcast %cst_118 : f32 to vector<8x128xf32>
    %391 = arith.addf %390, %389 : vector<8x128xf32>
    %392 = tpu.reciprocal %391 {approx = true} : vector<8x128xf32> -> vector<8x128xf32>
    %393 = vector.extract_strided_slice %379 {offsets = [0, 128], sizes = [8, 128], strides = [1, 1]} : vector<8x384xf32> to vector<8x128xf32>
    %394 = vector.extract_strided_slice %383 {offsets = [0, 128], sizes = [8, 128], strides = [1, 1]} : vector<8x384xf32> to vector<8x128xf32>
    %395 = arith.addf %393, %394 : vector<8x128xf32>
    %cst_119 = arith.constant 0.000000e+00 : f32
    %396 = vector.broadcast %cst_119 : f32 to vector<8x128xf32>
    %397 = arith.subf %396, %395 : vector<8x128xf32>
    %398 = math.exp %397 : vector<8x128xf32>
    %cst_120 = arith.constant 1.000000e+00 : f32
    %399 = vector.broadcast %cst_120 : f32 to vector<8x128xf32>
    %400 = arith.addf %399, %398 : vector<8x128xf32>
    %401 = tpu.reciprocal %400 {approx = true} : vector<8x128xf32> -> vector<8x128xf32>
    %402 = vector.extract_strided_slice %379 {offsets = [0, 256], sizes = [8, 128], strides = [1, 1]} : vector<8x384xf32> to vector<8x128xf32>
    %403 = vector.extract_strided_slice %383 {offsets = [0, 256], sizes = [8, 128], strides = [1, 1]} : vector<8x384xf32> to vector<8x128xf32>
    %404 = arith.mulf %392, %403 : vector<8x128xf32>
    %405 = arith.addf %402, %404 : vector<8x128xf32>
    %406 = math.tanh %405 : vector<8x128xf32>
    %cst_121 = arith.constant 1.000000e+00 : f32
    %407 = vector.broadcast %cst_121 : f32 to vector<8x128xf32>
    %408 = arith.subf %407, %401 : vector<8x128xf32>
    %409 = arith.mulf %408, %406 : vector<8x128xf32>
    %410 = arith.mulf %401, %378 : vector<8x128xf32>
    %411 = arith.addf %409, %410 : vector<8x128xf32>
    %412 = tpu.concatenate %47, %80, %113, %146, %179, %212 in 0 : vector<8x128xf32>, vector<8x128xf32>, vector<8x128xf32>, vector<8x128xf32>, vector<8x128xf32>, vector<8x128xf32> -> vector<48x128xf32>
    %413 = tpu.concatenate %411, %378, %345, %312, %279, %246 in 0 : vector<8x128xf32>, vector<8x128xf32>, vector<8x128xf32>, vector<8x128xf32>, vector<8x128xf32>, vector<8x128xf32> -> vector<48x128xf32>
    %c0_122 = arith.constant 0 : index
    %c0_123 = arith.constant 0 : index
    %414 = vector.load %arg7[%c0_122, %c0_123] : memref<128x128xf32, #tpu.memory_space<vmem>>, vector<128x128xf32>
    %cst_124 = arith.constant dense<0.000000e+00> : vector<48x128xf32>
    %415 = tpu.matmul %412, %414, %cst_124 {dimension_numbers = #tpu.dot_dimension_numbers<[1], [0], [0], [1], [0, 0, 1, 1], [], []>} : vector<48x128xf32>, vector<128x128xf32>, vector<48x128xf32> -> vector<48x128xf32>
    %c0_125 = arith.constant 0 : index
    %c0_126 = arith.constant 0 : index
    %416 = vector.load %arg8[%c0_125, %c0_126] : memref<128x128xf32, #tpu.memory_space<vmem>>, vector<128x128xf32>
    %cst_127 = arith.constant dense<0.000000e+00> : vector<48x128xf32>
    %417 = tpu.matmul %413, %416, %cst_127 {dimension_numbers = #tpu.dot_dimension_numbers<[1], [0], [0], [1], [0, 0, 1, 1], [], []>} : vector<48x128xf32>, vector<128x128xf32>, vector<48x128xf32> -> vector<48x128xf32>
    %418 = arith.addf %415, %417 : vector<48x128xf32>
    %c0_128 = arith.constant 0 : index
    %c0_129 = arith.constant 0 : index
    %419 = vector.load %arg9[%c0_128, %c0_129] : memref<1x128xf32, #tpu.memory_space<vmem>>, vector<1x128xf32>
    %420 = vector.shape_cast %419 : vector<1x128xf32> to vector<1x128xf32>
    %421 = vector.broadcast %420 : vector<1x128xf32> to vector<48x128xf32>
    %422 = arith.addf %418, %421 : vector<48x128xf32>
    %423 = vector.shape_cast %422 : vector<48x128xf32> to vector<6x8x128xf32>
    %c0_130 = arith.constant 0 : index
    %c0_131 = arith.constant 0 : index
    %c0_132 = arith.constant 0 : index
    %424 = vector.load %arg10[%c0_130, %c0_131, %c0_132] : memref<6x8x128xf32, #tpu.memory_space<vmem>>, vector<6x8x128xf32>
    tpu.vector_store %arg10[%c0_130, %c0_131, %c0_132], %423 {strides = array<i32>} : memref<6x8x128xf32, #tpu.memory_space<vmem>>, vector<6x8x128xf32>,
    return
  }
}

</mosaic_0001>

<llo_original>
// kernel: recurrent_router_forward.1
$region0: #{recurrent_router_forward.1}
  #allocation0 [shape = 'u32[]', space=smem, size = 0x4, offset = 0x4, fixed_abs, tag = 'smem constant byte address 0x4 - core index']
  #allocation1 [shape = 'u32[144,128]{1,0:T(1,128)}', space=vmem, size = 0x12000, scoped, tag = 'internal scratch']
  #allocation2 [shape = 'f32[8,4608]{1,0:T(8,128)}', space=vmem, size = 0x24000, scoped, tag = 'scratch operand']
  %s0 = inlined_call_operand.vmem [shape: f32[8,128], index: 0, kind: input, shape index: {}]
  %s1 = inlined_call_operand.hbm [shape: f32[128,4608], index: 1, kind: input, shape index: {}]
  %s2 = inlined_call_operand.hbm [shape: f32[1,4608], index: 2, kind: input, shape index: {}]
  %s3 = inlined_call_operand.hbm [shape: bf16[128,384], index: 3, kind: input, shape index: {}]
  %s4 = inlined_call_operand.hbm [shape: f32[1,384], index: 4, kind: input, shape index: {}]
  %s5 = inlined_call_operand.hbm [shape: bf16[128,384], index: 5, kind: input, shape index: {}]
  %s6 = inlined_call_operand.hbm [shape: f32[1,384], index: 6, kind: input, shape index: {}]
  %s7 = inlined_call_operand.hbm [shape: f32[128,128], index: 7, kind: input, shape index: {}]
  %s8 = inlined_call_operand.hbm [shape: f32[128,128], index: 8, kind: input, shape index: {}]
  %s9 = inlined_call_operand.hbm [shape: f32[1,128], index: 9, kind: input, shape index: {}]
  %s10 = inlined_call_operand.vmem [shape: f32[6,8,128], index: 10, kind: output, shape index: {}]
  %s11 = sld [smem:[#allocation0]]
  $region86: #{recurrent_router_forward.1} parent=0
    _
  %s13 = ssub.s32 1, %s11
  %s14 = scalar_select 0, %s13, %s11
  $region1: #{recurrent_router_forward.1} parent=0
    #allocation3 [shape = 'u8[2359296]{0}', space=vmem, size = 0x240000, scoped, tag = 'input window, operand 1, single buffered']
    #allocation4 [shape = 's32[1]{0}', space=sflag, size = 0x4, scoped, tag = 'scoped memory for recurrent_router_forward.1']
    #allocation5 [shape = 'u8[18432]{0}', space=vmem, size = 0x4800, scoped, tag = 'input window, operand 2, single buffered']
    #allocation6 [shape = 's32[1]{0}', space=sflag, size = 0x4, scoped, tag = 'scoped memory for recurrent_router_forward.1']
    #allocation7 [shape = 'u8[98304]{0}', space=vmem, size = 0x18000, scoped, tag = 'input window, operand 3, single buffered']
    #allocation8 [shape = 'u8[1536]{0}', space=vmem, size = 0x800, scoped, tag = 'input window, operand 4, single buffered']
    #allocation9 [shape = 's32[1]{0}', space=sflag, size = 0x4, scoped, tag = 'scoped memory for recurrent_router_forward.1']
    #allocation10 [shape = 'u8[98304]{0}', space=vmem, size = 0x18000, scoped, tag = 'input window, operand 5, single buffered']
    #allocation11 [shape = 'u8[1536]{0}', space=vmem, size = 0x800, scoped, tag = 'input window, operand 6, single buffered']
    #allocation12 [shape = 's32[1]{0}', space=sflag, size = 0x4, scoped, tag = 'scoped memory for recurrent_router_forward.1']
    #allocation13 [shape = 'u8[65536]{0}', space=vmem, size = 0x10000, scoped, tag = 'input window, operand 7, single buffered']
    #allocation14 [shape = 'u8[65536]{0}', space=vmem, size = 0x10000, scoped, tag = 'input window, operand 8, single buffered']
    #allocation15 [shape = 's32[1]{0}', space=sflag, size = 0x4, scoped, tag = 'scoped memory for recurrent_router_forward.1']
    #allocation16 [shape = 'u8[512]{0}', space=vmem, size = 0x400, scoped, tag = 'input window, operand 9, single buffered']
    %15 = vsyncpa [#allocation4], 0
    %16 = vsyncpa [#allocation6], 0
    %17 = vsyncpa [#allocation9], 0
    %18 = vsyncpa [#allocation12], 0
    %19 = vsyncpa [#allocation15], 0
    // Predicated region
    $region2: #{recurrent_router_forward.1} parent=1 // pred_check
      _
    $region3: #{recurrent_router_forward.1} parent=1 // pred_check_branch
      %21 = sbr.rel (0) target = $region5
    $region4: #{recurrent_router_forward.1} parent=1 // pred_region
      _
    $region5: #{recurrent_router_forward.1} parent=1 // pred_fallthru
      _
    // Predicated region
    $region6: #{recurrent_router_forward.1} parent=1 // pred_check
      _
    $region7: #{recurrent_router_forward.1} parent=1 // pred_check_branch
      %23 = sbr.rel (0) target = $region9
    $region8: #{recurrent_router_forward.1} parent=1 // pred_region
      %s25 = ssub.s32 73728, 73728
      %26 = vsyncadd [#allocation4], %s25
      %s27 = sshll.u32 [#allocation3], 4
      %s28 = int_to_ptr.vmem [resolvable:$true] %s27
      %33 = dma.hbm_to_vmem [thread:$0]  %s1, 73728, %s28, [#allocation4], 4608, 4608, 288
    $region9: #{recurrent_router_forward.1} parent=1 // pred_fallthru
      _
    // Predicated region
    $region10: #{recurrent_router_forward.1} parent=1 // pred_check
      _
    $region11: #{recurrent_router_forward.1} parent=1 // pred_check_branch
      %35 = sbr.rel (0) target = $region13
    $region12: #{recurrent_router_forward.1} parent=1 // pred_region
      %s37 = ssub.s32 576, 576
      %38 = vsyncadd [#allocation6], %s37
      %s40 = sshll.u32 [#allocation5], 4
      %s41 = int_to_ptr.vmem [resolvable:$true] %s40
      %43 = dma.hbm_to_vmem [thread:$0]  %s2, 576, %s41, [#allocation6]
    $region13: #{recurrent_router_forward.1} parent=1 // pred_fallthru
      _
    // Predicated region
    $region14: #{recurrent_router_forward.1} parent=1 // pred_check
      _
    $region15: #{recurrent_router_forward.1} parent=1 // pred_check_branch
      %45 = sbr.rel (0) target = $region17
    $region16: #{recurrent_router_forward.1} parent=1 // pred_region
      %s47 = ssub.s32 3072, 3072
      %48 = vsyncadd [#allocation6], %s47
      %s49 = sshll.u32 [#allocation7], 4
      %s50 = int_to_ptr.vmem [resolvable:$true] %s49
      %55 = dma.hbm_to_vmem [thread:$0]  %s3, 3072, %s50, [#allocation6], 192, 192, 12
    $region17: #{recurrent_router_forward.1} parent=1 // pred_fallthru
      _
    // Predicated region
    $region18: #{recurrent_router_forward.1} parent=1 // pred_check
      _
    $region19: #{recurrent_router_forward.1} parent=1 // pred_check_branch
      %57 = sbr.rel (0) target = $region21
    $region20: #{recurrent_router_forward.1} parent=1 // pred_region
      %s59 = ssub.s32 48, 48
      %60 = vsyncadd [#allocation9], %s59
      %s62 = sshll.u32 [#allocation8], 4
      %s63 = int_to_ptr.vmem [resolvable:$true] %s62
      %65 = dma.hbm_to_vmem [thread:$0]  %s4, 48, %s63, [#allocation9]
    $region21: #{recurrent_router_forward.1} parent=1 // pred_fallthru
      _
    // Predicated region
    $region22: #{recurrent_router_forward.1} parent=1 // pred_check
      _
    $region23: #{recurrent_router_forward.1} parent=1 // pred_check_branch
      %67 = sbr.rel (0) target = $region25
    $region24: #{recurrent_router_forward.1} parent=1 // pred_region
      %s69 = ssub.s32 3072, 3072
      %70 = vsyncadd [#allocation9], %s69
      %s71 = sshll.u32 [#allocation10], 4
      %s72 = int_to_ptr.vmem [resolvable:$true] %s71
      %77 = dma.hbm_to_vmem [thread:$0]  %s5, 3072, %s72, [#allocation9], 192, 192, 12
    $region25: #{recurrent_router_forward.1} parent=1 // pred_fallthru
      _
    // Predicated region
    $region26: #{recurrent_router_forward.1} parent=1 // pred_check
      _
    $region27: #{recurrent_router_forward.1} parent=1 // pred_check_branch
      %79 = sbr.rel (0) target = $region29
    $region28: #{recurrent_router_forward.1} parent=1 // pred_region
      %s81 = ssub.s32 48, 48
      %82 = vsyncadd [#allocation12], %s81
      %s84 = sshll.u32 [#allocation11], 4
      %s85 = int_to_ptr.vmem [resolvable:$true] %s84
      %87 = dma.hbm_to_vmem [thread:$0]  %s6, 48, %s85, [#allocation12]
    $region29: #{recurrent_router_forward.1} parent=1 // pred_fallthru
      _
    // Predicated region
    $region30: #{recurrent_router_forward.1} parent=1 // pred_check
      _
    $region31: #{recurrent_router_forward.1} parent=1 // pred_check_branch
      %89 = sbr.rel (0) target = $region33
    $region32: #{recurrent_router_forward.1} parent=1 // pred_region
      %s91 = ssub.s32 2048, 2048
      %92 = vsyncadd [#allocation12], %s91
      %s93 = sshll.u32 [#allocation13], 4
      %s94 = int_to_ptr.vmem [resolvable:$true] %s93
      %99 = dma.hbm_to_vmem [thread:$0]  %s7, 2048, %s94, [#allocation12], 128, 128, 8
    $region33: #{recurrent_router_forward.1} parent=1 // pred_fallthru
      _
    // Predicated region
    $region34: #{recurrent_router_forward.1} parent=1 // pred_check
      _
    $region35: #{recurrent_router_forward.1} parent=1 // pred_check_branch
      %101 = sbr.rel (0) target = $region37
    $region36: #{recurrent_router_forward.1} parent=1 // pred_region
      %s103 = ssub.s32 2048, 2048
      %104 = vsyncadd [#allocation15], %s103
      %s105 = sshll.u32 [#allocation14], 4
      %s106 = int_to_ptr.vmem [resolvable:$true] %s105
      %111 = dma.hbm_to_vmem [thread:$0]  %s8, 2048, %s106, [#allocation15], 128, 128, 8
    $region37: #{recurrent_router_forward.1} parent=1 // pred_fallthru
      _
    // Predicated region
    $region38: #{recurrent_router_forward.1} parent=1 // pred_check
      _
    $region39: #{recurrent_router_forward.1} parent=1 // pred_check_branch
      %113 = sbr.rel (0) target = $region41
    $region40: #{recurrent_router_forward.1} parent=1 // pred_region
      %s115 = ssub.s32 16, 16
      %116 = vsyncadd [#allocation15], %s115
      %s118 = sshll.u32 [#allocation16], 4
      %s119 = int_to_ptr.vmem [resolvable:$true] %s118
      %121 = dma.hbm_to_vmem [thread:$0]  %s9, 16, %s119, [#allocation15]
    $region41: #{recurrent_router_forward.1} parent=1 // pred_fallthru
      _
    // Predicated region
    $region42: #{recurrent_router_forward.1} parent=1 // pred_check
      _
    $region43: #{recurrent_router_forward.1} parent=1 // pred_check_branch
      %123 = sbr.rel (0) target = $region45
    $region44: #{recurrent_router_forward.1} parent=1 // pred_region
      %124 = dma.done [#allocation4], 73728
    $region45: #{recurrent_router_forward.1} parent=1 // pred_fallthru
      _
    // Predicated region
    $region46: #{recurrent_router_forward.1} parent=1 // pred_check
      _
    $region47: #{recurrent_router_forward.1} parent=1 // pred_check_branch
      %126 = sbr.rel (0) target = $region49
    $region48: #{recurrent_router_forward.1} parent=1 // pred_region
      %127 = dma.done [#allocation6], 576
    $region49: #{recurrent_router_forward.1} parent=1 // pred_fallthru
      _
    // Predicated region
    $region50: #{recurrent_router_forward.1} parent=1 // pred_check
      _
    $region51: #{recurrent_router_forward.1} parent=1 // pred_check_branch
      %129 = sbr.rel (0) target = $region53
    $region52: #{recurrent_router_forward.1} parent=1 // pred_region
      %130 = dma.done [#allocation6], 3072
    $region53: #{recurrent_router_forward.1} parent=1 // pred_fallthru
      _
    // Predicated region
    $region54: #{recurrent_router_forward.1} parent=1 // pred_check
      _
    $region55: #{recurrent_router_forward.1} parent=1 // pred_check_branch
      %132 = sbr.rel (0) target = $region57
    $region56: #{recurrent_router_forward.1} parent=1 // pred_region
      %133 = dma.done [#allocation9], 48
    $region57: #{recurrent_router_forward.1} parent=1 // pred_fallthru
      _
    // Predicated region
    $region58: #{recurrent_router_forward.1} parent=1 // pred_check
      _
    $region59: #{recurrent_router_forward.1} parent=1 // pred_check_branch
      %135 = sbr.rel (0) target = $region61
    $region60: #{recurrent_router_forward.1} parent=1 // pred_region
      %136 = dma.done [#allocation9], 3072
    $region61: #{recurrent_router_forward.1} parent=1 // pred_fallthru
      _
    // Predicated region
    $region62: #{recurrent_router_forward.1} parent=1 // pred_check
      _
    $region63: #{recurrent_router_forward.1} parent=1 // pred_check_branch
      %138 = sbr.rel (0) target = $region65
    $region64: #{recurrent_router_forward.1} parent=1 // pred_region
      %139 = dma.done [#allocation12], 48
    $region65: #{recurrent_router_forward.1} parent=1 // pred_fallthru
      _
    // Predicated region
    $region66: #{recurrent_router_forward.1} parent=1 // pred_check
      _
    $region67: #{recurrent_router_forward.1} parent=1 // pred_check_branch
      %141 = sbr.rel (0) target = $region69
    $region68: #{recurrent_router_forward.1} parent=1 // pred_region
      %142 = dma.done [#allocation12], 2048
    $region69: #{recurrent_router_forward.1} parent=1 // pred_fallthru
      _
    // Predicated region
    $region70: #{recurrent_router_forward.1} parent=1 // pred_check
      _
    $region71: #{recurrent_router_forward.1} parent=1 // pred_check_branch
      %144 = sbr.rel (0) target = $region73
    $region72: #{recurrent_router_forward.1} parent=1 // pred_region
      %145 = dma.done [#allocation15], 2048
    $region73: #{recurrent_router_forward.1} parent=1 // pred_fallthru
      _
    // Predicated region
    $region74: #{recurrent_router_forward.1} parent=1 // pred_check
      _
    $region75: #{recurrent_router_forward.1} parent=1 // pred_check_branch
      %147 = sbr.rel (0) target = $region77
    $region76: #{recurrent_router_forward.1} parent=1 // pred_region
      %148 = dma.done [#allocation15], 16
    $region77: #{recurrent_router_forward.1} parent=1 // pred_fallthru
      _
    %v150 = vld [vmem:[%s0] sm:$0xff]
    %v151 = vld [vmem:[#allocation3] sm:$0xff]
    %v152 = vld [vmem:[#allocation3 + $0x8] sm:$0xff]
    %v153 = vld [vmem:[#allocation3 + $0x10] sm:$0xff]
    %v154 = vld [vmem:[#allocation3 + $0x18] sm:$0xff]
    %v155 = vld [vmem:[#allocation3 + $0x20] sm:$0xff]
    %v156 = vld [vmem:[#allocation3 + $0x28] sm:$0xff]
    %v157 = vld [vmem:[#allocation3 + $0x30] sm:$0xff]
    %v158 = vld [vmem:[#allocation3 + $0x38] sm:$0xff]
    %v159 = vld [vmem:[#allocation3 + $0x40] sm:$0xff]
    %v160 = vld [vmem:[#allocation3 + $0x48] sm:$0xff]
    %v161 = vld [vmem:[#allocation3 + $0x50] sm:$0xff]
    %v162 = vld [vmem:[#allocation3 + $0x58] sm:$0xff]
    %v163 = vld [vmem:[#allocation3 + $0x60] sm:$0xff]
    %v164 = vld [vmem:[#allocation3 + $0x68] sm:$0xff]
    %v165 = vld [vmem:[#allocation3 + $0x70] sm:$0xff]
    %v166 = vld [vmem:[#allocation3 + $0x78] sm:$0xff]
    %v167 = vld [vmem:[#allocation3 + $0x80] sm:$0xff]
    %v168 = vld [vmem:[#allocation3 + $0x88] sm:$0xff]
    %v169 = vld [vmem:[#allocation3 + $0x90] sm:$0xff]
    %v170 = vld [vmem:[#allocation3 + $0x98] sm:$0xff]
    %v171 = vld [vmem:[#allocation3 + $0xa0] sm:$0xff]
    %v172 = vld [vmem:[#allocation3 + $0xa8] sm:$0xff]
    %v173 = vld [vmem:[#allocation3 + $0xb0] sm:$0xff]
    %v174 = vld [vmem:[#allocation3 + $0xb8] sm:$0xff]
    %v175 = vld [vmem:[#allocation3 + $0xc0] sm:$0xff]
    %v176 = vld [vmem:[#allocation3 + $0xc8] sm:$0xff]
    %v177 = vld [vmem:[#allocation3 + $0xd0] sm:$0xff]
    %v178 = vld [vmem:[#allocation3 + $0xd8] sm:$0xff]
    %v179 = vld [vmem:[#allocation3 + $0xe0] sm:$0xff]
    %v180 = vld [vmem:[#allocation3 + $0xe8] sm:$0xff]
    %v181 = vld [vmem:[#allocation3 + $0xf0] sm:$0xff]
    %v182 = vld [vmem:[#allocation3 + $0xf8] sm:$0xff]
    %v183 = vld [vmem:[#allocation3 + $0x100] sm:$0xff]
    %v184 = vld [vmem:[#allocation3 + $0x108] sm:$0xff]
    %v185 = vld [vmem:[#allocation3 + $0x110] sm:$0xff]
    %v186 = vld [vmem:[#allocation3 + $0x118] sm:$0xff]
    %v187 = vld [vmem:[#allocation3 + $0x120] sm:$0xff]
    %v188 = vld [vmem:[#allocation3 + $0x128] sm:$0xff]
    %v189 = vld [vmem:[#allocation3 + $0x130] sm:$0xff]
    %v190 = vld [vmem:[#allocation3 + $0x138] sm:$0xff]
    %v191 = vld [vmem:[#allocation3 + $0x140] sm:$0xff]
    %v192 = vld [vmem:[#allocation3 + $0x148] sm:$0xff]
    %v193 = vld [vmem:[#allocation3 + $0x150] sm:$0xff]
    %v194 = vld [vmem:[#allocation3 + $0x158] sm:$0xff]
    %v195 = vld [vmem:[#allocation3 + $0x160] sm:$0xff]
    %v196 = vld [vmem:[#allocation3 + $0x168] sm:$0xff]
    %v197 = vld [vmem:[#allocation3 + $0x170] sm:$0xff]
    %v198 = vld [vmem:[#allocation3 + $0x178] sm:$0xff]
    %v199 = vld [vmem:[#allocation3 + $0x180] sm:$0xff]
    %v200 = vld [vmem:[#allocation3 + $0x188] sm:$0xff]
    %v201 = vld [vmem:[#allocation3 + $0x190] sm:$0xff]
    %v202 = vld [vmem:[#allocation3 + $0x198] sm:$0xff]
    %v203 = vld [vmem:[#allocation3 + $0x1a0] sm:$0xff]
    %v204 = vld [vmem:[#allocation3 + $0x1a8] sm:$0xff]
    %v205 = vld [vmem:[#allocation3 + $0x1b0] sm:$0xff]
    %v206 = vld [vmem:[#allocation3 + $0x1b8] sm:$0xff]
    %v207 = vld [vmem:[#allocation3 + $0x1c0] sm:$0xff]
    %v208 = vld [vmem:[#allocation3 + $0x1c8] sm:$0xff]
    %v209 = vld [vmem:[#allocation3 + $0x1d0] sm:$0xff]
    %v210 = vld [vmem:[#allocation3 + $0x1d8] sm:$0xff]
    %v211 = vld [vmem:[#allocation3 + $0x1e0] sm:$0xff]
    %v212 = vld [vmem:[#allocation3 + $0x1e8] sm:$0xff]
    %v213 = vld [vmem:[#allocation3 + $0x1f0] sm:$0xff]
    %v214 = vld [vmem:[#allocation3 + $0x1f8] sm:$0xff]
    %v215 = vld [vmem:[#allocation3 + $0x200] sm:$0xff]
    %v216 = vld [vmem:[#allocation3 + $0x208] sm:$0xff]
    %v217 = vld [vmem:[#allocation3 + $0x210] sm:$0xff]
    %v218 = vld [vmem:[#allocation3 + $0x218] sm:$0xff]
    %v219 = vld [vmem:[#allocation3 + $0x220] sm:$0xff]
    %v220 = vld [vmem:[#allocation3 + $0x228] sm:$0xff]
    %v221 = vld [vmem:[#allocation3 + $0x230] sm:$0xff]
    %v222 = vld [vmem:[#allocation3 + $0x238] sm:$0xff]
    %v223 = vld [vmem:[#allocation3 + $0x240] sm:$0xff]
    %v224 = vld [vmem:[#allocation3 + $0x248] sm:$0xff]
    %v225 = vld [vmem:[#allocation3 + $0x250] sm:$0xff]
    %v226 = vld [vmem:[#allocation3 + $0x258] sm:$0xff]
    %v227 = vld [vmem:[#allocation3 + $0x260] sm:$0xff]
    %v228 = vld [vmem:[#allocation3 + $0x268] sm:$0xff]
    %v229 = vld [vmem:[#allocation3 + $0x270] sm:$0xff]
    %v230 = vld [vmem:[#allocation3 + $0x278] sm:$0xff]
    %v231 = vld [vmem:[#allocation3 + $0x280] sm:$0xff]
    %v232 = vld [vmem:[#allocation3 + $0x288] sm:$0xff]
    %v233 = vld [vmem:[#allocation3 + $0x290] sm:$0xff]
    %v234 = vld [vmem:[#allocation3 + $0x298] sm:$0xff]
    %v235 = vld [vmem:[#allocation3 + $0x2a0] sm:$0xff]
    %v236 = vld [vmem:[#allocation3 + $0x2a8] sm:$0xff]
    %v237 = vld [vmem:[#allocation3 + $0x2b0] sm:$0xff]
    %v238 = vld [vmem:[#allocation3 + $0x2b8] sm:$0xff]
    %v239 = vld [vmem:[#allocation3 + $0x2c0] sm:$0xff]
    %v240 = vld [vmem:[#allocation3 + $0x2c8] sm:$0xff]
    %v241 = vld [vmem:[#allocation3 + $0x2d0] sm:$0xff]
    %v242 = vld [vmem:[#allocation3 + $0x2d8] sm:$0xff]
    %v243 = vld [vmem:[#allocation3 + $0x2e0] sm:$0xff]
    %v244 = vld [vmem:[#allocation3 + $0x2e8] sm:$0xff]
    %v245 = vld [vmem:[#allocation3 + $0x2f0] sm:$0xff]
    %v246 = vld [vmem:[#allocation3 + $0x2f8] sm:$0xff]
    %v247 = vld [vmem:[#allocation3 + $0x300] sm:$0xff]
    %v248 = vld [vmem:[#allocation3 + $0x308] sm:$0xff]
    %v249 = vld [vmem:[#allocation3 + $0x310] sm:$0xff]
    %v250 = vld [vmem:[#allocation3 + $0x318] sm:$0xff]
    %v251 = vld [vmem:[#allocation3 + $0x320] sm:$0xff]
    %v252 = vld [vmem:[#allocation3 + $0x328] sm:$0xff]
    %v253 = vld [vmem:[#allocation3 + $0x330] sm:$0xff]
    %v254 = vld [vmem:[#allocation3 + $0x338] sm:$0xff]
    %v255 = vld [vmem:[#allocation3 + $0x340] sm:$0xff]
    %v256 = vld [vmem:[#allocation3 + $0x348] sm:$0xff]
    %v257 = vld [vmem:[#allocation3 + $0x350] sm:$0xff]
    %v258 = vld [vmem:[#allocation3 + $0x358] sm:$0xff]
    %v259 = vld [vmem:[#allocation3 + $0x360] sm:$0xff]
    %v260 = vld [vmem:[#allocation3 + $0x368] sm:$0xff]
    %v261 = vld [vmem:[#allocation3 + $0x370] sm:$0xff]
    %v262 = vld [vmem:[#allocation3 + $0x378] sm:$0xff]
    %v263 = vld [vmem:[#allocation3 + $0x380] sm:$0xff]
    %v264 = vld [vmem:[#allocation3 + $0x388] sm:$0xff]
    %v265 = vld [vmem:[#allocation3 + $0x390] sm:$0xff]
    %v266 = vld [vmem:[#allocation3 + $0x398] sm:$0xff]
    %v267 = vld [vmem:[#allocation3 + $0x3a0] sm:$0xff]
    %v268 = vld [vmem:[#allocation3 + $0x3a8] sm:$0xff]
    %v269 = vld [vmem:[#allocation3 + $0x3b0] sm:$0xff]
    %v270 = vld [vmem:[#allocation3 + $0x3b8] sm:$0xff]
    %v271 = vld [vmem:[#allocation3 + $0x3c0] sm:$0xff]
    %v272 = vld [vmem:[#allocation3 + $0x3c8] sm:$0xff]
    %v273 = vld [vmem:[#allocation3 + $0x3d0] sm:$0xff]
    %v274 = vld [vmem:[#allocation3 + $0x3d8] sm:$0xff]
    %v275 = vld [vmem:[#allocation3 + $0x3e0] sm:$0xff]
    %v276 = vld [vmem:[#allocation3 + $0x3e8] sm:$0xff]
    %v277 = vld [vmem:[#allocation3 + $0x3f0] sm:$0xff]
    %v278 = vld [vmem:[#allocation3 + $0x3f8] sm:$0xff]
    %v279 = vld [vmem:[#allocation3 + $0x400] sm:$0xff]
    %v280 = vld [vmem:[#allocation3 + $0x408] sm:$0xff]
    %v281 = vld [vmem:[#allocation3 + $0x410] sm:$0xff]
    %v282 = vld [vmem:[#allocation3 + $0x418] sm:$0xff]
    %v283 = vld [vmem:[#allocation3 + $0x420] sm:$0xff]
    %v284 = vld [vmem:[#allocation3 + $0x428] sm:$0xff]
    %v285 = vld [vmem:[#allocation3 + $0x430] sm:$0xff]
    %v286 = vld [vmem:[#allocation3 + $0x438] sm:$0xff]
    %v287 = vld [vmem:[#allocation3 + $0x440] sm:$0xff]
    %v288 = vld [vmem:[#allocation3 + $0x448] sm:$0xff]
    %v289 = vld [vmem:[#allocation3 + $0x450] sm:$0xff]
    %v290 = vld [vmem:[#allocation3 + $0x458] sm:$0xff]
    %v291 = vld [vmem:[#allocation3 + $0x460] sm:$0xff]
    %v292 = vld [vmem:[#allocation3 + $0x468] sm:$0xff]
    %v293 = vld [vmem:[#allocation3 + $0x470] sm:$0xff]
    %v294 = vld [vmem:[#allocation3 + $0x478] sm:$0xff]
    %v295 = vld [vmem:[#allocation3 + $0x480] sm:$0xff]
    %v296 = vld [vmem:[#allocation3 + $0x488] sm:$0xff]
    %v297 = vld [vmem:[#allocation3 + $0x490] sm:$0xff]
    %v298 = vld [vmem:[#allocation3 + $0x498] sm:$0xff]
    %v299 = vld [vmem:[#allocation3 + $0x4a0] sm:$0xff]
    %v300 = vld [vmem:[#allocation3 + $0x4a8] sm:$0xff]
    %v301 = vld [vmem:[#allocation3 + $0x4b0] sm:$0xff]
    %v302 = vld [vmem:[#allocation3 + $0x4b8] sm:$0xff]
    %v303 = vld [vmem:[#allocation3 + $0x4c0] sm:$0xff]
    %v304 = vld [vmem:[#allocation3 + $0x4c8] sm:$0xff]
    %v305 = vld [vmem:[#allocation3 + $0x4d0] sm:$0xff]
    %v306 = vld [vmem:[#allocation3 + $0x4d8] sm:$0xff]
    %v307 = vld [vmem:[#allocation3 + $0x4e0] sm:$0xff]
    %v308 = vld [vmem:[#allocation3 + $0x4e8] sm:$0xff]
    %v309 = vld [vmem:[#allocation3 + $0x4f0] sm:$0xff]
    %v310 = vld [vmem:[#allocation3 + $0x4f8] sm:$0xff]
    %v311 = vld [vmem:[#allocation3 + $0x500] sm:$0xff]
    %v312 = vld [vmem:[#allocation3 + $0x508] sm:$0xff]
    %v313 = vld [vmem:[#allocation3 + $0x510] sm:$0xff]
    %v314 = vld [vmem:[#allocation3 + $0x518] sm:$0xff]
    %v315 = vld [vmem:[#allocation3 + $0x520] sm:$0xff]
    %v316 = vld [vmem:[#allocation3 + $0x528] sm:$0xff]
    %v317 = vld [vmem:[#allocation3 + $0x530] sm:$0xff]
    %v318 = vld [vmem:[#allocation3 + $0x538] sm:$0xff]
    %v319 = vld [vmem:[#allocation3 + $0x540] sm:$0xff]
    %v320 = vld [vmem:[#allocation3 + $0x548] sm:$0xff]
    %v321 = vld [vmem:[#allocation3 + $0x550] sm:$0xff]
    %v322 = vld [vmem:[#allocation3 + $0x558] sm:$0xff]
    %v323 = vld [vmem:[#allocation3 + $0x560] sm:$0xff]
    %v324 = vld [vmem:[#allocation3 + $0x568] sm:$0xff]
    %v325 = vld [vmem:[#allocation3 + $0x570] sm:$0xff]
    %v326 = vld [vmem:[#allocation3 + $0x578] sm:$0xff]
    %v327 = vld [vmem:[#allocation3 + $0x580] sm:$0xff]
    %v328 = vld [vmem:[#allocation3 + $0x588] sm:$0xff]
    %v329 = vld [vmem:[#allocation3 + $0x590] sm:$0xff]
    %v330 = vld [vmem:[#allocation3 + $0x598] sm:$0xff]
    %v331 = vld [vmem:[#allocation3 + $0x5a0] sm:$0xff]
    %v332 = vld [vmem:[#allocation3 + $0x5a8] sm:$0xff]
    %v333 = vld [vmem:[#allocation3 + $0x5b0] sm:$0xff]
    %v334 = vld [vmem:[#allocation3 + $0x5b8] sm:$0xff]
    %v335 = vld [vmem:[#allocation3 + $0x5c0] sm:$0xff]
    %v336 = vld [vmem:[#allocation3 + $0x5c8] sm:$0xff]
    %v337 = vld [vmem:[#allocation3 + $0x5d0] sm:$0xff]
    %v338 = vld [vmem:[#allocation3 + $0x5d8] sm:$0xff]
    %v339 = vld [vmem:[#allocation3 + $0x5e0] sm:$0xff]
    %v340 = vld [vmem:[#allocation3 + $0x5e8] sm:$0xff]
    %v341 = vld [vmem:[#allocation3 + $0x5f0] sm:$0xff]
    %v342 = vld [vmem:[#allocation3 + $0x5f8] sm:$0xff]
    %v343 = vld [vmem:[#allocation3 + $0x600] sm:$0xff]
    %v344 = vld [vmem:[#allocation3 + $0x608] sm:$0xff]
    %v345 = vld [vmem:[#allocation3 + $0x610] sm:$0xff]
    %v346 = vld [vmem:[#allocation3 + $0x618] sm:$0xff]
    %v347 = vld [vmem:[#allocation3 + $0x620] sm:$0xff]
    %v348 = vld [vmem:[#allocation3 + $0x628] sm:$0xff]
    %v349 = vld [vmem:[#allocation3 + $0x630] sm:$0xff]
    %v350 = vld [vmem:[#allocation3 + $0x638] sm:$0xff]
    %v351 = vld [vmem:[#allocation3 + $0x640] sm:$0xff]
    %v352 = vld [vmem:[#allocation3 + $0x648] sm:$0xff]
    %v353 = vld [vmem:[#allocation3 + $0x650] sm:$0xff]
    %v354 = vld [vmem:[#allocation3 + $0x658] sm:$0xff]
    %v355 = vld [vmem:[#allocation3 + $0x660] sm:$0xff]
    %v356 = vld [vmem:[#allocation3 + $0x668] sm:$0xff]
    %v357 = vld [vmem:[#allocation3 + $0x670] sm:$0xff]
    %v358 = vld [vmem:[#allocation3 + $0x678] sm:$0xff]
    %v359 = vld [vmem:[#allocation3 + $0x680] sm:$0xff]
    %v360 = vld [vmem:[#allocation3 + $0x688] sm:$0xff]
    %v361 = vld [vmem:[#allocation3 + $0x690] sm:$0xff]
    %v362 = vld [vmem:[#allocation3 + $0x698] sm:$0xff]
    %v363 = vld [vmem:[#allocation3 + $0x6a0] sm:$0xff]
    %v364 = vld [vmem:[#allocation3 + $0x6a8] sm:$0xff]
    %v365 = vld [vmem:[#allocation3 + $0x6b0] sm:$0xff]
    %v366 = vld [vmem:[#allocation3 + $0x6b8] sm:$0xff]
    %v367 = vld [vmem:[#allocation3 + $0x6c0] sm:$0xff]
    %v368 = vld [vmem:[#allocation3 + $0x6c8] sm:$0xff]
    %v369 = vld [vmem:[#allocation3 + $0x6d0] sm:$0xff]
    %v370 = vld [vmem:[#allocation3 + $0x6d8] sm:$0xff]
    %v371 = vld [vmem:[#allocation3 + $0x6e0] sm:$0xff]
    %v372 = vld [vmem:[#allocation3 + $0x6e8] sm:$0xff]
    %v373 = vld [vmem:[#allocation3 + $0x6f0] sm:$0xff]
    %v374 = vld [vmem:[#allocation3 + $0x6f8] sm:$0xff]
    %v375 = vld [vmem:[#allocation3 + $0x700] sm:$0xff]
    %v376 = vld [vmem:[#allocation3 + $0x708] sm:$0xff]
    %v377 = vld [vmem:[#allocation3 + $0x710] sm:$0xff]
    %v378 = vld [vmem:[#allocation3 + $0x718] sm:$0xff]
    %v379 = vld [vmem:[#allocation3 + $0x720] sm:$0xff]
    %v380 = vld [vmem:[#allocation3 + $0x728] sm:$0xff]
    %v381 = vld [vmem:[#allocation3 + $0x730] sm:$0xff]
    %v382 = vld [vmem:[#allocation3 + $0x738] sm:$0xff]
    %v383 = vld [vmem:[#allocation3 + $0x740] sm:$0xff]
    %v384 = vld [vmem:[#allocation3 + $0x748] sm:$0xff]
    %v385 = vld [vmem:[#allocation3 + $0x750] sm:$0xff]
    %v386 = vld [vmem:[#allocation3 + $0x758] sm:$0xff]
    %v387 = vld [vmem:[#allocation3 + $0x760] sm:$0xff]
    %v388 = vld [vmem:[#allocation3 + $0x768] sm:$0xff]
    %v389 = vld [vmem:[#allocation3 + $0x770] sm:$0xff]
    %v390 = vld [vmem:[#allocation3 + $0x778] sm:$0xff]
    %v391 = vld [vmem:[#allocation3 + $0x780] sm:$0xff]
    %v392 = vld [vmem:[#allocation3 + $0x788] sm:$0xff]
    %v393 = vld [vmem:[#allocation3 + $0x790] sm:$0xff]
    %v394 = vld [vmem:[#allocation3 + $0x798] sm:$0xff]
    %v395 = vld [vmem:[#allocation3 + $0x7a0] sm:$0xff]
    %v396 = vld [vmem:[#allocation3 + $0x7a8] sm:$0xff]
    %v397 = vld [vmem:[#allocation3 + $0x7b0] sm:$0xff]
    %v398 = vld [vmem:[#allocation3 + $0x7b8] sm:$0xff]
    %v399 = vld [vmem:[#allocation3 + $0x7c0] sm:$0xff]
    %v400 = vld [vmem:[#allocation3 + $0x7c8] sm:$0xff]
    %v401 = vld [vmem:[#allocation3 + $0x7d0] sm:$0xff]
    %v402 = vld [vmem:[#allocation3 + $0x7d8] sm:$0xff]
    %v403 = vld [vmem:[#allocation3 + $0x7e0] sm:$0xff]
    %v404 = vld [vmem:[#allocation3 + $0x7e8] sm:$0xff]
    %v405 = vld [vmem:[#allocation3 + $0x7f0] sm:$0xff]
    %v406 = vld [vmem:[#allocation3 + $0x7f8] sm:$0xff]
    %v407 = vld [vmem:[#allocation3 + $0x800] sm:$0xff]
    %v408 = vld [vmem:[#allocation3 + $0x808] sm:$0xff]
    %v409 = vld [vmem:[#allocation3 + $0x810] sm:$0xff]
    %v410 = vld [vmem:[#allocation3 + $0x818] sm:$0xff]
    %v411 = vld [vmem:[#allocation3 + $0x820] sm:$0xff]
    %v412 = vld [vmem:[#allocation3 + $0x828] sm:$0xff]
    %v413 = vld [vmem:[#allocation3 + $0x830] sm:$0xff]
    %v414 = vld [vmem:[#allocation3 + $0x838] sm:$0xff]
    %v415 = vld [vmem:[#allocation3 + $0x840] sm:$0xff]
    %v416 = vld [vmem:[#allocation3 + $0x848] sm:$0xff]
    %v417 = vld [vmem:[#allocation3 + $0x850] sm:$0xff]
    %v418 = vld [vmem:[#allocation3 + $0x858] sm:$0xff]
    %v419 = vld [vmem:[#allocation3 + $0x860] sm:$0xff]
    %v420 = vld [vmem:[#allocation3 + $0x868] sm:$0xff]
    %v421 = vld [vmem:[#allocation3 + $0x870] sm:$0xff]
    %v422 = vld [vmem:[#allocation3 + $0x878] sm:$0xff]
    %v423 = vld [vmem:[#allocation3 + $0x880] sm:$0xff]
    %v424 = vld [vmem:[#allocation3 + $0x888] sm:$0xff]
    %v425 = vld [vmem:[#allocation3 + $0x890] sm:$0xff]
    %v426 = vld [vmem:[#allocation3 + $0x898] sm:$0xff]
    %v427 = vld [vmem:[#allocation3 + $0x8a0] sm:$0xff]
    %v428 = vld [vmem:[#allocation3 + $0x8a8] sm:$0xff]
    %v429 = vld [vmem:[#allocation3 + $0x8b0] sm:$0xff]
    %v430 = vld [vmem:[#allocation3 + $0x8b8] sm:$0xff]
    %v431 = vld [vmem:[#allocation3 + $0x8c0] sm:$0xff]
    %v432 = vld [vmem:[#allocation3 + $0x8c8] sm:$0xff]
    %v433 = vld [vmem:[#allocation3 + $0x8d0] sm:$0xff]
    %v434 = vld [vmem:[#allocation3 + $0x8d8] sm:$0xff]
    %v435 = vld [vmem:[#allocation3 + $0x8e0] sm:$0xff]
    %v436 = vld [vmem:[#allocation3 + $0x8e8] sm:$0xff]
    %v437 = vld [vmem:[#allocation3 + $0x8f0] sm:$0xff]
    %v438 = vld [vmem:[#allocation3 + $0x8f8] sm:$0xff]
    %v439 = vld [vmem:[#allocation3 + $0x900] sm:$0xff]
    %v440 = vld [vmem:[#allocation3 + $0x908] sm:$0xff]
    %v441 = vld [vmem:[#allocation3 + $0x910] sm:$0xff]
    %v442 = vld [vmem:[#allocation3 + $0x918] sm:$0xff]
    %v443 = vld [vmem:[#allocation3 + $0x920] sm:$0xff]
    %v444 = vld [vmem:[#allocation3 + $0x928] sm:$0xff]
    %v445 = vld [vmem:[#allocation3 + $0x930] sm:$0xff]
    %v446 = vld [vmem:[#allocation3 + $0x938] sm:$0xff]
    %v447 = vld [vmem:[#allocation3 + $0x940] sm:$0xff]
    %v448 = vld [vmem:[#allocation3 + $0x948] sm:$0xff]
    %v449 = vld [vmem:[#allocation3 + $0x950] sm:$0xff]
    %v450 = vld [vmem:[#allocation3 + $0x958] sm:$0xff]
    %v451 = vld [vmem:[#allocation3 + $0x960] sm:$0xff]
    %v452 = vld [vmem:[#allocation3 + $0x968] sm:$0xff]
    %v453 = vld [vmem:[#allocation3 + $0x970] sm:$0xff]
    %v454 = vld [vmem:[#allocation3 + $0x978] sm:$0xff]
    %v455 = vld [vmem:[#allocation3 + $0x980] sm:$0xff]
    %v456 = vld [vmem:[#allocation3 + $0x988] sm:$0xff]
    %v457 = vld [vmem:[#allocation3 + $0x990] sm:$0xff]
    %v458 = vld [vmem:[#allocation3 + $0x998] sm:$0xff]
    %v459 = vld [vmem:[#allocation3 + $0x9a0] sm:$0xff]
    %v460 = vld [vmem:[#allocation3 + $0x9a8] sm:$0xff]
    %v461 = vld [vmem:[#allocation3 + $0x9b0] sm:$0xff]
    %v462 = vld [vmem:[#allocation3 + $0x9b8] sm:$0xff]
    %v463 = vld [vmem:[#allocation3 + $0x9c0] sm:$0xff]
    %v464 = vld [vmem:[#allocation3 + $0x9c8] sm:$0xff]
    %v465 = vld [vmem:[#allocation3 + $0x9d0] sm:$0xff]
    %v466 = vld [vmem:[#allocation3 + $0x9d8] sm:$0xff]
    %v467 = vld [vmem:[#allocation3 + $0x9e0] sm:$0xff]
    %v468 = vld [vmem:[#allocation3 + $0x9e8] sm:$0xff]
    %v469 = vld [vmem:[#allocation3 + $0x9f0] sm:$0xff]
    %v470 = vld [vmem:[#allocation3 + $0x9f8] sm:$0xff]
    %v471 = vld [vmem:[#allocation3 + $0xa00] sm:$0xff]
    %v472 = vld [vmem:[#allocation3 + $0xa08] sm:$0xff]
    %v473 = vld [vmem:[#allocation3 + $0xa10] sm:$0xff]
    %v474 = vld [vmem:[#allocation3 + $0xa18] sm:$0xff]
    %v475 = vld [vmem:[#allocation3 + $0xa20] sm:$0xff]
    %v476 = vld [vmem:[#allocation3 + $0xa28] sm:$0xff]
    %v477 = vld [vmem:[#allocation3 + $0xa30] sm:$0xff]
    %v478 = vld [vmem:[#allocation3 + $0xa38] sm:$0xff]
    %v479 = vld [vmem:[#allocation3 + $0xa40] sm:$0xff]
    %v480 = vld [vmem:[#allocation3 + $0xa48] sm:$0xff]
    %v481 = vld [vmem:[#allocation3 + $0xa50] sm:$0xff]
    %v482 = vld [vmem:[#allocation3 + $0xa58] sm:$0xff]
    %v483 = vld [vmem:[#allocation3 + $0xa60] sm:$0xff]
    %v484 = vld [vmem:[#allocation3 + $0xa68] sm:$0xff]
    %v485 = vld [vmem:[#allocation3 + $0xa70] sm:$0xff]
    %v486 = vld [vmem:[#allocation3 + $0xa78] sm:$0xff]
    %v487 = vld [vmem:[#allocation3 + $0xa80] sm:$0xff]
    %v488 = vld [vmem:[#allocation3 + $0xa88] sm:$0xff]
    %v489 = vld [vmem:[#allocation3 + $0xa90] sm:$0xff]
    %v490 = vld [vmem:[#allocation3 + $0xa98] sm:$0xff]
    %v491 = vld [vmem:[#allocation3 + $0xaa0] sm:$0xff]
    %v492 = vld [vmem:[#allocation3 + $0xaa8] sm:$0xff]
    %v493 = vld [vmem:[#allocation3 + $0xab0] sm:$0xff]
    %v494 = vld [vmem:[#allocation3 + $0xab8] sm:$0xff]
    %v495 = vld [vmem:[#allocation3 + $0xac0] sm:$0xff]
    %v496 = vld [vmem:[#allocation3 + $0xac8] sm:$0xff]
    %v497 = vld [vmem:[#allocation3 + $0xad0] sm:$0xff]
    %v498 = vld [vmem:[#allocation3 + $0xad8] sm:$0xff]
    %v499 = vld [vmem:[#allocation3 + $0xae0] sm:$0xff]
    %v500 = vld [vmem:[#allocation3 + $0xae8] sm:$0xff]
    %v501 = vld [vmem:[#allocation3 + $0xaf0] sm:$0xff]
    %v502 = vld [vmem:[#allocation3 + $0xaf8] sm:$0xff]
    %v503 = vld [vmem:[#allocation3 + $0xb00] sm:$0xff]
    %v504 = vld [vmem:[#allocation3 + $0xb08] sm:$0xff]
    %v505 = vld [vmem:[#allocation3 + $0xb10] sm:$0xff]
    %v506 = vld [vmem:[#allocation3 + $0xb18] sm:$0xff]
    %v507 = vld [vmem:[#allocation3 + $0xb20] sm:$0xff]
    %v508 = vld [vmem:[#allocation3 + $0xb28] sm:$0xff]
    %v509 = vld [vmem:[#allocation3 + $0xb30] sm:$0xff]
    %v510 = vld [vmem:[#allocation3 + $0xb38] sm:$0xff]
    %v511 = vld [vmem:[#allocation3 + $0xb40] sm:$0xff]
    %v512 = vld [vmem:[#allocation3 + $0xb48] sm:$0xff]
    %v513 = vld [vmem:[#allocation3 + $0xb50] sm:$0xff]
    %v514 = vld [vmem:[#allocation3 + $0xb58] sm:$0xff]
    %v515 = vld [vmem:[#allocation3 + $0xb60] sm:$0xff]
    %v516 = vld [vmem:[#allocation3 + $0xb68] sm:$0xff]
    %v517 = vld [vmem:[#allocation3 + $0xb70] sm:$0xff]
    %v518 = vld [vmem:[#allocation3 + $0xb78] sm:$0xff]
    %v519 = vld [vmem:[#allocation3 + $0xb80] sm:$0xff]
    %v520 = vld [vmem:[#allocation3 + $0xb88] sm:$0xff]
    %v521 = vld [vmem:[#allocation3 + $0xb90] sm:$0xff]
    %v522 = vld [vmem:[#allocation3 + $0xb98] sm:$0xff]
    %v523 = vld [vmem:[#allocation3 + $0xba0] sm:$0xff]
    %v524 = vld [vmem:[#allocation3 + $0xba8] sm:$0xff]
    %v525 = vld [vmem:[#allocation3 + $0xbb0] sm:$0xff]
    %v526 = vld [vmem:[#allocation3 + $0xbb8] sm:$0xff]
    %v527 = vld [vmem:[#allocation3 + $0xbc0] sm:$0xff]
    %v528 = vld [vmem:[#allocation3 + $0xbc8] sm:$0xff]
    %v529 = vld [vmem:[#allocation3 + $0xbd0] sm:$0xff]
    %v530 = vld [vmem:[#allocation3 + $0xbd8] sm:$0xff]
    %v531 = vld [vmem:[#allocation3 + $0xbe0] sm:$0xff]
    %v532 = vld [vmem:[#allocation3 + $0xbe8] sm:$0xff]
    %v533 = vld [vmem:[#allocation3 + $0xbf0] sm:$0xff]
    %v534 = vld [vmem:[#allocation3 + $0xbf8] sm:$0xff]
    %v535 = vld [vmem:[#allocation3 + $0xc00] sm:$0xff]
    %v536 = vld [vmem:[#allocation3 + $0xc08] sm:$0xff]
    %v537 = vld [vmem:[#allocation3 + $0xc10] sm:$0xff]
    %v538 = vld [vmem:[#allocation3 + $0xc18] sm:$0xff]
    %v539 = vld [vmem:[#allocation3 + $0xc20] sm:$0xff]
    %v540 = vld [vmem:[#allocation3 + $0xc28] sm:$0xff]
    %v541 = vld [vmem:[#allocation3 + $0xc30] sm:$0xff]
    %v542 = vld [vmem:[#allocation3 + $0xc38] sm:$0xff]
    %v543 = vld [vmem:[#allocation3 + $0xc40] sm:$0xff]
    %v544 = vld [vmem:[#allocation3 + $0xc48] sm:$0xff]
    %v545 = vld [vmem:[#allocation3 + $0xc50] sm:$0xff]
    %v546 = vld [vmem:[#allocation3 + $0xc58] sm:$0xff]
    %v547 = vld [vmem:[#allocation3 + $0xc60] sm:$0xff]
    %v548 = vld [vmem:[#allocation3 + $0xc68] sm:$0xff]
    %v549 = vld [vmem:[#allocation3 + $0xc70] sm:$0xff]
    %v550 = vld [vmem:[#allocation3 + $0xc78] sm:$0xff]
    %v551 = vld [vmem:[#allocation3 + $0xc80] sm:$0xff]
    %v552 = vld [vmem:[#allocation3 + $0xc88] sm:$0xff]
    %v553 = vld [vmem:[#allocation3 + $0xc90] sm:$0xff]
    %v554 = vld [vmem:[#allocation3 + $0xc98] sm:$0xff]
    %v555 = vld [vmem:[#allocation3 + $0xca0] sm:$0xff]
    %v556 = vld [vmem:[#allocation3 + $0xca8] sm:$0xff]
    %v557 = vld [vmem:[#allocation3 + $0xcb0] sm:$0xff]
    %v558 = vld [vmem:[#allocation3 + $0xcb8] sm:$0xff]
    %v559 = vld [vmem:[#allocation3 + $0xcc0] sm:$0xff]
    %v560 = vld [vmem:[#allocation3 + $0xcc8] sm:$0xff]
    %v561 = vld [vmem:[#allocation3 + $0xcd0] sm:$0xff]
    %v562 = vld [vmem:[#allocation3 + $0xcd8] sm:$0xff]
    %v563 = vld [vmem:[#allocation3 + $0xce0] sm:$0xff]
    %v564 = vld [vmem:[#allocation3 + $0xce8] sm:$0xff]
    %v565 = vld [vmem:[#allocation3 + $0xcf0] sm:$0xff]
    %v566 = vld [vmem:[#allocation3 + $0xcf8] sm:$0xff]
    %v567 = vld [vmem:[#allocation3 + $0xd00] sm:$0xff]
    %v568 = vld [vmem:[#allocation3 + $0xd08] sm:$0xff]
    %v569 = vld [vmem:[#allocation3 + $0xd10] sm:$0xff]
    %v570 = vld [vmem:[#allocation3 + $0xd18] sm:$0xff]
    %v571 = vld [vmem:[#allocation3 + $0xd20] sm:$0xff]
    %v572 = vld [vmem:[#allocation3 + $0xd28] sm:$0xff]
    %v573 = vld [vmem:[#allocation3 + $0xd30] sm:$0xff]
    %v574 = vld [vmem:[#allocation3 + $0xd38] sm:$0xff]
    %v575 = vld [vmem:[#allocation3 + $0xd40] sm:$0xff]
    %v576 = vld [vmem:[#allocation3 + $0xd48] sm:$0xff]
    %v577 = vld [vmem:[#allocation3 + $0xd50] sm:$0xff]
    %v578 = vld [vmem:[#allocation3 + $0xd58] sm:$0xff]
    %v579 = vld [vmem:[#allocation3 + $0xd60] sm:$0xff]
    %v580 = vld [vmem:[#allocation3 + $0xd68] sm:$0xff]
    %v581 = vld [vmem:[#allocation3 + $0xd70] sm:$0xff]
    %v582 = vld [vmem:[#allocation3 + $0xd78] sm:$0xff]
    %v583 = vld [vmem:[#allocation3 + $0xd80] sm:$0xff]
    %v584 = vld [vmem:[#allocation3 + $0xd88] sm:$0xff]
    %v585 = vld [vmem:[#allocation3 + $0xd90] sm:$0xff]
    %v586 = vld [vmem:[#allocation3 + $0xd98] sm:$0xff]
    %v587 = vld [vmem:[#allocation3 + $0xda0] sm:$0xff]
    %v588 = vld [vmem:[#allocation3 + $0xda8] sm:$0xff]
    %v589 = vld [vmem:[#allocation3 + $0xdb0] sm:$0xff]
    %v590 = vld [vmem:[#allocation3 + $0xdb8] sm:$0xff]
    %v591 = vld [vmem:[#allocation3 + $0xdc0] sm:$0xff]
    %v592 = vld [vmem:[#allocation3 + $0xdc8] sm:$0xff]
    %v593 = vld [vmem:[#allocation3 + $0xdd0] sm:$0xff]
    %v594 = vld [vmem:[#allocation3 + $0xdd8] sm:$0xff]
    %v595 = vld [vmem:[#allocation3 + $0xde0] sm:$0xff]
    %v596 = vld [vmem:[#allocation3 + $0xde8] sm:$0xff]
    %v597 = vld [vmem:[#allocation3 + $0xdf0] sm:$0xff]
    %v598 = vld [vmem:[#allocation3 + $0xdf8] sm:$0xff]
    %v599 = vld [vmem:[#allocation3 + $0xe00] sm:$0xff]
    %v600 = vld [vmem:[#allocation3 + $0xe08] sm:$0xff]
    %v601 = vld [vmem:[#allocation3 + $0xe10] sm:$0xff]
    %v602 = vld [vmem:[#allocation3 + $0xe18] sm:$0xff]
    %v603 = vld [vmem:[#allocation3 + $0xe20] sm:$0xff]
    %v604 = vld [vmem:[#allocation3 + $0xe28] sm:$0xff]
    %v605 = vld [vmem:[#allocation3 + $0xe30] sm:$0xff]
    %v606 = vld [vmem:[#allocation3 + $0xe38] sm:$0xff]
    %v607 = vld [vmem:[#allocation3 + $0xe40] sm:$0xff]
    %v608 = vld [vmem:[#allocation3 + $0xe48] sm:$0xff]
    %v609 = vld [vmem:[#allocation3 + $0xe50] sm:$0xff]
    %v610 = vld [vmem:[#allocation3 + $0xe58] sm:$0xff]
    %v611 = vld [vmem:[#allocation3 + $0xe60] sm:$0xff]
    %v612 = vld [vmem:[#allocation3 + $0xe68] sm:$0xff]
    %v613 = vld [vmem:[#allocation3 + $0xe70] sm:$0xff]
    %v614 = vld [vmem:[#allocation3 + $0xe78] sm:$0xff]
    %v615 = vld [vmem:[#allocation3 + $0xe80] sm:$0xff]
    %v616 = vld [vmem:[#allocation3 + $0xe88] sm:$0xff]
    %v617 = vld [vmem:[#allocation3 + $0xe90] sm:$0xff]
    %v618 = vld [vmem:[#allocation3 + $0xe98] sm:$0xff]
    %v619 = vld [vmem:[#allocation3 + $0xea0] sm:$0xff]
    %v620 = vld [vmem:[#allocation3 + $0xea8] sm:$0xff]
    %v621 = vld [vmem:[#allocation3 + $0xeb0] sm:$0xff]
    %v622 = vld [vmem:[#allocation3 + $0xeb8] sm:$0xff]
    %v623 = vld [vmem:[#allocation3 + $0xec0] sm:$0xff]
    %v624 = vld [vmem:[#allocation3 + $0xec8] sm:$0xff]
    %v625 = vld [vmem:[#allocation3 + $0xed0] sm:$0xff]
    %v626 = vld [vmem:[#allocation3 + $0xed8] sm:$0xff]
    %v627 = vld [vmem:[#allocation3 + $0xee0] sm:$0xff]
    %v628 = vld [vmem:[#allocation3 + $0xee8] sm:$0xff]
    %v629 = vld [vmem:[#allocation3 + $0xef0] sm:$0xff]
    %v630 = vld [vmem:[#allocation3 + $0xef8] sm:$0xff]
    %v631 = vld [vmem:[#allocation3 + $0xf00] sm:$0xff]
    %v632 = vld [vmem:[#allocation3 + $0xf08] sm:$0xff]
    %v633 = vld [vmem:[#allocation3 + $0xf10] sm:$0xff]
    %v634 = vld [vmem:[#allocation3 + $0xf18] sm:$0xff]
    %v635 = vld [vmem:[#allocation3 + $0xf20] sm:$0xff]
    %v636 = vld [vmem:[#allocation3 + $0xf28] sm:$0xff]
    %v637 = vld [vmem:[#allocation3 + $0xf30] sm:$0xff]
    %v638 = vld [vmem:[#allocation3 + $0xf38] sm:$0xff]
    %v639 = vld [vmem:[#allocation3 + $0xf40] sm:$0xff]
    %v640 = vld [vmem:[#allocation3 + $0xf48] sm:$0xff]
    %v641 = vld [vmem:[#allocation3 + $0xf50] sm:$0xff]
    %v642 = vld [vmem:[#allocation3 + $0xf58] sm:$0xff]
    %v643 = vld [vmem:[#allocation3 + $0xf60] sm:$0xff]
    %v644 = vld [vmem:[#allocation3 + $0xf68] sm:$0xff]
    %v645 = vld [vmem:[#allocation3 + $0xf70] sm:$0xff]
    %v646 = vld [vmem:[#allocation3 + $0xf78] sm:$0xff]
    %v647 = vld [vmem:[#allocation3 + $0xf80] sm:$0xff]
    %v648 = vld [vmem:[#allocation3 + $0xf88] sm:$0xff]
    %v649 = vld [vmem:[#allocation3 + $0xf90] sm:$0xff]
    %v650 = vld [vmem:[#allocation3 + $0xf98] sm:$0xff]
    %v651 = vld [vmem:[#allocation3 + $0xfa0] sm:$0xff]
    %v652 = vld [vmem:[#allocation3 + $0xfa8] sm:$0xff]
    %v653 = vld [vmem:[#allocation3 + $0xfb0] sm:$0xff]
    %v654 = vld [vmem:[#allocation3 + $0xfb8] sm:$0xff]
    %v655 = vld [vmem:[#allocation3 + $0xfc0] sm:$0xff]
    %v656 = vld [vmem:[#allocation3 + $0xfc8] sm:$0xff]
    %v657 = vld [vmem:[#allocation3 + $0xfd0] sm:$0xff]
    %v658 = vld [vmem:[#allocation3 + $0xfd8] sm:$0xff]
    %v659 = vld [vmem:[#allocation3 + $0xfe0] sm:$0xff]
    %v660 = vld [vmem:[#allocation3 + $0xfe8] sm:$0xff]
    %v661 = vld [vmem:[#allocation3 + $0xff0] sm:$0xff]
    %v662 = vld [vmem:[#allocation3 + $0xff8] sm:$0xff]
    %v663 = vld [vmem:[#allocation3 + $0x1000] sm:$0xff]
    %v664 = vld [vmem:[#allocation3 + $0x1008] sm:$0xff]
    %v665 = vld [vmem:[#allocation3 + $0x1010] sm:$0xff]
    %v666 = vld [vmem:[#allocation3 + $0x1018] sm:$0xff]
    %v667 = vld [vmem:[#allocation3 + $0x1020] sm:$0xff]
    %v668 = vld [vmem:[#allocation3 + $0x1028] sm:$0xff]
    %v669 = vld [vmem:[#allocation3 + $0x1030] sm:$0xff]
    %v670 = vld [vmem:[#allocation3 + $0x1038] sm:$0xff]
    %v671 = vld [vmem:[#allocation3 + $0x1040] sm:$0xff]
    %v672 = vld [vmem:[#allocation3 + $0x1048] sm:$0xff]
    %v673 = vld [vmem:[#allocation3 + $0x1050] sm:$0xff]
    %v674 = vld [vmem:[#allocation3 + $0x1058] sm:$0xff]
    %v675 = vld [vmem:[#allocation3 + $0x1060] sm:$0xff]
    %v676 = vld [vmem:[#allocation3 + $0x1068] sm:$0xff]
    %v677 = vld [vmem:[#allocation3 + $0x1070] sm:$0xff]
    %v678 = vld [vmem:[#allocation3 + $0x1078] sm:$0xff]
    %v679 = vld [vmem:[#allocation3 + $0x1080] sm:$0xff]
    %v680 = vld [vmem:[#allocation3 + $0x1088] sm:$0xff]
    %v681 = vld [vmem:[#allocation3 + $0x1090] sm:$0xff]
    %v682 = vld [vmem:[#allocation3 + $0x1098] sm:$0xff]
    %v683 = vld [vmem:[#allocation3 + $0x10a0] sm:$0xff]
    %v684 = vld [vmem:[#allocation3 + $0x10a8] sm:$0xff]
    %v685 = vld [vmem:[#allocation3 + $0x10b0] sm:$0xff]
    %v686 = vld [vmem:[#allocation3 + $0x10b8] sm:$0xff]
    %v687 = vld [vmem:[#allocation3 + $0x10c0] sm:$0xff]
    %v688 = vld [vmem:[#allocation3 + $0x10c8] sm:$0xff]
    %v689 = vld [vmem:[#allocation3 + $0x10d0] sm:$0xff]
    %v690 = vld [vmem:[#allocation3 + $0x10d8] sm:$0xff]
    %v691 = vld [vmem:[#allocation3 + $0x10e0] sm:$0xff]
    %v692 = vld [vmem:[#allocation3 + $0x10e8] sm:$0xff]
    %v693 = vld [vmem:[#allocation3 + $0x10f0] sm:$0xff]
    %v694 = vld [vmem:[#allocation3 + $0x10f8] sm:$0xff]
    %v695 = vld [vmem:[#allocation3 + $0x1100] sm:$0xff]
    %v696 = vld [vmem:[#allocation3 + $0x1108] sm:$0xff]
    %v697 = vld [vmem:[#allocation3 + $0x1110] sm:$0xff]
    %v698 = vld [vmem:[#allocation3 + $0x1118] sm:$0xff]
    %v699 = vld [vmem:[#allocation3 + $0x1120] sm:$0xff]
    %v700 = vld [vmem:[#allocation3 + $0x1128] sm:$0xff]
    %v701 = vld [vmem:[#allocation3 + $0x1130] sm:$0xff]
    %v702 = vld [vmem:[#allocation3 + $0x1138] sm:$0xff]
    %v703 = vld [vmem:[#allocation3 + $0x1140] sm:$0xff]
    %v704 = vld [vmem:[#allocation3 + $0x1148] sm:$0xff]
    %v705 = vld [vmem:[#allocation3 + $0x1150] sm:$0xff]
    %v706 = vld [vmem:[#allocation3 + $0x1158] sm:$0xff]
    %v707 = vld [vmem:[#allocation3 + $0x1160] sm:$0xff]
    %v708 = vld [vmem:[#allocation3 + $0x1168] sm:$0xff]
    %v709 = vld [vmem:[#allocation3 + $0x1170] sm:$0xff]
    %v710 = vld [vmem:[#allocation3 + $0x1178] sm:$0xff]
    %v711 = vld [vmem:[#allocation3 + $0x1180] sm:$0xff]
    %v712 = vld [vmem:[#allocation3 + $0x1188] sm:$0xff]
    %v713 = vld [vmem:[#allocation3 + $0x1190] sm:$0xff]
    %v714 = vld [vmem:[#allocation3 + $0x1198] sm:$0xff]
    %v715 = vld [vmem:[#allocation3 + $0x11a0] sm:$0xff]
    %v716 = vld [vmem:[#allocation3 + $0x11a8] sm:$0xff]
    %v717 = vld [vmem:[#allocation3 + $0x11b0] sm:$0xff]
    %v718 = vld [vmem:[#allocation3 + $0x11b8] sm:$0xff]
    %v719 = vld [vmem:[#allocation3 + $0x11c0] sm:$0xff]
    %v720 = vld [vmem:[#allocation3 + $0x11c8] sm:$0xff]
    %v721 = vld [vmem:[#allocation3 + $0x11d0] sm:$0xff]
    %v722 = vld [vmem:[#allocation3 + $0x11d8] sm:$0xff]
    %v723 = vld [vmem:[#allocation3 + $0x11e0] sm:$0xff]
    %v724 = vld [vmem:[#allocation3 + $0x11e8] sm:$0xff]
    %v725 = vld [vmem:[#allocation3 + $0x11f0] sm:$0xff]
    %v726 = vld [vmem:[#allocation3 + $0x11f8] sm:$0xff]
    %v727 = vld [vmem:[#allocation5] sm:$0xff]
    %v728 = vld [vmem:[#allocation5 + $0x8] sm:$0xff]
    %v729 = vld [vmem:[#allocation5 + $0x10] sm:$0xff]
    %v730 = vld [vmem:[#allocation5 + $0x18] sm:$0xff]
    %v731 = vld [vmem:[#allocation5 + $0x20] sm:$0xf]
    %v737 = vlaneseq
    %v738 = vshrl.u32 %v737, 7
    %v739 = vsub.s32 0, %v738
    %v740 = vrot.slane %v727, %v739
    %v741 = vlaneseq
    %v742 = vshrl.u32 %v741, 7
    %v743 = vsub.s32 1, %v742
    %v744 = vrot.slane %v727, %v743
    %v745 = vlaneseq
    %v746 = vshrl.u32 %v745, 7
    %v747 = vsub.s32 2, %v746
    %v748 = vrot.slane %v727, %v747
    %v749 = vlaneseq
    %v750 = vshrl.u32 %v749, 7
    %v751 = vsub.s32 3, %v750
    %v752 = vrot.slane %v727, %v751
    %v753 = vlaneseq
    %v754 = vshrl.u32 %v753, 7
    %v755 = vsub.s32 4, %v754
    %v756 = vrot.slane %v727, %v755
    %v757 = vlaneseq
    %v758 = vshrl.u32 %v757, 7
    %v759 = vsub.s32 5, %v758
    %v760 = vrot.slane %v727, %v759
    %v761 = vlaneseq
    %v762 = vshrl.u32 %v761, 7
    %v763 = vsub.s32 6, %v762
    %v764 = vrot.slane %v727, %v763
    %v765 = vlaneseq
    %v766 = vshrl.u32 %v765, 7
    %v767 = vsub.s32 7, %v766
    %v768 = vrot.slane %v727, %v767
    %v769 = vlaneseq
    %v770 = vshrl.u32 %v769, 7
    %v771 = vsub.s32 0, %v770
    %v772 = vrot.slane %v728, %v771
    %v773 = vlaneseq
    %v774 = vshrl.u32 %v773, 7
    %v775 = vsub.s32 1, %v774
    %v776 = vrot.slane %v728, %v775
    %v777 = vlaneseq
    %v778 = vshrl.u32 %v777, 7
    %v779 = vsub.s32 2, %v778
    %v780 = vrot.slane %v728, %v779
    %v781 = vlaneseq
    %v782 = vshrl.u32 %v781, 7
    %v783 = vsub.s32 3, %v782
    %v784 = vrot.slane %v728, %v783
    %v785 = vlaneseq
    %v786 = vshrl.u32 %v785, 7
    %v787 = vsub.s32 4, %v786
    %v788 = vrot.slane %v728, %v787
    %v789 = vlaneseq
    %v790 = vshrl.u32 %v789, 7
    %v791 = vsub.s32 5, %v790
    %v792 = vrot.slane %v728, %v791
    %v793 = vlaneseq
    %v794 = vshrl.u32 %v793, 7
    %v795 = vsub.s32 6, %v794
    %v796 = vrot.slane %v728, %v795
    %v797 = vlaneseq
    %v798 = vshrl.u32 %v797, 7
    %v799 = vsub.s32 7, %v798
    %v800 = vrot.slane %v728, %v799
    %v801 = vlaneseq
    %v802 = vshrl.u32 %v801, 7
    %v803 = vsub.s32 0, %v802
    %v804 = vrot.slane %v729, %v803
    %v805 = vlaneseq
    %v806 = vshrl.u32 %v805, 7
    %v807 = vsub.s32 1, %v806
    %v808 = vrot.slane %v729, %v807
    %v809 = vlaneseq
    %v810 = vshrl.u32 %v809, 7
    %v811 = vsub.s32 2, %v810
    %v812 = vrot.slane %v729, %v811
    %v813 = vlaneseq
    %v814 = vshrl.u32 %v813, 7
    %v815 = vsub.s32 3, %v814
    %v816 = vrot.slane %v729, %v815
    %v817 = vlaneseq
    %v818 = vshrl.u32 %v817, 7
    %v819 = vsub.s32 4, %v818
    %v820 = vrot.slane %v729, %v819
    %v821 = vlaneseq
    %v822 = vshrl.u32 %v821, 7
    %v823 = vsub.s32 5, %v822
    %v824 = vrot.slane %v729, %v823
    %v825 = vlaneseq
    %v826 = vshrl.u32 %v825, 7
    %v827 = vsub.s32 6, %v826
    %v828 = vrot.slane %v729, %v827
    %v829 = vlaneseq
    %v830 = vshrl.u32 %v829, 7
    %v831 = vsub.s32 7, %v830
    %v832 = vrot.slane %v729, %v831
    %v833 = vlaneseq
    %v834 = vshrl.u32 %v833, 7
    %v835 = vsub.s32 0, %v834
    %v836 = vrot.slane %v730, %v835
    %v837 = vlaneseq
    %v838 = vshrl.u32 %v837, 7
    %v839 = vsub.s32 1, %v838
    %v840 = vrot.slane %v730, %v839
    %v841 = vlaneseq
    %v842 = vshrl.u32 %v841, 7
    %v843 = vsub.s32 2, %v842
    %v844 = vrot.slane %v730, %v843
    %v845 = vlaneseq
    %v846 = vshrl.u32 %v845, 7
    %v847 = vsub.s32 3, %v846
    %v848 = vrot.slane %v730, %v847
    %v849 = vlaneseq
    %v850 = vshrl.u32 %v849, 7
    %v851 = vsub.s32 4, %v850
    %v852 = vrot.slane %v730, %v851
    %v853 = vlaneseq
    %v854 = vshrl.u32 %v853, 7
    %v855 = vsub.s32 5, %v854
    %v856 = vrot.slane %v730, %v855
    %v857 = vlaneseq
    %v858 = vshrl.u32 %v857, 7
    %v859 = vsub.s32 6, %v858
    %v860 = vrot.slane %v730, %v859
    %v861 = vlaneseq
    %v862 = vshrl.u32 %v861, 7
    %v863 = vsub.s32 7, %v862
    %v864 = vrot.slane %v730, %v863
    %v865 = vlaneseq
    %v866 = vshrl.u32 %v865, 7
    %v867 = vsub.s32 0, %v866
    %v868 = vrot.slane %v731, %v867
    %v869 = vlaneseq
    %v870 = vshrl.u32 %v869, 7
    %v871 = vsub.s32 1, %v870
    %v872 = vrot.slane %v731, %v871
    %v873 = vlaneseq
    %v874 = vshrl.u32 %v873, 7
    %v875 = vsub.s32 2, %v874
    %v876 = vrot.slane %v731, %v875
    %v877 = vlaneseq
    %v878 = vshrl.u32 %v877, 7
    %v879 = vsub.s32 3, %v878
    %v880 = vrot.slane %v731, %v879
    %917 = vmatprep.subr.mxu0 %v692
    %918 = vmatpush1.msra.mxu0 %v691
    %919 = vmatprep.subr.mxu0 %v656
    %920 = vmatpush1.msra.mxu0 %v655
    %921 = vmatprep.subr.mxu0 %v620
    %922 = vmatpush1.msra.mxu0 %v619
    %923 = vmatprep.subr.mxu0 %v584
    %924 = vmatpush1.msra.mxu0 %v583
    %925 = vmatprep.subr.mxu0 %v548
    %926 = vmatpush1.msra.mxu0 %v547
    %927 = vmatprep.subr.mxu0 %v512
    %928 = vmatpush1.msra.mxu0 %v511
    %929 = vmatprep.subr.mxu0 %v476
    %930 = vmatpush1.msra.mxu0 %v475
    %931 = vmatprep.subr.mxu0 %v440
    %932 = vmatpush1.msra.mxu0 %v439
    %933 = vmatprep.subr.mxu0 %v404
    %934 = vmatpush1.msra.mxu0 %v403
    %935 = vmatprep.subr.mxu0 %v368
    %936 = vmatpush1.msra.mxu0 %v367
    %937 = vmatprep.subr.mxu0 %v332
    %938 = vmatpush1.msra.mxu0 %v331
    %939 = vmatprep.subr.mxu0 %v296
    %940 = vmatpush1.msra.mxu0 %v295
    %941 = vmatprep.subr.mxu0 %v260
    %942 = vmatpush1.msra.mxu0 %v259
    %943 = vmatprep.subr.mxu0 %v224
    %944 = vmatpush1.msra.mxu0 %v223
    %945 = vmatprep.subr.mxu0 %v188
    %946 = vmatpush1.msra.mxu0 %v187
    %947 = vmatprep.subr.mxu0 %v152
    %948 = vmatpush1.msra.mxu0 %v151
    %949 = vmatprep.subr.mxu0 0.0
    %950 = vmatpush2.msra.mxu0 0.0
    %951 = vmatprep.subr.mxu0 0.0
    %952 = vmatpush2.msra.mxu0 0.0
    %953 = vmatprep.subr.mxu0 0.0
    %954 = vmatpush2.msra.mxu0 0.0
    %955 = vmatprep.subr.mxu0 0.0
    %956 = vmatpush2.msra.mxu0 0.0
    %957 = vmatprep.subr.mxu0 0.0
    %958 = vmatpush2.msra.mxu0 0.0
    %959 = vmatprep.subr.mxu0 0.0
    %960 = vmatpush2.msra.mxu0 0.0
    %961 = vmatprep.subr.mxu0 0.0
    %962 = vmatpush2.msra.mxu0 0.0
    %963 = vmatprep.subr.mxu0 0.0
    %964 = vmatpush2.msra.mxu0 0.0
    %965 = vmatprep.subr.mxu0 0.0
    %966 = vmatpush2.msra.mxu0 0.0
    %967 = vmatprep.subr.mxu0 0.0
    %968 = vmatpush2.msra.mxu0 0.0
    %969 = vmatprep.subr.mxu0 0.0
    %970 = vmatpush2.msra.mxu0 0.0
    %971 = vmatprep.subr.mxu0 0.0
    %972 = vmatpush2.msra.mxu0 0.0
    %973 = vmatprep.subr.mxu0 0.0
    %974 = vmatpush2.msra.mxu0 0.0
    %975 = vmatprep.subr.mxu0 0.0
    %976 = vmatpush2.msra.mxu0 0.0
    %977 = vmatprep.subr.mxu0 0.0
    %978 = vmatpush2.msra.mxu0 0.0
    %979 = vmatprep.subr.mxu0 0.0
    %980 = vmatpush2.msra.mxu0 0.0
    %981 = vmatprep.mubr.f32.mxu0 0.0
    %982 = vmatmul.mubr.f32.gmra.mxu0 %v150
    %v983 = vpop.f32.mrf.mxu0
    %v984 = vadd.f32 %v740, %v983
    %v985 = vpop.f32.mrf.mxu0
    %v986 = vadd.f32 %v744, %v985
    %987 = vdwg.mxu0
    %988 = vmatprep.subr.mxu0 %v694
    %989 = vmatpush1.msra.mxu0 %v693
    %990 = vmatprep.subr.mxu0 %v658
    %991 = vmatpush1.msra.mxu0 %v657
    %992 = vmatprep.subr.mxu0 %v622
    %993 = vmatpush1.msra.mxu0 %v621
    %994 = vmatprep.subr.mxu0 %v586
    %995 = vmatpush1.msra.mxu0 %v585
    %996 = vmatprep.subr.mxu0 %v550
    %997 = vmatpush1.msra.mxu0 %v549
    %998 = vmatprep.subr.mxu0 %v514
    %999 = vmatpush1.msra.mxu0 %v513
    %1000 = vmatprep.subr.mxu0 %v478
    %1001 = vmatpush1.msra.mxu0 %v477
    %1002 = vmatprep.subr.mxu0 %v442
    %1003 = vmatpush1.msra.mxu0 %v441
    %1004 = vmatprep.subr.mxu0 %v406
    %1005 = vmatpush1.msra.mxu0 %v405
    %1006 = vmatprep.subr.mxu0 %v370
    %1007 = vmatpush1.msra.mxu0 %v369
    %1008 = vmatprep.subr.mxu0 %v334
    %1009 = vmatpush1.msra.mxu0 %v333
    %1010 = vmatprep.subr.mxu0 %v298
    %1011 = vmatpush1.msra.mxu0 %v297
    %1012 = vmatprep.subr.mxu0 %v262
    %1013 = vmatpush1.msra.mxu0 %v261
    %1014 = vmatprep.subr.mxu0 %v226
    %1015 = vmatpush1.msra.mxu0 %v225
    %1016 = vmatprep.subr.mxu0 %v190
    %1017 = vmatpush1.msra.mxu0 %v189
    %1018 = vmatprep.subr.mxu0 %v154
    %1019 = vmatpush1.msra.mxu0 %v153
    %1020 = vmatprep.subr.mxu0 0.0
    %1021 = vmatpush2.msra.mxu0 0.0
    %1022 = vmatprep.subr.mxu0 0.0
    %1023 = vmatpush2.msra.mxu0 0.0
    %1024 = vmatprep.subr.mxu0 0.0
    %1025 = vmatpush2.msra.mxu0 0.0
    %1026 = vmatprep.subr.mxu0 0.0
    %1027 = vmatpush2.msra.mxu0 0.0
    %1028 = vmatprep.subr.mxu0 0.0
    %1029 = vmatpush2.msra.mxu0 0.0
    %1030 = vmatprep.subr.mxu0 0.0
    %1031 = vmatpush2.msra.mxu0 0.0
    %1032 = vmatprep.subr.mxu0 0.0
    %1033 = vmatpush2.msra.mxu0 0.0
    %1034 = vmatprep.subr.mxu0 0.0
    %1035 = vmatpush2.msra.mxu0 0.0
    %1036 = vmatprep.subr.mxu0 0.0
    %1037 = vmatpush2.msra.mxu0 0.0
    %1038 = vmatprep.subr.mxu0 0.0
    %1039 = vmatpush2.msra.mxu0 0.0
    %1040 = vmatprep.subr.mxu0 0.0
    %1041 = vmatpush2.msra.mxu0 0.0
    %1042 = vmatprep.subr.mxu0 0.0
    %1043 = vmatpush2.msra.mxu0 0.0
    %1044 = vmatprep.subr.mxu0 0.0
    %1045 = vmatpush2.msra.mxu0 0.0
    %1046 = vmatprep.subr.mxu0 0.0
    %1047 = vmatpush2.msra.mxu0 0.0
    %1048 = vmatprep.subr.mxu0 0.0
    %1049 = vmatpush2.msra.mxu0 0.0
    %1050 = vmatprep.subr.mxu0 0.0
    %1051 = vmatpush2.msra.mxu0 0.0
    %1052 = vmatprep.mubr.f32.mxu0 0.0
    %1053 = vmatmul.mubr.f32.gmra.mxu0 %v150
    %v1054 = vpop.f32.mrf.mxu0
    %v1055 = vadd.f32 %v748, %v1054
    %v1056 = vpop.f32.mrf.mxu0
    %v1057 = vadd.f32 %v752, %v1056
    %1058 = vdwg.mxu0
    %1059 = vmatprep.subr.mxu0 %v696
    %1060 = vmatpush1.msra.mxu0 %v695
    %1061 = vmatprep.subr.mxu0 %v660
    %1062 = vmatpush1.msra.mxu0 %v659
    %1063 = vmatprep.subr.mxu0 %v624
    %1064 = vmatpush1.msra.mxu0 %v623
    %1065 = vmatprep.subr.mxu0 %v588
    %1066 = vmatpush1.msra.mxu0 %v587
    %1067 = vmatprep.subr.mxu0 %v552
    %1068 = vmatpush1.msra.mxu0 %v551
    %1069 = vmatprep.subr.mxu0 %v516
    %1070 = vmatpush1.msra.mxu0 %v515
    %1071 = vmatprep.subr.mxu0 %v480
    %1072 = vmatpush1.msra.mxu0 %v479
    %1073 = vmatprep.subr.mxu0 %v444
    %1074 = vmatpush1.msra.mxu0 %v443
    %1075 = vmatprep.subr.mxu0 %v408
    %1076 = vmatpush1.msra.mxu0 %v407
    %1077 = vmatprep.subr.mxu0 %v372
    %1078 = vmatpush1.msra.mxu0 %v371
    %1079 = vmatprep.subr.mxu0 %v336
    %1080 = vmatpush1.msra.mxu0 %v335
    %1081 = vmatprep.subr.mxu0 %v300
    %1082 = vmatpush1.msra.mxu0 %v299
    %1083 = vmatprep.subr.mxu0 %v264
    %1084 = vmatpush1.msra.mxu0 %v263
    %1085 = vmatprep.subr.mxu0 %v228
    %1086 = vmatpush1.msra.mxu0 %v227
    %1087 = vmatprep.subr.mxu0 %v192
    %1088 = vmatpush1.msra.mxu0 %v191
    %1089 = vmatprep.subr.mxu0 %v156
    %1090 = vmatpush1.msra.mxu0 %v155
    %1091 = vmatprep.subr.mxu0 0.0
    %1092 = vmatpush2.msra.mxu0 0.0
    %1093 = vmatprep.subr.mxu0 0.0
    %1094 = vmatpush2.msra.mxu0 0.0
    %1095 = vmatprep.subr.mxu0 0.0
    %1096 = vmatpush2.msra.mxu0 0.0
    %1097 = vmatprep.subr.mxu0 0.0
    %1098 = vmatpush2.msra.mxu0 0.0
    %1099 = vmatprep.subr.mxu0 0.0
    %1100 = vmatpush2.msra.mxu0 0.0
    %1101 = vmatprep.subr.mxu0 0.0
    %1102 = vmatpush2.msra.mxu0 0.0
    %1103 = vmatprep.subr.mxu0 0.0
    %1104 = vmatpush2.msra.mxu0 0.0
    %1105 = vmatprep.subr.mxu0 0.0
    %1106 = vmatpush2.msra.mxu0 0.0
    %1107 = vmatprep.subr.mxu0 0.0
    %1108 = vmatpush2.msra.mxu0 0.0
    %1109 = vmatprep.subr.mxu0 0.0
    %1110 = vmatpush2.msra.mxu0 0.0
    %1111 = vmatprep.subr.mxu0 0.0
    %1112 = vmatpush2.msra.mxu0 0.0
    %1113 = vmatprep.subr.mxu0 0.0
    %1114 = vmatpush2.msra.mxu0 0.0
    %1115 = vmatprep.subr.mxu0 0.0
    %1116 = vmatpush2.msra.mxu0 0.0
    %1117 = vmatprep.subr.mxu0 0.0
    %1118 = vmatpush2.msra.mxu0 0.0
    %1119 = vmatprep.subr.mxu0 0.0
    %1120 = vmatpush2.msra.mxu0 0.0
    %1121 = vmatprep.subr.mxu0 0.0
    %1122 = vmatpush2.msra.mxu0 0.0
    %1123 = vmatprep.mubr.f32.mxu0 0.0
    %1124 = vmatmul.mubr.f32.gmra.mxu0 %v150
    %v1125 = vpop.f32.mrf.mxu0
    %v1126 = vadd.f32 %v756, %v1125
    %v1127 = vpop.f32.mrf.mxu0
    %v1128 = vadd.f32 %v760, %v1127
    %1129 = vdwg.mxu0
    %1130 = vmatprep.subr.mxu0 %v698
    %1131 = vmatpush1.msra.mxu0 %v697
    %1132 = vmatprep.subr.mxu0 %v662
    %1133 = vmatpush1.msra.mxu0 %v661
    %1134 = vmatprep.subr.mxu0 %v626
    %1135 = vmatpush1.msra.mxu0 %v625
    %1136 = vmatprep.subr.mxu0 %v590
    %1137 = vmatpush1.msra.mxu0 %v589
    %1138 = vmatprep.subr.mxu0 %v554
    %1139 = vmatpush1.msra.mxu0 %v553
    %1140 = vmatprep.subr.mxu0 %v518
    %1141 = vmatpush1.msra.mxu0 %v517
    %1142 = vmatprep.subr.mxu0 %v482
    %1143 = vmatpush1.msra.mxu0 %v481
    %1144 = vmatprep.subr.mxu0 %v446
    %1145 = vmatpush1.msra.mxu0 %v445
    %1146 = vmatprep.subr.mxu0 %v410
    %1147 = vmatpush1.msra.mxu0 %v409
    %1148 = vmatprep.subr.mxu0 %v374
    %1149 = vmatpush1.msra.mxu0 %v373
    %1150 = vmatprep.subr.mxu0 %v338
    %1151 = vmatpush1.msra.mxu0 %v337
    %1152 = vmatprep.subr.mxu0 %v302
    %1153 = vmatpush1.msra.mxu0 %v301
    %1154 = vmatprep.subr.mxu0 %v266
    %1155 = vmatpush1.msra.mxu0 %v265
    %1156 = vmatprep.subr.mxu0 %v230
    %1157 = vmatpush1.msra.mxu0 %v229
    %1158 = vmatprep.subr.mxu0 %v194
    %1159 = vmatpush1.msra.mxu0 %v193
    %1160 = vmatprep.subr.mxu0 %v158
    %1161 = vmatpush1.msra.mxu0 %v157
    %1162 = vmatprep.subr.mxu0 0.0
    %1163 = vmatpush2.msra.mxu0 0.0
    %1164 = vmatprep.subr.mxu0 0.0
    %1165 = vmatpush2.msra.mxu0 0.0
    %1166 = vmatprep.subr.mxu0 0.0
    %1167 = vmatpush2.msra.mxu0 0.0
    %1168 = vmatprep.subr.mxu0 0.0
    %1169 = vmatpush2.msra.mxu0 0.0
    %1170 = vmatprep.subr.mxu0 0.0
    %1171 = vmatpush2.msra.mxu0 0.0
    %1172 = vmatprep.subr.mxu0 0.0
    %1173 = vmatpush2.msra.mxu0 0.0
    %1174 = vmatprep.subr.mxu0 0.0
    %1175 = vmatpush2.msra.mxu0 0.0
    %1176 = vmatprep.subr.mxu0 0.0
    %1177 = vmatpush2.msra.mxu0 0.0
    %1178 = vmatprep.subr.mxu0 0.0
    %1179 = vmatpush2.msra.mxu0 0.0
    %1180 = vmatprep.subr.mxu0 0.0
    %1181 = vmatpush2.msra.mxu0 0.0
    %1182 = vmatprep.subr.mxu0 0.0
    %1183 = vmatpush2.msra.mxu0 0.0
    %1184 = vmatprep.subr.mxu0 0.0
    %1185 = vmatpush2.msra.mxu0 0.0
    %1186 = vmatprep.subr.mxu0 0.0
    %1187 = vmatpush2.msra.mxu0 0.0
    %1188 = vmatprep.subr.mxu0 0.0
    %1189 = vmatpush2.msra.mxu0 0.0
    %1190 = vmatprep.subr.mxu0 0.0
    %1191 = vmatpush2.msra.mxu0 0.0
    %1192 = vmatprep.subr.mxu0 0.0
    %1193 = vmatpush2.msra.mxu0 0.0
    %1194 = vmatprep.mubr.f32.mxu0 0.0
    %1195 = vmatmul.mubr.f32.gmra.mxu0 %v150
    %v1196 = vpop.f32.mrf.mxu0
    %v1197 = vadd.f32 %v764, %v1196
    %v1198 = vpop.f32.mrf.mxu0
    %v1199 = vadd.f32 %v768, %v1198
    %1200 = vdwg.mxu0
    %1201 = vmatprep.subr.mxu0 %v700
    %1202 = vmatpush1.msra.mxu0 %v699
    %1203 = vmatprep.subr.mxu0 %v664
    %1204 = vmatpush1.msra.mxu0 %v663
    %1205 = vmatprep.subr.mxu0 %v628
    %1206 = vmatpush1.msra.mxu0 %v627
    %1207 = vmatprep.subr.mxu0 %v592
    %1208 = vmatpush1.msra.mxu0 %v591
    %1209 = vmatprep.subr.mxu0 %v556
    %1210 = vmatpush1.msra.mxu0 %v555
    %1211 = vmatprep.subr.mxu0 %v520
    %1212 = vmatpush1.msra.mxu0 %v519
    %1213 = vmatprep.subr.mxu0 %v484
    %1214 = vmatpush1.msra.mxu0 %v483
    %1215 = vmatprep.subr.mxu0 %v448
    %1216 = vmatpush1.msra.mxu0 %v447
    %1217 = vmatprep.subr.mxu0 %v412
    %1218 = vmatpush1.msra.mxu0 %v411
    %1219 = vmatprep.subr.mxu0 %v376
    %1220 = vmatpush1.msra.mxu0 %v375
    %1221 = vmatprep.subr.mxu0 %v340
    %1222 = vmatpush1.msra.mxu0 %v339
    %1223 = vmatprep.subr.mxu0 %v304
    %1224 = vmatpush1.msra.mxu0 %v303
    %1225 = vmatprep.subr.mxu0 %v268
    %1226 = vmatpush1.msra.mxu0 %v267
    %1227 = vmatprep.subr.mxu0 %v232
    %1228 = vmatpush1.msra.mxu0 %v231
    %1229 = vmatprep.subr.mxu0 %v196
    %1230 = vmatpush1.msra.mxu0 %v195
    %1231 = vmatprep.subr.mxu0 %v160
    %1232 = vmatpush1.msra.mxu0 %v159
    %1233 = vmatprep.subr.mxu0 0.0
    %1234 = vmatpush2.msra.mxu0 0.0
    %1235 = vmatprep.subr.mxu0 0.0
    %1236 = vmatpush2.msra.mxu0 0.0
    %1237 = vmatprep.subr.mxu0 0.0
    %1238 = vmatpush2.msra.mxu0 0.0
    %1239 = vmatprep.subr.mxu0 0.0
    %1240 = vmatpush2.msra.mxu0 0.0
    %1241 = vmatprep.subr.mxu0 0.0
    %1242 = vmatpush2.msra.mxu0 0.0
    %1243 = vmatprep.subr.mxu0 0.0
    %1244 = vmatpush2.msra.mxu0 0.0
    %1245 = vmatprep.subr.mxu0 0.0
    %1246 = vmatpush2.msra.mxu0 0.0
    %1247 = vmatprep.subr.mxu0 0.0
    %1248 = vmatpush2.msra.mxu0 0.0
    %1249 = vmatprep.subr.mxu0 0.0
    %1250 = vmatpush2.msra.mxu0 0.0
    %1251 = vmatprep.subr.mxu0 0.0
    %1252 = vmatpush2.msra.mxu0 0.0
    %1253 = vmatprep.subr.mxu0 0.0
    %1254 = vmatpush2.msra.mxu0 0.0
    %1255 = vmatprep.subr.mxu0 0.0
    %1256 = vmatpush2.msra.mxu0 0.0
    %1257 = vmatprep.subr.mxu0 0.0
    %1258 = vmatpush2.msra.mxu0 0.0
    %1259 = vmatprep.subr.mxu0 0.0
    %1260 = vmatpush2.msra.mxu0 0.0
    %1261 = vmatprep.subr.mxu0 0.0
    %1262 = vmatpush2.msra.mxu0 0.0
    %1263 = vmatprep.subr.mxu0 0.0
    %1264 = vmatpush2.msra.mxu0 0.0
    %1265 = vmatprep.mubr.f32.mxu0 0.0
    %1266 = vmatmul.mubr.f32.gmra.mxu0 %v150
    %v1267 = vpop.f32.mrf.mxu0
    %v1268 = vadd.f32 %v772, %v1267
    %v1269 = vpop.f32.mrf.mxu0
    %v1270 = vadd.f32 %v776, %v1269
    %1271 = vdwg.mxu0
    %1272 = vmatprep.subr.mxu0 %v702
    %1273 = vmatpush1.msra.mxu0 %v701
    %1274 = vmatprep.subr.mxu0 %v666
    %1275 = vmatpush1.msra.mxu0 %v665
    %1276 = vmatprep.subr.mxu0 %v630
    %1277 = vmatpush1.msra.mxu0 %v629
    %1278 = vmatprep.subr.mxu0 %v594
    %1279 = vmatpush1.msra.mxu0 %v593
    %1280 = vmatprep.subr.mxu0 %v558
    %1281 = vmatpush1.msra.mxu0 %v557
    %1282 = vmatprep.subr.mxu0 %v522
    %1283 = vmatpush1.msra.mxu0 %v521
    %1284 = vmatprep.subr.mxu0 %v486
    %1285 = vmatpush1.msra.mxu0 %v485
    %1286 = vmatprep.subr.mxu0 %v450
    %1287 = vmatpush1.msra.mxu0 %v449
    %1288 = vmatprep.subr.mxu0 %v414
    %1289 = vmatpush1.msra.mxu0 %v413
    %1290 = vmatprep.subr.mxu0 %v378
    %1291 = vmatpush1.msra.mxu0 %v377
    %1292 = vmatprep.subr.mxu0 %v342
    %1293 = vmatpush1.msra.mxu0 %v341
    %1294 = vmatprep.subr.mxu0 %v306
    %1295 = vmatpush1.msra.mxu0 %v305
    %1296 = vmatprep.subr.mxu0 %v270
    %1297 = vmatpush1.msra.mxu0 %v269
    %1298 = vmatprep.subr.mxu0 %v234
    %1299 = vmatpush1.msra.mxu0 %v233
    %1300 = vmatprep.subr.mxu0 %v198
    %1301 = vmatpush1.msra.mxu0 %v197
    %1302 = vmatprep.subr.mxu0 %v162
    %1303 = vmatpush1.msra.mxu0 %v161
    %1304 = vmatprep.subr.mxu0 0.0
    %1305 = vmatpush2.msra.mxu0 0.0
    %1306 = vmatprep.subr.mxu0 0.0
    %1307 = vmatpush2.msra.mxu0 0.0
    %1308 = vmatprep.subr.mxu0 0.0
    %1309 = vmatpush2.msra.mxu0 0.0
    %1310 = vmatprep.subr.mxu0 0.0
    %1311 = vmatpush2.msra.mxu0 0.0
    %1312 = vmatprep.subr.mxu0 0.0
    %1313 = vmatpush2.msra.mxu0 0.0
    %1314 = vmatprep.subr.mxu0 0.0
    %1315 = vmatpush2.msra.mxu0 0.0
    %1316 = vmatprep.subr.mxu0 0.0
    %1317 = vmatpush2.msra.mxu0 0.0
    %1318 = vmatprep.subr.mxu0 0.0
    %1319 = vmatpush2.msra.mxu0 0.0
    %1320 = vmatprep.subr.mxu0 0.0
    %1321 = vmatpush2.msra.mxu0 0.0
    %1322 = vmatprep.subr.mxu0 0.0
    %1323 = vmatpush2.msra.mxu0 0.0
    %1324 = vmatprep.subr.mxu0 0.0
    %1325 = vmatpush2.msra.mxu0 0.0
    %1326 = vmatprep.subr.mxu0 0.0
    %1327 = vmatpush2.msra.mxu0 0.0
    %1328 = vmatprep.subr.mxu0 0.0
    %1329 = vmatpush2.msra.mxu0 0.0
    %1330 = vmatprep.subr.mxu0 0.0
    %1331 = vmatpush2.msra.mxu0 0.0
    %1332 = vmatprep.subr.mxu0 0.0
    %1333 = vmatpush2.msra.mxu0 0.0
    %1334 = vmatprep.subr.mxu0 0.0
    %1335 = vmatpush2.msra.mxu0 0.0
    %1336 = vmatprep.mubr.f32.mxu0 0.0
    %1337 = vmatmul.mubr.f32.gmra.mxu0 %v150
    %v1338 = vpop.f32.mrf.mxu0
    %v1339 = vadd.f32 %v780, %v1338
    %v1340 = vpop.f32.mrf.mxu0
    %v1341 = vadd.f32 %v784, %v1340
    %1342 = vdwg.mxu0
    %1343 = vmatprep.subr.mxu0 %v704
    %1344 = vmatpush1.msra.mxu0 %v703
    %1345 = vmatprep.subr.mxu0 %v668
    %1346 = vmatpush1.msra.mxu0 %v667
    %1347 = vmatprep.subr.mxu0 %v632
    %1348 = vmatpush1.msra.mxu0 %v631
    %1349 = vmatprep.subr.mxu0 %v596
    %1350 = vmatpush1.msra.mxu0 %v595
    %1351 = vmatprep.subr.mxu0 %v560
    %1352 = vmatpush1.msra.mxu0 %v559
    %1353 = vmatprep.subr.mxu0 %v524
    %1354 = vmatpush1.msra.mxu0 %v523
    %1355 = vmatprep.subr.mxu0 %v488
    %1356 = vmatpush1.msra.mxu0 %v487
    %1357 = vmatprep.subr.mxu0 %v452
    %1358 = vmatpush1.msra.mxu0 %v451
    %1359 = vmatprep.subr.mxu0 %v416
    %1360 = vmatpush1.msra.mxu0 %v415
    %1361 = vmatprep.subr.mxu0 %v380
    %1362 = vmatpush1.msra.mxu0 %v379
    %1363 = vmatprep.subr.mxu0 %v344
    %1364 = vmatpush1.msra.mxu0 %v343
    %1365 = vmatprep.subr.mxu0 %v308
    %1366 = vmatpush1.msra.mxu0 %v307
    %1367 = vmatprep.subr.mxu0 %v272
    %1368 = vmatpush1.msra.mxu0 %v271
    %1369 = vmatprep.subr.mxu0 %v236
    %1370 = vmatpush1.msra.mxu0 %v235
    %1371 = vmatprep.subr.mxu0 %v200
    %1372 = vmatpush1.msra.mxu0 %v199
    %1373 = vmatprep.subr.mxu0 %v164
    %1374 = vmatpush1.msra.mxu0 %v163
    %1375 = vmatprep.subr.mxu0 0.0
    %1376 = vmatpush2.msra.mxu0 0.0
    %1377 = vmatprep.subr.mxu0 0.0
    %1378 = vmatpush2.msra.mxu0 0.0
    %1379 = vmatprep.subr.mxu0 0.0
    %1380 = vmatpush2.msra.mxu0 0.0
    %1381 = vmatprep.subr.mxu0 0.0
    %1382 = vmatpush2.msra.mxu0 0.0
    %1383 = vmatprep.subr.mxu0 0.0
    %1384 = vmatpush2.msra.mxu0 0.0
    %1385 = vmatprep.subr.mxu0 0.0
    %1386 = vmatpush2.msra.mxu0 0.0
    %1387 = vmatprep.subr.mxu0 0.0
    %1388 = vmatpush2.msra.mxu0 0.0
    %1389 = vmatprep.subr.mxu0 0.0
    %1390 = vmatpush2.msra.mxu0 0.0
    %1391 = vmatprep.subr.mxu0 0.0
    %1392 = vmatpush2.msra.mxu0 0.0
    %1393 = vmatprep.subr.mxu0 0.0
    %1394 = vmatpush2.msra.mxu0 0.0
    %1395 = vmatprep.subr.mxu0 0.0
    %1396 = vmatpush2.msra.mxu0 0.0
    %1397 = vmatprep.subr.mxu0 0.0
    %1398 = vmatpush2.msra.mxu0 0.0
    %1399 = vmatprep.subr.mxu0 0.0
    %1400 = vmatpush2.msra.mxu0 0.0
    %1401 = vmatprep.subr.mxu0 0.0
    %1402 = vmatpush2.msra.mxu0 0.0
    %1403 = vmatprep.subr.mxu0 0.0
    %1404 = vmatpush2.msra.mxu0 0.0
    %1405 = vmatprep.subr.mxu0 0.0
    %1406 = vmatpush2.msra.mxu0 0.0
    %1407 = vmatprep.mubr.f32.mxu0 0.0
    %1408 = vmatmul.mubr.f32.gmra.mxu0 %v150
    %v1409 = vpop.f32.mrf.mxu0
    %v1410 = vadd.f32 %v788, %v1409
    %v1411 = vpop.f32.mrf.mxu0
    %v1412 = vadd.f32 %v792, %v1411
    %1413 = vdwg.mxu0
    %1414 = vmatprep.subr.mxu0 %v706
    %1415 = vmatpush1.msra.mxu0 %v705
    %1416 = vmatprep.subr.mxu0 %v670
    %1417 = vmatpush1.msra.mxu0 %v669
    %1418 = vmatprep.subr.mxu0 %v634
    %1419 = vmatpush1.msra.mxu0 %v633
    %1420 = vmatprep.subr.mxu0 %v598
    %1421 = vmatpush1.msra.mxu0 %v597
    %1422 = vmatprep.subr.mxu0 %v562
    %1423 = vmatpush1.msra.mxu0 %v561
    %1424 = vmatprep.subr.mxu0 %v526
    %1425 = vmatpush1.msra.mxu0 %v525
    %1426 = vmatprep.subr.mxu0 %v490
    %1427 = vmatpush1.msra.mxu0 %v489
    %1428 = vmatprep.subr.mxu0 %v454
    %1429 = vmatpush1.msra.mxu0 %v453
    %1430 = vmatprep.subr.mxu0 %v418
    %1431 = vmatpush1.msra.mxu0 %v417
    %1432 = vmatprep.subr.mxu0 %v382
    %1433 = vmatpush1.msra.mxu0 %v381
    %1434 = vmatprep.subr.mxu0 %v346
    %1435 = vmatpush1.msra.mxu0 %v345
    %1436 = vmatprep.subr.mxu0 %v310
    %1437 = vmatpush1.msra.mxu0 %v309
    %1438 = vmatprep.subr.mxu0 %v274
    %1439 = vmatpush1.msra.mxu0 %v273
    %1440 = vmatprep.subr.mxu0 %v238
    %1441 = vmatpush1.msra.mxu0 %v237
    %1442 = vmatprep.subr.mxu0 %v202
    %1443 = vmatpush1.msra.mxu0 %v201
    %1444 = vmatprep.subr.mxu0 %v166
    %1445 = vmatpush1.msra.mxu0 %v165
    %1446 = vmatprep.subr.mxu0 0.0
    %1447 = vmatpush2.msra.mxu0 0.0
    %1448 = vmatprep.subr.mxu0 0.0
    %1449 = vmatpush2.msra.mxu0 0.0
    %1450 = vmatprep.subr.mxu0 0.0
    %1451 = vmatpush2.msra.mxu0 0.0
    %1452 = vmatprep.subr.mxu0 0.0
    %1453 = vmatpush2.msra.mxu0 0.0
    %1454 = vmatprep.subr.mxu0 0.0
    %1455 = vmatpush2.msra.mxu0 0.0
    %1456 = vmatprep.subr.mxu0 0.0
    %1457 = vmatpush2.msra.mxu0 0.0
    %1458 = vmatprep.subr.mxu0 0.0
    %1459 = vmatpush2.msra.mxu0 0.0
    %1460 = vmatprep.subr.mxu0 0.0
    %1461 = vmatpush2.msra.mxu0 0.0
    %1462 = vmatprep.subr.mxu0 0.0
    %1463 = vmatpush2.msra.mxu0 0.0
    %1464 = vmatprep.subr.mxu0 0.0
    %1465 = vmatpush2.msra.mxu0 0.0
    %1466 = vmatprep.subr.mxu0 0.0
    %1467 = vmatpush2.msra.mxu0 0.0
    %1468 = vmatprep.subr.mxu0 0.0
    %1469 = vmatpush2.msra.mxu0 0.0
    %1470 = vmatprep.subr.mxu0 0.0
    %1471 = vmatpush2.msra.mxu0 0.0
    %1472 = vmatprep.subr.mxu0 0.0
    %1473 = vmatpush2.msra.mxu0 0.0
    %1474 = vmatprep.subr.mxu0 0.0
    %1475 = vmatpush2.msra.mxu0 0.0
    %1476 = vmatprep.subr.mxu0 0.0
    %1477 = vmatpush2.msra.mxu0 0.0
    %1478 = vmatprep.mubr.f32.mxu0 0.0
    %1479 = vmatmul.mubr.f32.gmra.mxu0 %v150
    %v1480 = vpop.f32.mrf.mxu0
    %v1481 = vadd.f32 %v796, %v1480
    %v1482 = vpop.f32.mrf.mxu0
    %v1483 = vadd.f32 %v800, %v1482
    %1484 = vdwg.mxu0
    %1485 = vmatprep.subr.mxu0 %v708
    %1486 = vmatpush1.msra.mxu0 %v707
    %1487 = vmatprep.subr.mxu0 %v672
    %1488 = vmatpush1.msra.mxu0 %v671
    %1489 = vmatprep.subr.mxu0 %v636
    %1490 = vmatpush1.msra.mxu0 %v635
    %1491 = vmatprep.subr.mxu0 %v600
    %1492 = vmatpush1.msra.mxu0 %v599
    %1493 = vmatprep.subr.mxu0 %v564
    %1494 = vmatpush1.msra.mxu0 %v563
    %1495 = vmatprep.subr.mxu0 %v528
    %1496 = vmatpush1.msra.mxu0 %v527
    %1497 = vmatprep.subr.mxu0 %v492
    %1498 = vmatpush1.msra.mxu0 %v491
    %1499 = vmatprep.subr.mxu0 %v456
    %1500 = vmatpush1.msra.mxu0 %v455
    %1501 = vmatprep.subr.mxu0 %v420
    %1502 = vmatpush1.msra.mxu0 %v419
    %1503 = vmatprep.subr.mxu0 %v384
    %1504 = vmatpush1.msra.mxu0 %v383
    %1505 = vmatprep.subr.mxu0 %v348
    %1506 = vmatpush1.msra.mxu0 %v347
    %1507 = vmatprep.subr.mxu0 %v312
    %1508 = vmatpush1.msra.mxu0 %v311
    %1509 = vmatprep.subr.mxu0 %v276
    %1510 = vmatpush1.msra.mxu0 %v275
    %1511 = vmatprep.subr.mxu0 %v240
    %1512 = vmatpush1.msra.mxu0 %v239
    %1513 = vmatprep.subr.mxu0 %v204
    %1514 = vmatpush1.msra.mxu0 %v203
    %1515 = vmatprep.subr.mxu0 %v168
    %1516 = vmatpush1.msra.mxu0 %v167
    %1517 = vmatprep.subr.mxu0 0.0
    %1518 = vmatpush2.msra.mxu0 0.0
    %1519 = vmatprep.subr.mxu0 0.0
    %1520 = vmatpush2.msra.mxu0 0.0
    %1521 = vmatprep.subr.mxu0 0.0
    %1522 = vmatpush2.msra.mxu0 0.0
    %1523 = vmatprep.subr.mxu0 0.0
    %1524 = vmatpush2.msra.mxu0 0.0
    %1525 = vmatprep.subr.mxu0 0.0
    %1526 = vmatpush2.msra.mxu0 0.0
    %1527 = vmatprep.subr.mxu0 0.0
    %1528 = vmatpush2.msra.mxu0 0.0
    %1529 = vmatprep.subr.mxu0 0.0
    %1530 = vmatpush2.msra.mxu0 0.0
    %1531 = vmatprep.subr.mxu0 0.0
    %1532 = vmatpush2.msra.mxu0 0.0
    %1533 = vmatprep.subr.mxu0 0.0
    %1534 = vmatpush2.msra.mxu0 0.0
    %1535 = vmatprep.subr.mxu0 0.0
    %1536 = vmatpush2.msra.mxu0 0.0
    %1537 = vmatprep.subr.mxu0 0.0
    %1538 = vmatpush2.msra.mxu0 0.0
    %1539 = vmatprep.subr.mxu0 0.0
    %1540 = vmatpush2.msra.mxu0 0.0
    %1541 = vmatprep.subr.mxu0 0.0
    %1542 = vmatpush2.msra.mxu0 0.0
    %1543 = vmatprep.subr.mxu0 0.0
    %1544 = vmatpush2.msra.mxu0 0.0
    %1545 = vmatprep.subr.mxu0 0.0
    %1546 = vmatpush2.msra.mxu0 0.0
    %1547 = vmatprep.subr.mxu0 0.0
    %1548 = vmatpush2.msra.mxu0 0.0
    %1549 = vmatprep.mubr.f32.mxu0 0.0
    %1550 = vmatmul.mubr.f32.gmra.mxu0 %v150
    %v1551 = vpop.f32.mrf.mxu0
    %v1552 = vadd.f32 %v804, %v1551
    %v1553 = vpop.f32.mrf.mxu0
    %v1554 = vadd.f32 %v808, %v1553
    %1555 = vdwg.mxu0
    %1556 = vmatprep.subr.mxu0 %v710
    %1557 = vmatpush1.msra.mxu0 %v709
    %1558 = vmatprep.subr.mxu0 %v674
    %1559 = vmatpush1.msra.mxu0 %v673
    %1560 = vmatprep.subr.mxu0 %v638
    %1561 = vmatpush1.msra.mxu0 %v637
    %1562 = vmatprep.subr.mxu0 %v602
    %1563 = vmatpush1.msra.mxu0 %v601
    %1564 = vmatprep.subr.mxu0 %v566
    %1565 = vmatpush1.msra.mxu0 %v565
    %1566 = vmatprep.subr.mxu0 %v530
    %1567 = vmatpush1.msra.mxu0 %v529
    %1568 = vmatprep.subr.mxu0 %v494
    %1569 = vmatpush1.msra.mxu0 %v493
    %1570 = vmatprep.subr.mxu0 %v458
    %1571 = vmatpush1.msra.mxu0 %v457
    %1572 = vmatprep.subr.mxu0 %v422
    %1573 = vmatpush1.msra.mxu0 %v421
    %1574 = vmatprep.subr.mxu0 %v386
    %1575 = vmatpush1.msra.mxu0 %v385
    %1576 = vmatprep.subr.mxu0 %v350
    %1577 = vmatpush1.msra.mxu0 %v349
    %1578 = vmatprep.subr.mxu0 %v314
    %1579 = vmatpush1.msra.mxu0 %v313
    %1580 = vmatprep.subr.mxu0 %v278
    %1581 = vmatpush1.msra.mxu0 %v277
    %1582 = vmatprep.subr.mxu0 %v242
    %1583 = vmatpush1.msra.mxu0 %v241
    %1584 = vmatprep.subr.mxu0 %v206
    %1585 = vmatpush1.msra.mxu0 %v205
    %1586 = vmatprep.subr.mxu0 %v170
    %1587 = vmatpush1.msra.mxu0 %v169
    %1588 = vmatprep.subr.mxu0 0.0
    %1589 = vmatpush2.msra.mxu0 0.0
    %1590 = vmatprep.subr.mxu0 0.0
    %1591 = vmatpush2.msra.mxu0 0.0
    %1592 = vmatprep.subr.mxu0 0.0
    %1593 = vmatpush2.msra.mxu0 0.0
    %1594 = vmatprep.subr.mxu0 0.0
    %1595 = vmatpush2.msra.mxu0 0.0
    %1596 = vmatprep.subr.mxu0 0.0
    %1597 = vmatpush2.msra.mxu0 0.0
    %1598 = vmatprep.subr.mxu0 0.0
    %1599 = vmatpush2.msra.mxu0 0.0
    %1600 = vmatprep.subr.mxu0 0.0
    %1601 = vmatpush2.msra.mxu0 0.0
    %1602 = vmatprep.subr.mxu0 0.0
    %1603 = vmatpush2.msra.mxu0 0.0
    %1604 = vmatprep.subr.mxu0 0.0
    %1605 = vmatpush2.msra.mxu0 0.0
    %1606 = vmatprep.subr.mxu0 0.0
    %1607 = vmatpush2.msra.mxu0 0.0
    %1608 = vmatprep.subr.mxu0 0.0
    %1609 = vmatpush2.msra.mxu0 0.0
    %1610 = vmatprep.subr.mxu0 0.0
    %1611 = vmatpush2.msra.mxu0 0.0
    %1612 = vmatprep.subr.mxu0 0.0
    %1613 = vmatpush2.msra.mxu0 0.0
    %1614 = vmatprep.subr.mxu0 0.0
    %1615 = vmatpush2.msra.mxu0 0.0
    %1616 = vmatprep.subr.mxu0 0.0
    %1617 = vmatpush2.msra.mxu0 0.0
    %1618 = vmatprep.subr.mxu0 0.0
    %1619 = vmatpush2.msra.mxu0 0.0
    %1620 = vmatprep.mubr.f32.mxu0 0.0
    %1621 = vmatmul.mubr.f32.gmra.mxu0 %v150
    %v1622 = vpop.f32.mrf.mxu0
    %v1623 = vadd.f32 %v812, %v1622
    %v1624 = vpop.f32.mrf.mxu0
    %v1625 = vadd.f32 %v816, %v1624
    %1626 = vdwg.mxu0
    %1627 = vmatprep.subr.mxu0 %v712
    %1628 = vmatpush1.msra.mxu0 %v711
    %1629 = vmatprep.subr.mxu0 %v676
    %1630 = vmatpush1.msra.mxu0 %v675
    %1631 = vmatprep.subr.mxu0 %v640
    %1632 = vmatpush1.msra.mxu0 %v639
    %1633 = vmatprep.subr.mxu0 %v604
    %1634 = vmatpush1.msra.mxu0 %v603
    %1635 = vmatprep.subr.mxu0 %v568
    %1636 = vmatpush1.msra.mxu0 %v567
    %1637 = vmatprep.subr.mxu0 %v532
    %1638 = vmatpush1.msra.mxu0 %v531
    %1639 = vmatprep.subr.mxu0 %v496
    %1640 = vmatpush1.msra.mxu0 %v495
    %1641 = vmatprep.subr.mxu0 %v460
    %1642 = vmatpush1.msra.mxu0 %v459
    %1643 = vmatprep.subr.mxu0 %v424
    %1644 = vmatpush1.msra.mxu0 %v423
    %1645 = vmatprep.subr.mxu0 %v388
    %1646 = vmatpush1.msra.mxu0 %v387
    %1647 = vmatprep.subr.mxu0 %v352
    %1648 = vmatpush1.msra.mxu0 %v351
    %1649 = vmatprep.subr.mxu0 %v316
    %1650 = vmatpush1.msra.mxu0 %v315
    %1651 = vmatprep.subr.mxu0 %v280
    %1652 = vmatpush1.msra.mxu0 %v279
    %1653 = vmatprep.subr.mxu0 %v244
    %1654 = vmatpush1.msra.mxu0 %v243
    %1655 = vmatprep.subr.mxu0 %v208
    %1656 = vmatpush1.msra.mxu0 %v207
    %1657 = vmatprep.subr.mxu0 %v172
    %1658 = vmatpush1.msra.mxu0 %v171
    %1659 = vmatprep.subr.mxu0 0.0
    %1660 = vmatpush2.msra.mxu0 0.0
    %1661 = vmatprep.subr.mxu0 0.0
    %1662 = vmatpush2.msra.mxu0 0.0
    %1663 = vmatprep.subr.mxu0 0.0
    %1664 = vmatpush2.msra.mxu0 0.0
    %1665 = vmatprep.subr.mxu0 0.0
    %1666 = vmatpush2.msra.mxu0 0.0
    %1667 = vmatprep.subr.mxu0 0.0
    %1668 = vmatpush2.msra.mxu0 0.0
    %1669 = vmatprep.subr.mxu0 0.0
    %1670 = vmatpush2.msra.mxu0 0.0
    %1671 = vmatprep.subr.mxu0 0.0
    %1672 = vmatpush2.msra.mxu0 0.0
    %1673 = vmatprep.subr.mxu0 0.0
    %1674 = vmatpush2.msra.mxu0 0.0
    %1675 = vmatprep.subr.mxu0 0.0
    %1676 = vmatpush2.msra.mxu0 0.0
    %1677 = vmatprep.subr.mxu0 0.0
    %1678 = vmatpush2.msra.mxu0 0.0
    %1679 = vmatprep.subr.mxu0 0.0
    %1680 = vmatpush2.msra.mxu0 0.0
    %1681 = vmatprep.subr.mxu0 0.0
    %1682 = vmatpush2.msra.mxu0 0.0
    %1683 = vmatprep.subr.mxu0 0.0
    %1684 = vmatpush2.msra.mxu0 0.0
    %1685 = vmatprep.subr.mxu0 0.0
    %1686 = vmatpush2.msra.mxu0 0.0
    %1687 = vmatprep.subr.mxu0 0.0
    %1688 = vmatpush2.msra.mxu0 0.0
    %1689 = vmatprep.subr.mxu0 0.0
    %1690 = vmatpush2.msra.mxu0 0.0
    %1691 = vmatprep.mubr.f32.mxu0 0.0
    %1692 = vmatmul.mubr.f32.gmra.mxu0 %v150
    %v1693 = vpop.f32.mrf.mxu0
    %v1694 = vadd.f32 %v820, %v1693
    %v1695 = vpop.f32.mrf.mxu0
    %v1696 = vadd.f32 %v824, %v1695
    %1697 = vdwg.mxu0
    %1698 = vmatprep.subr.mxu0 %v714
    %1699 = vmatpush1.msra.mxu0 %v713
    %1700 = vmatprep.subr.mxu0 %v678
    %1701 = vmatpush1.msra.mxu0 %v677
    %1702 = vmatprep.subr.mxu0 %v642
    %1703 = vmatpush1.msra.mxu0 %v641
    %1704 = vmatprep.subr.mxu0 %v606
    %1705 = vmatpush1.msra.mxu0 %v605
    %1706 = vmatprep.subr.mxu0 %v570
    %1707 = vmatpush1.msra.mxu0 %v569
    %1708 = vmatprep.subr.mxu0 %v534
    %1709 = vmatpush1.msra.mxu0 %v533
    %1710 = vmatprep.subr.mxu0 %v498
    %1711 = vmatpush1.msra.mxu0 %v497
    %1712 = vmatprep.subr.mxu0 %v462
    %1713 = vmatpush1.msra.mxu0 %v461
    %1714 = vmatprep.subr.mxu0 %v426
    %1715 = vmatpush1.msra.mxu0 %v425
    %1716 = vmatprep.subr.mxu0 %v390
    %1717 = vmatpush1.msra.mxu0 %v389
    %1718 = vmatprep.subr.mxu0 %v354
    %1719 = vmatpush1.msra.mxu0 %v353
    %1720 = vmatprep.subr.mxu0 %v318
    %1721 = vmatpush1.msra.mxu0 %v317
    %1722 = vmatprep.subr.mxu0 %v282
    %1723 = vmatpush1.msra.mxu0 %v281
    %1724 = vmatprep.subr.mxu0 %v246
    %1725 = vmatpush1.msra.mxu0 %v245
    %1726 = vmatprep.subr.mxu0 %v210
    %1727 = vmatpush1.msra.mxu0 %v209
    %1728 = vmatprep.subr.mxu0 %v174
    %1729 = vmatpush1.msra.mxu0 %v173
    %1730 = vmatprep.subr.mxu0 0.0
    %1731 = vmatpush2.msra.mxu0 0.0
    %1732 = vmatprep.subr.mxu0 0.0
    %1733 = vmatpush2.msra.mxu0 0.0
    %1734 = vmatprep.subr.mxu0 0.0
    %1735 = vmatpush2.msra.mxu0 0.0
    %1736 = vmatprep.subr.mxu0 0.0
    %1737 = vmatpush2.msra.mxu0 0.0
    %1738 = vmatprep.subr.mxu0 0.0
    %1739 = vmatpush2.msra.mxu0 0.0
    %1740 = vmatprep.subr.mxu0 0.0
    %1741 = vmatpush2.msra.mxu0 0.0
    %1742 = vmatprep.subr.mxu0 0.0
    %1743 = vmatpush2.msra.mxu0 0.0
    %1744 = vmatprep.subr.mxu0 0.0
    %1745 = vmatpush2.msra.mxu0 0.0
    %1746 = vmatprep.subr.mxu0 0.0
    %1747 = vmatpush2.msra.mxu0 0.0
    %1748 = vmatprep.subr.mxu0 0.0
    %1749 = vmatpush2.msra.mxu0 0.0
    %1750 = vmatprep.subr.mxu0 0.0
    %1751 = vmatpush2.msra.mxu0 0.0
    %1752 = vmatprep.subr.mxu0 0.0
    %1753 = vmatpush2.msra.mxu0 0.0
    %1754 = vmatprep.subr.mxu0 0.0
    %1755 = vmatpush2.msra.mxu0 0.0
    %1756 = vmatprep.subr.mxu0 0.0
    %1757 = vmatpush2.msra.mxu0 0.0
    %1758 = vmatprep.subr.mxu0 0.0
    %1759 = vmatpush2.msra.mxu0 0.0
    %1760 = vmatprep.subr.mxu0 0.0
    %1761 = vmatpush2.msra.mxu0 0.0
    %1762 = vmatprep.mubr.f32.mxu0 0.0
    %1763 = vmatmul.mubr.f32.gmra.mxu0 %v150
    %v1764 = vpop.f32.mrf.mxu0
    %v1765 = vadd.f32 %v828, %v1764
    %v1766 = vpop.f32.mrf.mxu0
    %v1767 = vadd.f32 %v832, %v1766
    %1768 = vdwg.mxu0
    %1769 = vmatprep.subr.mxu0 %v716
    %1770 = vmatpush1.msra.mxu0 %v715
    %1771 = vmatprep.subr.mxu0 %v680
    %1772 = vmatpush1.msra.mxu0 %v679
    %1773 = vmatprep.subr.mxu0 %v644
    %1774 = vmatpush1.msra.mxu0 %v643
    %1775 = vmatprep.subr.mxu0 %v608
    %1776 = vmatpush1.msra.mxu0 %v607
    %1777 = vmatprep.subr.mxu0 %v572
    %1778 = vmatpush1.msra.mxu0 %v571
    %1779 = vmatprep.subr.mxu0 %v536
    %1780 = vmatpush1.msra.mxu0 %v535
    %1781 = vmatprep.subr.mxu0 %v500
    %1782 = vmatpush1.msra.mxu0 %v499
    %1783 = vmatprep.subr.mxu0 %v464
    %1784 = vmatpush1.msra.mxu0 %v463
    %1785 = vmatprep.subr.mxu0 %v428
    %1786 = vmatpush1.msra.mxu0 %v427
    %1787 = vmatprep.subr.mxu0 %v392
    %1788 = vmatpush1.msra.mxu0 %v391
    %1789 = vmatprep.subr.mxu0 %v356
    %1790 = vmatpush1.msra.mxu0 %v355
    %1791 = vmatprep.subr.mxu0 %v320
    %1792 = vmatpush1.msra.mxu0 %v319
    %1793 = vmatprep.subr.mxu0 %v284
    %1794 = vmatpush1.msra.mxu0 %v283
    %1795 = vmatprep.subr.mxu0 %v248
    %1796 = vmatpush1.msra.mxu0 %v247
    %1797 = vmatprep.subr.mxu0 %v212
    %1798 = vmatpush1.msra.mxu0 %v211
    %1799 = vmatprep.subr.mxu0 %v176
    %1800 = vmatpush1.msra.mxu0 %v175
    %1801 = vmatprep.subr.mxu0 0.0
    %1802 = vmatpush2.msra.mxu0 0.0
    %1803 = vmatprep.subr.mxu0 0.0
    %1804 = vmatpush2.msra.mxu0 0.0
    %1805 = vmatprep.subr.mxu0 0.0
    %1806 = vmatpush2.msra.mxu0 0.0
    %1807 = vmatprep.subr.mxu0 0.0
    %1808 = vmatpush2.msra.mxu0 0.0
    %1809 = vmatprep.subr.mxu0 0.0
    %1810 = vmatpush2.msra.mxu0 0.0
    %1811 = vmatprep.subr.mxu0 0.0
    %1812 = vmatpush2.msra.mxu0 0.0
    %1813 = vmatprep.subr.mxu0 0.0
    %1814 = vmatpush2.msra.mxu0 0.0
    %1815 = vmatprep.subr.mxu0 0.0
    %1816 = vmatpush2.msra.mxu0 0.0
    %1817 = vmatprep.subr.mxu0 0.0
    %1818 = vmatpush2.msra.mxu0 0.0
    %1819 = vmatprep.subr.mxu0 0.0
    %1820 = vmatpush2.msra.mxu0 0.0
    %1821 = vmatprep.subr.mxu0 0.0
    %1822 = vmatpush2.msra.mxu0 0.0
    %1823 = vmatprep.subr.mxu0 0.0
    %1824 = vmatpush2.msra.mxu0 0.0
    %1825 = vmatprep.subr.mxu0 0.0
    %1826 = vmatpush2.msra.mxu0 0.0
    %1827 = vmatprep.subr.mxu0 0.0
    %1828 = vmatpush2.msra.mxu0 0.0
    %1829 = vmatprep.subr.mxu0 0.0
    %1830 = vmatpush2.msra.mxu0 0.0
    %1831 = vmatprep.subr.mxu0 0.0
    %1832 = vmatpush2.msra.mxu0 0.0
    %1833 = vmatprep.mubr.f32.mxu0 0.0
    %1834 = vmatmul.mubr.f32.gmra.mxu0 %v150
    %v1835 = vpop.f32.mrf.mxu0
    %v1836 = vadd.f32 %v836, %v1835
    %v1837 = vpop.f32.mrf.mxu0
    %v1838 = vadd.f32 %v840, %v1837
    %1839 = vdwg.mxu0
    %1840 = vmatprep.subr.mxu0 %v718
    %1841 = vmatpush1.msra.mxu0 %v717
    %1842 = vmatprep.subr.mxu0 %v682
    %1843 = vmatpush1.msra.mxu0 %v681
    %1844 = vmatprep.subr.mxu0 %v646
    %1845 = vmatpush1.msra.mxu0 %v645
    %1846 = vmatprep.subr.mxu0 %v610
    %1847 = vmatpush1.msra.mxu0 %v609
    %1848 = vmatprep.subr.mxu0 %v574
    %1849 = vmatpush1.msra.mxu0 %v573
    %1850 = vmatprep.subr.mxu0 %v538
    %1851 = vmatpush1.msra.mxu0 %v537
    %1852 = vmatprep.subr.mxu0 %v502
    %1853 = vmatpush1.msra.mxu0 %v501
    %1854 = vmatprep.subr.mxu0 %v466
    %1855 = vmatpush1.msra.mxu0 %v465
    %1856 = vmatprep.subr.mxu0 %v430
    %1857 = vmatpush1.msra.mxu0 %v429
    %1858 = vmatprep.subr.mxu0 %v394
    %1859 = vmatpush1.msra.mxu0 %v393
    %1860 = vmatprep.subr.mxu0 %v358
    %1861 = vmatpush1.msra.mxu0 %v357
    %1862 = vmatprep.subr.mxu0 %v322
    %1863 = vmatpush1.msra.mxu0 %v321
    %1864 = vmatprep.subr.mxu0 %v286
    %1865 = vmatpush1.msra.mxu0 %v285
    %1866 = vmatprep.subr.mxu0 %v250
    %1867 = vmatpush1.msra.mxu0 %v249
    %1868 = vmatprep.subr.mxu0 %v214
    %1869 = vmatpush1.msra.mxu0 %v213
    %1870 = vmatprep.subr.mxu0 %v178
    %1871 = vmatpush1.msra.mxu0 %v177
    %1872 = vmatprep.subr.mxu0 0.0
    %1873 = vmatpush2.msra.mxu0 0.0
    %1874 = vmatprep.subr.mxu0 0.0
    %1875 = vmatpush2.msra.mxu0 0.0
    %1876 = vmatprep.subr.mxu0 0.0
    %1877 = vmatpush2.msra.mxu0 0.0
    %1878 = vmatprep.subr.mxu0 0.0
    %1879 = vmatpush2.msra.mxu0 0.0
    %1880 = vmatprep.subr.mxu0 0.0
    %1881 = vmatpush2.msra.mxu0 0.0
    %1882 = vmatprep.subr.mxu0 0.0
    %1883 = vmatpush2.msra.mxu0 0.0
    %1884 = vmatprep.subr.mxu0 0.0
    %1885 = vmatpush2.msra.mxu0 0.0
    %1886 = vmatprep.subr.mxu0 0.0
    %1887 = vmatpush2.msra.mxu0 0.0
    %1888 = vmatprep.subr.mxu0 0.0
    %1889 = vmatpush2.msra.mxu0 0.0
    %1890 = vmatprep.subr.mxu0 0.0
    %1891 = vmatpush2.msra.mxu0 0.0
    %1892 = vmatprep.subr.mxu0 0.0
    %1893 = vmatpush2.msra.mxu0 0.0
    %1894 = vmatprep.subr.mxu0 0.0
    %1895 = vmatpush2.msra.mxu0 0.0
    %1896 = vmatprep.subr.mxu0 0.0
    %1897 = vmatpush2.msra.mxu0 0.0
    %1898 = vmatprep.subr.mxu0 0.0
    %1899 = vmatpush2.msra.mxu0 0.0
    %1900 = vmatprep.subr.mxu0 0.0
    %1901 = vmatpush2.msra.mxu0 0.0
    %1902 = vmatprep.subr.mxu0 0.0
    %1903 = vmatpush2.msra.mxu0 0.0
    %1904 = vmatprep.mubr.f32.mxu0 0.0
    %1905 = vmatmul.mubr.f32.gmra.mxu0 %v150
    %v1906 = vpop.f32.mrf.mxu0
    %v1907 = vadd.f32 %v844, %v1906
    %v1908 = vpop.f32.mrf.mxu0
    %v1909 = vadd.f32 %v848, %v1908
    %1910 = vdwg.mxu0
    %1911 = vmatprep.subr.mxu0 %v720
    %1912 = vmatpush1.msra.mxu0 %v719
    %1913 = vmatprep.subr.mxu0 %v684
    %1914 = vmatpush1.msra.mxu0 %v683
    %1915 = vmatprep.subr.mxu0 %v648
    %1916 = vmatpush1.msra.mxu0 %v647
    %1917 = vmatprep.subr.mxu0 %v612
    %1918 = vmatpush1.msra.mxu0 %v611
    %1919 = vmatprep.subr.mxu0 %v576
    %1920 = vmatpush1.msra.mxu0 %v575
    %1921 = vmatprep.subr.mxu0 %v540
    %1922 = vmatpush1.msra.mxu0 %v539
    %1923 = vmatprep.subr.mxu0 %v504
    %1924 = vmatpush1.msra.mxu0 %v503
    %1925 = vmatprep.subr.mxu0 %v468
    %1926 = vmatpush1.msra.mxu0 %v467
    %1927 = vmatprep.subr.mxu0 %v432
    %1928 = vmatpush1.msra.mxu0 %v431
    %1929 = vmatprep.subr.mxu0 %v396
    %1930 = vmatpush1.msra.mxu0 %v395
    %1931 = vmatprep.subr.mxu0 %v360
    %1932 = vmatpush1.msra.mxu0 %v359
    %1933 = vmatprep.subr.mxu0 %v324
    %1934 = vmatpush1.msra.mxu0 %v323
    %1935 = vmatprep.subr.mxu0 %v288
    %1936 = vmatpush1.msra.mxu0 %v287
    %1937 = vmatprep.subr.mxu0 %v252
    %1938 = vmatpush1.msra.mxu0 %v251
    %1939 = vmatprep.subr.mxu0 %v216
    %1940 = vmatpush1.msra.mxu0 %v215
    %1941 = vmatprep.subr.mxu0 %v180
    %1942 = vmatpush1.msra.mxu0 %v179
    %1943 = vmatprep.subr.mxu0 0.0
    %1944 = vmatpush2.msra.mxu0 0.0
    %1945 = vmatprep.subr.mxu0 0.0
    %1946 = vmatpush2.msra.mxu0 0.0
    %1947 = vmatprep.subr.mxu0 0.0
    %1948 = vmatpush2.msra.mxu0 0.0
    %1949 = vmatprep.subr.mxu0 0.0
    %1950 = vmatpush2.msra.mxu0 0.0
    %1951 = vmatprep.subr.mxu0 0.0
    %1952 = vmatpush2.msra.mxu0 0.0
    %1953 = vmatprep.subr.mxu0 0.0
    %1954 = vmatpush2.msra.mxu0 0.0
    %1955 = vmatprep.subr.mxu0 0.0
    %1956 = vmatpush2.msra.mxu0 0.0
    %1957 = vmatprep.subr.mxu0 0.0
    %1958 = vmatpush2.msra.mxu0 0.0
    %1959 = vmatprep.subr.mxu0 0.0
    %1960 = vmatpush2.msra.mxu0 0.0
    %1961 = vmatprep.subr.mxu0 0.0
    %1962 = vmatpush2.msra.mxu0 0.0
    %1963 = vmatprep.subr.mxu0 0.0
    %1964 = vmatpush2.msra.mxu0 0.0
    %1965 = vmatprep.subr.mxu0 0.0
    %1966 = vmatpush2.msra.mxu0 0.0
    %1967 = vmatprep.subr.mxu0 0.0
    %1968 = vmatpush2.msra.mxu0 0.0
    %1969 = vmatprep.subr.mxu0 0.0
    %1970 = vmatpush2.msra.mxu0 0.0
    %1971 = vmatprep.subr.mxu0 0.0
    %1972 = vmatpush2.msra.mxu0 0.0
    %1973 = vmatprep.subr.mxu0 0.0
    %1974 = vmatpush2.msra.mxu0 0.0
    %1975 = vmatprep.mubr.f32.mxu0 0.0
    %1976 = vmatmul.mubr.f32.gmra.mxu0 %v150
    %v1977 = vpop.f32.mrf.mxu0
    %v1978 = vadd.f32 %v852, %v1977
    %v1979 = vpop.f32.mrf.mxu0
    %v1980 = vadd.f32 %v856, %v1979
    %1981 = vdwg.mxu0
    %1982 = vmatprep.subr.mxu0 %v722
    %1983 = vmatpush1.msra.mxu0 %v721
    %1984 = vmatprep.subr.mxu0 %v686
    %1985 = vmatpush1.msra.mxu0 %v685
    %1986 = vmatprep.subr.mxu0 %v650
    %1987 = vmatpush1.msra.mxu0 %v649
    %1988 = vmatprep.subr.mxu0 %v614
    %1989 = vmatpush1.msra.mxu0 %v613
    %1990 = vmatprep.subr.mxu0 %v578
    %1991 = vmatpush1.msra.mxu0 %v577
    %1992 = vmatprep.subr.mxu0 %v542
    %1993 = vmatpush1.msra.mxu0 %v541
    %1994 = vmatprep.subr.mxu0 %v506
    %1995 = vmatpush1.msra.mxu0 %v505
    %1996 = vmatprep.subr.mxu0 %v470
    %1997 = vmatpush1.msra.mxu0 %v469
    %1998 = vmatprep.subr.mxu0 %v434
    %1999 = vmatpush1.msra.mxu0 %v433
    %2000 = vmatprep.subr.mxu0 %v398
    %2001 = vmatpush1.msra.mxu0 %v397
    %2002 = vmatprep.subr.mxu0 %v362
    %2003 = vmatpush1.msra.mxu0 %v361
    %2004 = vmatprep.subr.mxu0 %v326
    %2005 = vmatpush1.msra.mxu0 %v325
    %2006 = vmatprep.subr.mxu0 %v290
    %2007 = vmatpush1.msra.mxu0 %v289
    %2008 = vmatprep.subr.mxu0 %v254
    %2009 = vmatpush1.msra.mxu0 %v253
    %2010 = vmatprep.subr.mxu0 %v218
    %2011 = vmatpush1.msra.mxu0 %v217
    %2012 = vmatprep.subr.mxu0 %v182
    %2013 = vmatpush1.msra.mxu0 %v181
    %2014 = vmatprep.subr.mxu0 0.0
    %2015 = vmatpush2.msra.mxu0 0.0
    %2016 = vmatprep.subr.mxu0 0.0
    %2017 = vmatpush2.msra.mxu0 0.0
    %2018 = vmatprep.subr.mxu0 0.0
    %2019 = vmatpush2.msra.mxu0 0.0
    %2020 = vmatprep.subr.mxu0 0.0
    %2021 = vmatpush2.msra.mxu0 0.0
    %2022 = vmatprep.subr.mxu0 0.0
    %2023 = vmatpush2.msra.mxu0 0.0
    %2024 = vmatprep.subr.mxu0 0.0
    %2025 = vmatpush2.msra.mxu0 0.0
    %2026 = vmatprep.subr.mxu0 0.0
    %2027 = vmatpush2.msra.mxu0 0.0
    %2028 = vmatprep.subr.mxu0 0.0
    %2029 = vmatpush2.msra.mxu0 0.0
    %2030 = vmatprep.subr.mxu0 0.0
    %2031 = vmatpush2.msra.mxu0 0.0
    %2032 = vmatprep.subr.mxu0 0.0
    %2033 = vmatpush2.msra.mxu0 0.0
    %2034 = vmatprep.subr.mxu0 0.0
    %2035 = vmatpush2.msra.mxu0 0.0
    %2036 = vmatprep.subr.mxu0 0.0
    %2037 = vmatpush2.msra.mxu0 0.0
    %2038 = vmatprep.subr.mxu0 0.0
    %2039 = vmatpush2.msra.mxu0 0.0
    %2040 = vmatprep.subr.mxu0 0.0
    %2041 = vmatpush2.msra.mxu0 0.0
    %2042 = vmatprep.subr.mxu0 0.0
    %2043 = vmatpush2.msra.mxu0 0.0
    %2044 = vmatprep.subr.mxu0 0.0
    %2045 = vmatpush2.msra.mxu0 0.0
    %2046 = vmatprep.mubr.f32.mxu0 0.0
    %2047 = vmatmul.mubr.f32.gmra.mxu0 %v150
    %v2048 = vpop.f32.mrf.mxu0
    %v2049 = vadd.f32 %v860, %v2048
    %v2050 = vpop.f32.mrf.mxu0
    %v2051 = vadd.f32 %v864, %v2050
    %2052 = vdwg.mxu0
    %2053 = vmatprep.subr.mxu0 %v724
    %2054 = vmatpush1.msra.mxu0 %v723
    %2055 = vmatprep.subr.mxu0 %v688
    %2056 = vmatpush1.msra.mxu0 %v687
    %2057 = vmatprep.subr.mxu0 %v652
    %2058 = vmatpush1.msra.mxu0 %v651
    %2059 = vmatprep.subr.mxu0 %v616
    %2060 = vmatpush1.msra.mxu0 %v615
    %2061 = vmatprep.subr.mxu0 %v580
    %2062 = vmatpush1.msra.mxu0 %v579
    %2063 = vmatprep.subr.mxu0 %v544
    %2064 = vmatpush1.msra.mxu0 %v543
    %2065 = vmatprep.subr.mxu0 %v508
    %2066 = vmatpush1.msra.mxu0 %v507
    %2067 = vmatprep.subr.mxu0 %v472
    %2068 = vmatpush1.msra.mxu0 %v471
    %2069 = vmatprep.subr.mxu0 %v436
    %2070 = vmatpush1.msra.mxu0 %v435
    %2071 = vmatprep.subr.mxu0 %v400
    %2072 = vmatpush1.msra.mxu0 %v399
    %2073 = vmatprep.subr.mxu0 %v364
    %2074 = vmatpush1.msra.mxu0 %v363
    %2075 = vmatprep.subr.mxu0 %v328
    %2076 = vmatpush1.msra.mxu0 %v327
    %2077 = vmatprep.subr.mxu0 %v292
    %2078 = vmatpush1.msra.mxu0 %v291
    %2079 = vmatprep.subr.mxu0 %v256
    %2080 = vmatpush1.msra.mxu0 %v255
    %2081 = vmatprep.subr.mxu0 %v220
    %2082 = vmatpush1.msra.mxu0 %v219
    %2083 = vmatprep.subr.mxu0 %v184
    %2084 = vmatpush1.msra.mxu0 %v183
    %2085 = vmatprep.subr.mxu0 0.0
    %2086 = vmatpush2.msra.mxu0 0.0
    %2087 = vmatprep.subr.mxu0 0.0
    %2088 = vmatpush2.msra.mxu0 0.0
    %2089 = vmatprep.subr.mxu0 0.0
    %2090 = vmatpush2.msra.mxu0 0.0
    %2091 = vmatprep.subr.mxu0 0.0
    %2092 = vmatpush2.msra.mxu0 0.0
    %2093 = vmatprep.subr.mxu0 0.0
    %2094 = vmatpush2.msra.mxu0 0.0
    %2095 = vmatprep.subr.mxu0 0.0
    %2096 = vmatpush2.msra.mxu0 0.0
    %2097 = vmatprep.subr.mxu0 0.0
    %2098 = vmatpush2.msra.mxu0 0.0
    %2099 = vmatprep.subr.mxu0 0.0
    %2100 = vmatpush2.msra.mxu0 0.0
    %2101 = vmatprep.subr.mxu0 0.0
    %2102 = vmatpush2.msra.mxu0 0.0
    %2103 = vmatprep.subr.mxu0 0.0
    %2104 = vmatpush2.msra.mxu0 0.0
    %2105 = vmatprep.subr.mxu0 0.0
    %2106 = vmatpush2.msra.mxu0 0.0
    %2107 = vmatprep.subr.mxu0 0.0
    %2108 = vmatpush2.msra.mxu0 0.0
    %2109 = vmatprep.subr.mxu0 0.0
    %2110 = vmatpush2.msra.mxu0 0.0
    %2111 = vmatprep.subr.mxu0 0.0
    %2112 = vmatpush2.msra.mxu0 0.0
    %2113 = vmatprep.subr.mxu0 0.0
    %2114 = vmatpush2.msra.mxu0 0.0
    %2115 = vmatprep.subr.mxu0 0.0
    %2116 = vmatpush2.msra.mxu0 0.0
    %2117 = vmatprep.mubr.f32.mxu0 0.0
    %2118 = vmatmul.mubr.f32.gmra.mxu0 %v150
    %v2119 = vpop.f32.mrf.mxu0
    %v2120 = vadd.f32 %v868, %v2119
    %v2121 = vpop.f32.mrf.mxu0
    %v2122 = vadd.f32 %v872, %v2121
    %2123 = vdwg.mxu0
    %2124 = vmatprep.subr.mxu0 %v726
    %2125 = vmatpush1.msra.mxu0 %v725
    %2126 = vmatprep.subr.mxu0 %v690
    %2127 = vmatpush1.msra.mxu0 %v689
    %2128 = vmatprep.subr.mxu0 %v654
    %2129 = vmatpush1.msra.mxu0 %v653
    %2130 = vmatprep.subr.mxu0 %v618
    %2131 = vmatpush1.msra.mxu0 %v617
    %2132 = vmatprep.subr.mxu0 %v582
    %2133 = vmatpush1.msra.mxu0 %v581
    %2134 = vmatprep.subr.mxu0 %v546
    %2135 = vmatpush1.msra.mxu0 %v545
    %2136 = vmatprep.subr.mxu0 %v510
    %2137 = vmatpush1.msra.mxu0 %v509
    %2138 = vmatprep.subr.mxu0 %v474
    %2139 = vmatpush1.msra.mxu0 %v473
    %2140 = vmatprep.subr.mxu0 %v438
    %2141 = vmatpush1.msra.mxu0 %v437
    %2142 = vmatprep.subr.mxu0 %v402
    %2143 = vmatpush1.msra.mxu0 %v401
    %2144 = vmatprep.subr.mxu0 %v366
    %2145 = vmatpush1.msra.mxu0 %v365
    %2146 = vmatprep.subr.mxu0 %v330
    %2147 = vmatpush1.msra.mxu0 %v329
    %2148 = vmatprep.subr.mxu0 %v294
    %2149 = vmatpush1.msra.mxu0 %v293
    %2150 = vmatprep.subr.mxu0 %v258
    %2151 = vmatpush1.msra.mxu0 %v257
    %2152 = vmatprep.subr.mxu0 %v222
    %2153 = vmatpush1.msra.mxu0 %v221
    %2154 = vmatprep.subr.mxu0 %v186
    %2155 = vmatpush1.msra.mxu0 %v185
    %2156 = vmatprep.subr.mxu0 0.0
    %2157 = vmatpush2.msra.mxu0 0.0
    %2158 = vmatprep.subr.mxu0 0.0
    %2159 = vmatpush2.msra.mxu0 0.0
    %2160 = vmatprep.subr.mxu0 0.0
    %2161 = vmatpush2.msra.mxu0 0.0
    %2162 = vmatprep.subr.mxu0 0.0
    %2163 = vmatpush2.msra.mxu0 0.0
    %2164 = vmatprep.subr.mxu0 0.0
    %2165 = vmatpush2.msra.mxu0 0.0
    %2166 = vmatprep.subr.mxu0 0.0
    %2167 = vmatpush2.msra.mxu0 0.0
    %2168 = vmatprep.subr.mxu0 0.0
    %2169 = vmatpush2.msra.mxu0 0.0
    %2170 = vmatprep.subr.mxu0 0.0
    %2171 = vmatpush2.msra.mxu0 0.0
    %2172 = vmatprep.subr.mxu0 0.0
    %2173 = vmatpush2.msra.mxu0 0.0
    %2174 = vmatprep.subr.mxu0 0.0
    %2175 = vmatpush2.msra.mxu0 0.0
    %2176 = vmatprep.subr.mxu0 0.0
    %2177 = vmatpush2.msra.mxu0 0.0
    %2178 = vmatprep.subr.mxu0 0.0
    %2179 = vmatpush2.msra.mxu0 0.0
    %2180 = vmatprep.subr.mxu0 0.0
    %2181 = vmatpush2.msra.mxu0 0.0
    %2182 = vmatprep.subr.mxu0 0.0
    %2183 = vmatpush2.msra.mxu0 0.0
    %2184 = vmatprep.subr.mxu0 0.0
    %2185 = vmatpush2.msra.mxu0 0.0
    %2186 = vmatprep.subr.mxu0 0.0
    %2187 = vmatpush2.msra.mxu0 0.0
    %2188 = vmatprep.mubr.f32.mxu0 0.0
    %2189 = vmatmul.mubr.f32.gmra.mxu0 %v150
    %v2190 = vpop.f32.mrf.mxu0
    %v2191 = vadd.f32 %v876, %v2190
    %v2192 = vpop.f32.mrf.mxu0
    %v2193 = vadd.f32 %v880, %v2192
    %2194 = vdwg.mxu0
    %2195 = vst [vmem:[#allocation2] sm:$0xff] %v984
    %2196 = vst [vmem:[#allocation2 + $0x8] sm:$0xff] %v986
    %2197 = vst [vmem:[#allocation2 + $0x10] sm:$0xff] %v1055
    %2198 = vst [vmem:[#allocation2 + $0x18] sm:$0xff] %v1057
    %2199 = vst [vmem:[#allocation2 + $0x20] sm:$0xff] %v1126
    %2200 = vst [vmem:[#allocation2 + $0x28] sm:$0xff] %v1128
    %2201 = vst [vmem:[#allocation2 + $0x30] sm:$0xff] %v1197
    %2202 = vst [vmem:[#allocation2 + $0x38] sm:$0xff] %v1199
    %2203 = vst [vmem:[#allocation2 + $0x40] sm:$0xff] %v1268
    %2204 = vst [vmem:[#allocation2 + $0x48] sm:$0xff] %v1270
    %2205 = vst [vmem:[#allocation2 + $0x50] sm:$0xff] %v1339
    %2206 = vst [vmem:[#allocation2 + $0x58] sm:$0xff] %v1341
    %2207 = vst [vmem:[#allocation2 + $0x60] sm:$0xff] %v1410
    %2208 = vst [vmem:[#allocation2 + $0x68] sm:$0xff] %v1412
    %2209 = vst [vmem:[#allocation2 + $0x70] sm:$0xff] %v1481
    %2210 = vst [vmem:[#allocation2 + $0x78] sm:$0xff] %v1483
    %2211 = vst [vmem:[#allocation2 + $0x80] sm:$0xff] %v1552
    %2212 = vst [vmem:[#allocation2 + $0x88] sm:$0xff] %v1554
    %2213 = vst [vmem:[#allocation2 + $0x90] sm:$0xff] %v1623
    %2214 = vst [vmem:[#allocation2 + $0x98] sm:$0xff] %v1625
    %2215 = vst [vmem:[#allocation2 + $0xa0] sm:$0xff] %v1694
    %2216 = vst [vmem:[#allocation2 + $0xa8] sm:$0xff] %v1696
    %2217 = vst [vmem:[#allocation2 + $0xb0] sm:$0xff] %v1765
    %2218 = vst [vmem:[#allocation2 + $0xb8] sm:$0xff] %v1767
    %2219 = vst [vmem:[#allocation2 + $0xc0] sm:$0xff] %v1836
    %2220 = vst [vmem:[#allocation2 + $0xc8] sm:$0xff] %v1838
    %2221 = vst [vmem:[#allocation2 + $0xd0] sm:$0xff] %v1907
    %2222 = vst [vmem:[#allocation2 + $0xd8] sm:$0xff] %v1909
    %2223 = vst [vmem:[#allocation2 + $0xe0] sm:$0xff] %v1978
    %2224 = vst [vmem:[#allocation2 + $0xe8] sm:$0xff] %v1980
    %2225 = vst [vmem:[#allocation2 + $0xf0] sm:$0xff] %v2049
    %2226 = vst [vmem:[#allocation2 + $0xf8] sm:$0xff] %v2051
    %2227 = vst [vmem:[#allocation2 + $0x100] sm:$0xff] %v2120
    %2228 = vst [vmem:[#allocation2 + $0x108] sm:$0xff] %v2122
    %2229 = vst [vmem:[#allocation2 + $0x110] sm:$0xff] %v2191
    %2230 = vst [vmem:[#allocation2 + $0x118] sm:$0xff] %v2193
    %v2231 = vld [vmem:[#allocation8] sm:$0x7]
    %v2233 = vlaneseq
    %v2234 = vshrl.u32 %v2233, 7
    %v2235 = vsub.s32 0, %v2234
    %v2236 = vrot.slane %v2231, %v2235
    %v2237 = vlaneseq
    %v2238 = vshrl.u32 %v2237, 7
    %v2239 = vsub.s32 1, %v2238
    %v2240 = vrot.slane %v2231, %v2239
    %v2241 = vlaneseq
    %v2242 = vshrl.u32 %v2241, 7
    %v2243 = vsub.s32 2, %v2242
    %v2244 = vrot.slane %v2231, %v2243
    %v2248 = vld [vmem:[#allocation11] sm:$0x7]
    %v2250 = vlaneseq
    %v2251 = vshrl.u32 %v2250, 7
    %v2252 = vsub.s32 0, %v2251
    %v2253 = vrot.slane %v2248, %v2252
    %v2254 = vlaneseq
    %v2255 = vshrl.u32 %v2254, 7
    %v2256 = vsub.s32 1, %v2255
    %v2257 = vrot.slane %v2248, %v2256
    %v2258 = vlaneseq
    %v2259 = vshrl.u32 %v2258, 7
    %v2260 = vsub.s32 2, %v2259
    %v2261 = vrot.slane %v2248, %v2260
    %v2265 = vld [vmem:[#allocation2] sm:$0xff]
    %v2266 = vld [vmem:[#allocation2 + $0x8] sm:$0xff]
    %v2267 = vld [vmem:[#allocation2 + $0x10] sm:$0xff]
    %v2268 = vld [vmem:[#allocation7] sm:$0xff]
    %v2269 = vld [vmem:[#allocation7 + $0x8] sm:$0xf]
    %v2270 = vld [vmem:[#allocation7 + $0xc] sm:$0xff]
    %v2271 = vld [vmem:[#allocation7 + $0x14] sm:$0xf]
    %v2272 = vld [vmem:[#allocation7 + $0x18] sm:$0xff]
    %v2273 = vld [vmem:[#allocation7 + $0x20] sm:$0xf]
    %v2274 = vld [vmem:[#allocation7 + $0x24] sm:$0xff]
    %v2275 = vld [vmem:[#allocation7 + $0x2c] sm:$0xf]
    %v2276 = vld [vmem:[#allocation7 + $0x30] sm:$0xff]
    %v2277 = vld [vmem:[#allocation7 + $0x38] sm:$0xf]
    %v2278 = vld [vmem:[#allocation7 + $0x3c] sm:$0xff]
    %v2279 = vld [vmem:[#allocation7 + $0x44] sm:$0xf]
    %v2280 = vld [vmem:[#allocation7 + $0x48] sm:$0xff]
    %v2281 = vld [vmem:[#allocation7 + $0x50] sm:$0xf]
    %v2282 = vld [vmem:[#allocation7 + $0x54] sm:$0xff]
    %v2283 = vld [vmem:[#allocation7 + $0x5c] sm:$0xf]
    %v2284 = vld [vmem:[#allocation7 + $0x60] sm:$0xff]
    %v2285 = vld [vmem:[#allocation7 + $0x68] sm:$0xf]
    %v2286 = vld [vmem:[#allocation7 + $0x6c] sm:$0xff]
    %v2287 = vld [vmem:[#allocation7 + $0x74] sm:$0xf]
    %v2288 = vld [vmem:[#allocation7 + $0x78] sm:$0xff]
    %v2289 = vld [vmem:[#allocation7 + $0x80] sm:$0xf]
    %v2290 = vld [vmem:[#allocation7 + $0x84] sm:$0xff]
    %v2291 = vld [vmem:[#allocation7 + $0x8c] sm:$0xf]
    %v2292 = vld [vmem:[#allocation7 + $0x90] sm:$0xff]
    %v2293 = vld [vmem:[#allocation7 + $0x98] sm:$0xf]
    %v2294 = vld [vmem:[#allocation7 + $0x9c] sm:$0xff]
    %v2295 = vld [vmem:[#allocation7 + $0xa4] sm:$0xf]
    %v2296 = vld [vmem:[#allocation7 + $0xa8] sm:$0xff]
    %v2297 = vld [vmem:[#allocation7 + $0xb0] sm:$0xf]
    %v2298 = vld [vmem:[#allocation7 + $0xb4] sm:$0xff]
    %v2299 = vld [vmem:[#allocation7 + $0xbc] sm:$0xf]
    %v2332 = vunpack.c.l.b16 %v2268
    %v2333 = vunpack.c.h.b16 %v2268
    %v2334 = vunpack.c.l.b16 %v2269
    %v2335 = vunpack.c.l.b16 %v2270
    %v2336 = vunpack.c.h.b16 %v2270
    %v2337 = vunpack.c.l.b16 %v2271
    %v2338 = vunpack.c.l.b16 %v2272
    %v2339 = vunpack.c.h.b16 %v2272
    %v2340 = vunpack.c.l.b16 %v2273
    %v2341 = vunpack.c.l.b16 %v2274
    %v2342 = vunpack.c.h.b16 %v2274
    %v2343 = vunpack.c.l.b16 %v2275
    %v2344 = vunpack.c.l.b16 %v2276
    %v2345 = vunpack.c.h.b16 %v2276
    %v2346 = vunpack.c.l.b16 %v2277
    %v2347 = vunpack.c.l.b16 %v2278
    %v2348 = vunpack.c.h.b16 %v2278
    %v2349 = vunpack.c.l.b16 %v2279
    %v2350 = vunpack.c.l.b16 %v2280
    %v2351 = vunpack.c.h.b16 %v2280
    %v2352 = vunpack.c.l.b16 %v2281
    %v2353 = vunpack.c.l.b16 %v2282
    %v2354 = vunpack.c.h.b16 %v2282
    %v2355 = vunpack.c.l.b16 %v2283
    %v2356 = vunpack.c.l.b16 %v2284
    %v2357 = vunpack.c.h.b16 %v2284
    %v2358 = vunpack.c.l.b16 %v2285
    %v2359 = vunpack.c.l.b16 %v2286
    %v2360 = vunpack.c.h.b16 %v2286
    %v2361 = vunpack.c.l.b16 %v2287
    %v2362 = vunpack.c.l.b16 %v2288
    %v2363 = vunpack.c.h.b16 %v2288
    %v2364 = vunpack.c.l.b16 %v2289
    %v2365 = vunpack.c.l.b16 %v2290
    %v2366 = vunpack.c.h.b16 %v2290
    %v2367 = vunpack.c.l.b16 %v2291
    %v2368 = vunpack.c.l.b16 %v2292
    %v2369 = vunpack.c.h.b16 %v2292
    %v2370 = vunpack.c.l.b16 %v2293
    %v2371 = vunpack.c.l.b16 %v2294
    %v2372 = vunpack.c.h.b16 %v2294
    %v2373 = vunpack.c.l.b16 %v2295
    %v2374 = vunpack.c.l.b16 %v2296
    %v2375 = vunpack.c.h.b16 %v2296
    %v2376 = vunpack.c.l.b16 %v2297
    %v2377 = vunpack.c.l.b16 %v2298
    %v2378 = vunpack.c.h.b16 %v2298
    %v2379 = vunpack.c.l.b16 %v2299
    %v2380 = vpack.c.b16 %v2335, %v2332
    %v2381 = vpack.c.b16 %v2336, %v2333
    %v2382 = vpack.c.b16 %v2337, %v2334
    %v2383 = vpack.c.b16 %v2341, %v2338
    %v2384 = vpack.c.b16 %v2342, %v2339
    %v2385 = vpack.c.b16 %v2343, %v2340
    %v2386 = vpack.c.b16 %v2347, %v2344
    %v2387 = vpack.c.b16 %v2348, %v2345
    %v2388 = vpack.c.b16 %v2349, %v2346
    %v2389 = vpack.c.b16 %v2353, %v2350
    %v2390 = vpack.c.b16 %v2354, %v2351
    %v2391 = vpack.c.b16 %v2355, %v2352
    %v2392 = vpack.c.b16 %v2359, %v2356
    %v2393 = vpack.c.b16 %v2360, %v2357
    %v2394 = vpack.c.b16 %v2361, %v2358
    %v2395 = vpack.c.b16 %v2365, %v2362
    %v2396 = vpack.c.b16 %v2366, %v2363
    %v2397 = vpack.c.b16 %v2367, %v2364
    %v2398 = vpack.c.b16 %v2371, %v2368
    %v2399 = vpack.c.b16 %v2372, %v2369
    %v2400 = vpack.c.b16 %v2373, %v2370
    %v2401 = vpack.c.b16 %v2377, %v2374
    %v2402 = vpack.c.b16 %v2378, %v2375
    %v2403 = vpack.c.b16 %v2379, %v2376
    %2428 = vmatprep.subr.bf16.mxu0 %v2402
    %2429 = vmatpush1.bf16.msra.mxu0 %v2401
    %2430 = vmatprep.subr.bf16.mxu0 %v2399
    %2431 = vmatpush1.bf16.msra.mxu0 %v2398
    %2432 = vmatprep.subr.bf16.mxu0 %v2396
    %2433 = vmatpush1.bf16.msra.mxu0 %v2395
    %2434 = vmatprep.subr.bf16.mxu0 %v2393
    %2435 = vmatpush1.bf16.msra.mxu0 %v2392
    %2436 = vmatprep.subr.bf16.mxu0 %v2390
    %2437 = vmatpush1.bf16.msra.mxu0 %v2389
    %2438 = vmatprep.subr.bf16.mxu0 %v2387
    %2439 = vmatpush1.bf16.msra.mxu0 %v2386
    %2440 = vmatprep.subr.bf16.mxu0 %v2384
    %2441 = vmatpush1.bf16.msra.mxu0 %v2383
    %2442 = vmatprep.subr.bf16.mxu0 %v2381
    %2443 = vmatpush1.bf16.msra.mxu0 %v2380
    %2444 = vmatprep.subr.bf16.mxu0 0
    %2445 = vmatpush2.bf16.msra.mxu0 0
    %2446 = vmatprep.subr.bf16.mxu0 0
    %2447 = vmatpush2.bf16.msra.mxu0 0
    %2448 = vmatprep.subr.bf16.mxu0 0
    %2449 = vmatpush2.bf16.msra.mxu0 0
    %2450 = vmatprep.subr.bf16.mxu0 0
    %2451 = vmatpush2.bf16.msra.mxu0 0
    %2452 = vmatprep.subr.bf16.mxu0 0
    %2453 = vmatpush2.bf16.msra.mxu0 0
    %2454 = vmatprep.subr.bf16.mxu0 0
    %2455 = vmatpush2.bf16.msra.mxu0 0
    %2456 = vmatprep.subr.bf16.mxu0 0
    %2457 = vmatpush2.bf16.msra.mxu0 0
    %2458 = vmatprep.subr.bf16.mxu0 0
    %2459 = vmatpush2.bf16.msra.mxu0 0
    %2460 = vmatprep.mubr.bf16.mxu0 0
    %2461 = vmatmul.mubr.bf16.gmra.mxu0 0
    %v2462 = vpop.f32.mrf.mxu0
    %v2463 = vadd.f32 %v2236, %v2462
    %v2464 = vpop.f32.mrf.mxu0
    %v2465 = vadd.f32 %v2240, %v2464
    %v2466 = vpop.f32.mrf.mxu0
    %v2467 = vpop.f32.mrf.mxu0
    %2468 = vdwg.mxu0
    %2469 = vmatprep.subr.bf16.mxu0 0
    %2470 = vmatpush1.bf16.msra.mxu0 %v2403
    %2471 = vmatprep.subr.bf16.mxu0 0
    %2472 = vmatpush1.bf16.msra.mxu0 %v2400
    %2473 = vmatprep.subr.bf16.mxu0 0
    %2474 = vmatpush1.bf16.msra.mxu0 %v2397
    %2475 = vmatprep.subr.bf16.mxu0 0
    %2476 = vmatpush1.bf16.msra.mxu0 %v2394
    %2477 = vmatprep.subr.bf16.mxu0 0
    %2478 = vmatpush1.bf16.msra.mxu0 %v2391
    %2479 = vmatprep.subr.bf16.mxu0 0
    %2480 = vmatpush1.bf16.msra.mxu0 %v2388
    %2481 = vmatprep.subr.bf16.mxu0 0
    %2482 = vmatpush1.bf16.msra.mxu0 %v2385
    %2483 = vmatprep.subr.bf16.mxu0 0
    %2484 = vmatpush1.bf16.msra.mxu0 %v2382
    %2485 = vmatprep.subr.bf16.mxu0 0
    %2486 = vmatpush2.bf16.msra.mxu0 0
    %2487 = vmatprep.subr.bf16.mxu0 0
    %2488 = vmatpush2.bf16.msra.mxu0 0
    %2489 = vmatprep.subr.bf16.mxu0 0
    %2490 = vmatpush2.bf16.msra.mxu0 0
    %2491 = vmatprep.subr.bf16.mxu0 0
    %2492 = vmatpush2.bf16.msra.mxu0 0
    %2493 = vmatprep.subr.bf16.mxu0 0
    %2494 = vmatpush2.bf16.msra.mxu0 0
    %2495 = vmatprep.subr.bf16.mxu0 0
    %2496 = vmatpush2.bf16.msra.mxu0 0
    %2497 = vmatprep.subr.bf16.mxu0 0
    %2498 = vmatpush2.bf16.msra.mxu0 0
    %2499 = vmatprep.subr.bf16.mxu0 0
    %2500 = vmatpush2.bf16.msra.mxu0 0
    %2501 = vmatprep.mubr.bf16.mxu0 0
    %2502 = vmatmul.mubr.bf16.gmra.mxu0 0
    %v2503 = vpop.f32.mrf.mxu0
    %v2504 = vadd.f32 %v2244, %v2503
    %v2505 = vpop.f32.mrf.mxu0
    %v2506 = vpop.f32.mrf.mxu0
    %v2507 = vpop.f32.mrf.mxu0
    %2508 = vdwg.mxu0
    %v2509 = vadd.f32 %v2265, %v2463
    %v2510 = vsub.f32 0.0, %v2509
    %v2511 = vmul.f32 %v2510, 1.442695
    %v2512 = vpow.pop %v2511
    %v2513 = vadd.f32 %v2512, 1.0
    %v2514 = vrcp.pop %v2513
    %v2515 = vadd.f32 %v2266, %v2465
    %v2516 = vsub.f32 0.0, %v2515
    %v2517 = vmul.f32 %v2516, 1.442695
    %v2518 = vpow.pop %v2517
    %v2519 = vadd.f32 %v2518, 1.0
    %v2520 = vrcp.pop %v2519
    %v2521 = vmul.f32 %v2514, %v2504
    %v2522 = vadd.f32 %v2267, %v2521
    %v2523 = vtanh.pop %v2522
    %v2524 = vsub.f32 1.0, %v2520
    %v2525 = vmul.f32 %v2524, %v2523
    %v2526 = vmul.f32 %v2520, 0.0
    %v2527 = vadd.f32 %v2525, %v2526
    %v2528 = vld [vmem:[#allocation2 + $0x18] sm:$0xff]
    %v2529 = vld [vmem:[#allocation2 + $0x20] sm:$0xff]
    %v2530 = vld [vmem:[#allocation2 + $0x28] sm:$0xff]
    %v2531 = vpack.c.bf16 %v2527, %v2527
    %2532 = vmatprep.subr.bf16.mxu0 %v2402
    %2533 = vmatpush1.bf16.msra.mxu0 %v2401
    %2534 = vmatprep.subr.bf16.mxu0 %v2399
    %2535 = vmatpush1.bf16.msra.mxu0 %v2398
    %2536 = vmatprep.subr.bf16.mxu0 %v2396
    %2537 = vmatpush1.bf16.msra.mxu0 %v2395
    %2538 = vmatprep.subr.bf16.mxu0 %v2393
    %2539 = vmatpush1.bf16.msra.mxu0 %v2392
    %2540 = vmatprep.subr.bf16.mxu0 %v2390
    %2541 = vmatpush1.bf16.msra.mxu0 %v2389
    %2542 = vmatprep.subr.bf16.mxu0 %v2387
    %2543 = vmatpush1.bf16.msra.mxu0 %v2386
    %2544 = vmatprep.subr.bf16.mxu0 %v2384
    %2545 = vmatpush1.bf16.msra.mxu0 %v2383
    %2546 = vmatprep.subr.bf16.mxu0 %v2381
    %2547 = vmatpush1.bf16.msra.mxu0 %v2380
    %2548 = vmatprep.subr.bf16.mxu0 0
    %2549 = vmatpush2.bf16.msra.mxu0 0
    %2550 = vmatprep.subr.bf16.mxu0 0
    %2551 = vmatpush2.bf16.msra.mxu0 0
    %2552 = vmatprep.subr.bf16.mxu0 0
    %2553 = vmatpush2.bf16.msra.mxu0 0
    %2554 = vmatprep.subr.bf16.mxu0 0
    %2555 = vmatpush2.bf16.msra.mxu0 0
    %2556 = vmatprep.subr.bf16.mxu0 0
    %2557 = vmatpush2.bf16.msra.mxu0 0
    %2558 = vmatprep.subr.bf16.mxu0 0
    %2559 = vmatpush2.bf16.msra.mxu0 0
    %2560 = vmatprep.subr.bf16.mxu0 0
    %2561 = vmatpush2.bf16.msra.mxu0 0
    %2562 = vmatprep.subr.bf16.mxu0 0
    %2563 = vmatpush2.bf16.msra.mxu0 0
    %2564 = vmatprep.mubr.bf16.mxu0 0
    %2565 = vmatmul.mubr.bf16.gmra.mxu0 %v2531
    %v2566 = vpop.f32.mrf.mxu0
    %v2567 = vadd.f32 %v2236, %v2566
    %v2568 = vpop.f32.mrf.mxu0
    %v2569 = vadd.f32 %v2240, %v2568
    %v2570 = vpop.f32.mrf.mxu0
    %v2571 = vpop.f32.mrf.mxu0
    %2572 = vdwg.mxu0
    %2573 = vmatprep.subr.bf16.mxu0 0
    %2574 = vmatpush1.bf16.msra.mxu0 %v2403
    %2575 = vmatprep.subr.bf16.mxu0 0
    %2576 = vmatpush1.bf16.msra.mxu0 %v2400
    %2577 = vmatprep.subr.bf16.mxu0 0
    %2578 = vmatpush1.bf16.msra.mxu0 %v2397
    %2579 = vmatprep.subr.bf16.mxu0 0
    %2580 = vmatpush1.bf16.msra.mxu0 %v2394
    %2581 = vmatprep.subr.bf16.mxu0 0
    %2582 = vmatpush1.bf16.msra.mxu0 %v2391
    %2583 = vmatprep.subr.bf16.mxu0 0
    %2584 = vmatpush1.bf16.msra.mxu0 %v2388
    %2585 = vmatprep.subr.bf16.mxu0 0
    %2586 = vmatpush1.bf16.msra.mxu0 %v2385
    %2587 = vmatprep.subr.bf16.mxu0 0
    %2588 = vmatpush1.bf16.msra.mxu0 %v2382
    %2589 = vmatprep.subr.bf16.mxu0 0
    %2590 = vmatpush2.bf16.msra.mxu0 0
    %2591 = vmatprep.subr.bf16.mxu0 0
    %2592 = vmatpush2.bf16.msra.mxu0 0
    %2593 = vmatprep.subr.bf16.mxu0 0
    %2594 = vmatpush2.bf16.msra.mxu0 0
    %2595 = vmatprep.subr.bf16.mxu0 0
    %2596 = vmatpush2.bf16.msra.mxu0 0
    %2597 = vmatprep.subr.bf16.mxu0 0
    %2598 = vmatpush2.bf16.msra.mxu0 0
    %2599 = vmatprep.subr.bf16.mxu0 0
    %2600 = vmatpush2.bf16.msra.mxu0 0
    %2601 = vmatprep.subr.bf16.mxu0 0
    %2602 = vmatpush2.bf16.msra.mxu0 0
    %2603 = vmatprep.subr.bf16.mxu0 0
    %2604 = vmatpush2.bf16.msra.mxu0 0
    %2605 = vmatprep.mubr.bf16.mxu0 0
    %2606 = vmatmul.mubr.bf16.gmra.mxu0 %v2531
    %v2607 = vpop.f32.mrf.mxu0
    %v2608 = vadd.f32 %v2244, %v2607
    %v2609 = vpop.f32.mrf.mxu0
    %v2610 = vpop.f32.mrf.mxu0
    %v2611 = vpop.f32.mrf.mxu0
    %2612 = vdwg.mxu0
    %v2613 = vadd.f32 %v2528, %v2567
    %v2614 = vsub.f32 0.0, %v2613
    %v2615 = vmul.f32 %v2614, 1.442695
    %v2616 = vpow.pop %v2615
    %v2617 = vadd.f32 %v2616, 1.0
    %v2618 = vrcp.pop %v2617
    %v2619 = vadd.f32 %v2529, %v2569
    %v2620 = vsub.f32 0.0, %v2619
    %v2621 = vmul.f32 %v2620, 1.442695
    %v2622 = vpow.pop %v2621
    %v2623 = vadd.f32 %v2622, 1.0
    %v2624 = vrcp.pop %v2623
    %v2625 = vmul.f32 %v2618, %v2608
    %v2626 = vadd.f32 %v2530, %v2625
    %v2627 = vtanh.pop %v2626
    %v2628 = vsub.f32 1.0, %v2624
    %v2629 = vmul.f32 %v2628, %v2627
    %v2630 = vmul.f32 %v2624, %v2527
    %v2631 = vadd.f32 %v2629, %v2630
    %v2632 = vld [vmem:[#allocation2 + $0x30] sm:$0xff]
    %v2633 = vld [vmem:[#allocation2 + $0x38] sm:$0xff]
    %v2634 = vld [vmem:[#allocation2 + $0x40] sm:$0xff]
    %v2635 = vpack.c.bf16 %v2631, %v2631
    %2636 = vmatprep.subr.bf16.mxu0 %v2402
    %2637 = vmatpush1.bf16.msra.mxu0 %v2401
    %2638 = vmatprep.subr.bf16.mxu0 %v2399
    %2639 = vmatpush1.bf16.msra.mxu0 %v2398
    %2640 = vmatprep.subr.bf16.mxu0 %v2396
    %2641 = vmatpush1.bf16.msra.mxu0 %v2395
    %2642 = vmatprep.subr.bf16.mxu0 %v2393
    %2643 = vmatpush1.bf16.msra.mxu0 %v2392
    %2644 = vmatprep.subr.bf16.mxu0 %v2390
    %2645 = vmatpush1.bf16.msra.mxu0 %v2389
    %2646 = vmatprep.subr.bf16.mxu0 %v2387
    %2647 = vmatpush1.bf16.msra.mxu0 %v2386
    %2648 = vmatprep.subr.bf16.mxu0 %v2384
    %2649 = vmatpush1.bf16.msra.mxu0 %v2383
    %2650 = vmatprep.subr.bf16.mxu0 %v2381
    %2651 = vmatpush1.bf16.msra.mxu0 %v2380
    %2652 = vmatprep.subr.bf16.mxu0 0
    %2653 = vmatpush2.bf16.msra.mxu0 0
    %2654 = vmatprep.subr.bf16.mxu0 0
    %2655 = vmatpush2.bf16.msra.mxu0 0
    %2656 = vmatprep.subr.bf16.mxu0 0
    %2657 = vmatpush2.bf16.msra.mxu0 0
    %2658 = vmatprep.subr.bf16.mxu0 0
    %2659 = vmatpush2.bf16.msra.mxu0 0
    %2660 = vmatprep.subr.bf16.mxu0 0
    %2661 = vmatpush2.bf16.msra.mxu0 0
    %2662 = vmatprep.subr.bf16.mxu0 0
    %2663 = vmatpush2.bf16.msra.mxu0 0
    %2664 = vmatprep.subr.bf16.mxu0 0
    %2665 = vmatpush2.bf16.msra.mxu0 0
    %2666 = vmatprep.subr.bf16.mxu0 0
    %2667 = vmatpush2.bf16.msra.mxu0 0
    %2668 = vmatprep.mubr.bf16.mxu0 0
    %2669 = vmatmul.mubr.bf16.gmra.mxu0 %v2635
    %v2670 = vpop.f32.mrf.mxu0
    %v2671 = vadd.f32 %v2236, %v2670
    %v2672 = vpop.f32.mrf.mxu0
    %v2673 = vadd.f32 %v2240, %v2672
    %v2674 = vpop.f32.mrf.mxu0
    %v2675 = vpop.f32.mrf.mxu0
    %2676 = vdwg.mxu0
    %2677 = vmatprep.subr.bf16.mxu0 0
    %2678 = vmatpush1.bf16.msra.mxu0 %v2403
    %2679 = vmatprep.subr.bf16.mxu0 0
    %2680 = vmatpush1.bf16.msra.mxu0 %v2400
    %2681 = vmatprep.subr.bf16.mxu0 0
    %2682 = vmatpush1.bf16.msra.mxu0 %v2397
    %2683 = vmatprep.subr.bf16.mxu0 0
    %2684 = vmatpush1.bf16.msra.mxu0 %v2394
    %2685 = vmatprep.subr.bf16.mxu0 0
    %2686 = vmatpush1.bf16.msra.mxu0 %v2391
    %2687 = vmatprep.subr.bf16.mxu0 0
    %2688 = vmatpush1.bf16.msra.mxu0 %v2388
    %2689 = vmatprep.subr.bf16.mxu0 0
    %2690 = vmatpush1.bf16.msra.mxu0 %v2385
    %2691 = vmatprep.subr.bf16.mxu0 0
    %2692 = vmatpush1.bf16.msra.mxu0 %v2382
    %2693 = vmatprep.subr.bf16.mxu0 0
    %2694 = vmatpush2.bf16.msra.mxu0 0
    %2695 = vmatprep.subr.bf16.mxu0 0
    %2696 = vmatpush2.bf16.msra.mxu0 0
    %2697 = vmatprep.subr.bf16.mxu0 0
    %2698 = vmatpush2.bf16.msra.mxu0 0
    %2699 = vmatprep.subr.bf16.mxu0 0
    %2700 = vmatpush2.bf16.msra.mxu0 0
    %2701 = vmatprep.subr.bf16.mxu0 0
    %2702 = vmatpush2.bf16.msra.mxu0 0
    %2703 = vmatprep.subr.bf16.mxu0 0
    %2704 = vmatpush2.bf16.msra.mxu0 0
    %2705 = vmatprep.subr.bf16.mxu0 0
    %2706 = vmatpush2.bf16.msra.mxu0 0
    %2707 = vmatprep.subr.bf16.mxu0 0
    %2708 = vmatpush2.bf16.msra.mxu0 0
    %2709 = vmatprep.mubr.bf16.mxu0 0
    %2710 = vmatmul.mubr.bf16.gmra.mxu0 %v2635
    %v2711 = vpop.f32.mrf.mxu0
    %v2712 = vadd.f32 %v2244, %v2711
    %v2713 = vpop.f32.mrf.mxu0
    %v2714 = vpop.f32.mrf.mxu0
    %v2715 = vpop.f32.mrf.mxu0
    %2716 = vdwg.mxu0
    %v2717 = vadd.f32 %v2632, %v2671
    %v2718 = vsub.f32 0.0, %v2717
    %v2719 = vmul.f32 %v2718, 1.442695
    %v2720 = vpow.pop %v2719
    %v2721 = vadd.f32 %v2720, 1.0
    %v2722 = vrcp.pop %v2721
    %v2723 = vadd.f32 %v2633, %v2673
    %v2724 = vsub.f32 0.0, %v2723
    %v2725 = vmul.f32 %v2724, 1.442695
    %v2726 = vpow.pop %v2725
    %v2727 = vadd.f32 %v2726, 1.0
    %v2728 = vrcp.pop %v2727
    %v2729 = vmul.f32 %v2722, %v2712
    %v2730 = vadd.f32 %v2634, %v2729
    %v2731 = vtanh.pop %v2730
    %v2732 = vsub.f32 1.0, %v2728
    %v2733 = vmul.f32 %v2732, %v2731
    %v2734 = vmul.f32 %v2728, %v2631
    %v2735 = vadd.f32 %v2733, %v2734
    %v2736 = vld [vmem:[#allocation2 + $0x48] sm:$0xff]
    %v2737 = vld [vmem:[#allocation2 + $0x50] sm:$0xff]
    %v2738 = vld [vmem:[#allocation2 + $0x58] sm:$0xff]
    %v2739 = vpack.c.bf16 %v2735, %v2735
    %2740 = vmatprep.subr.bf16.mxu0 %v2402
    %2741 = vmatpush1.bf16.msra.mxu0 %v2401
    %2742 = vmatprep.subr.bf16.mxu0 %v2399
    %2743 = vmatpush1.bf16.msra.mxu0 %v2398
    %2744 = vmatprep.subr.bf16.mxu0 %v2396
    %2745 = vmatpush1.bf16.msra.mxu0 %v2395
    %2746 = vmatprep.subr.bf16.mxu0 %v2393
    %2747 = vmatpush1.bf16.msra.mxu0 %v2392
    %2748 = vmatprep.subr.bf16.mxu0 %v2390
    %2749 = vmatpush1.bf16.msra.mxu0 %v2389
    %2750 = vmatprep.subr.bf16.mxu0 %v2387
    %2751 = vmatpush1.bf16.msra.mxu0 %v2386
    %2752 = vmatprep.subr.bf16.mxu0 %v2384
    %2753 = vmatpush1.bf16.msra.mxu0 %v2383
    %2754 = vmatprep.subr.bf16.mxu0 %v2381
    %2755 = vmatpush1.bf16.msra.mxu0 %v2380
    %2756 = vmatprep.subr.bf16.mxu0 0
    %2757 = vmatpush2.bf16.msra.mxu0 0
    %2758 = vmatprep.subr.bf16.mxu0 0
    %2759 = vmatpush2.bf16.msra.mxu0 0
    %2760 = vmatprep.subr.bf16.mxu0 0
    %2761 = vmatpush2.bf16.msra.mxu0 0
    %2762 = vmatprep.subr.bf16.mxu0 0
    %2763 = vmatpush2.bf16.msra.mxu0 0
    %2764 = vmatprep.subr.bf16.mxu0 0
    %2765 = vmatpush2.bf16.msra.mxu0 0
    %2766 = vmatprep.subr.bf16.mxu0 0
    %2767 = vmatpush2.bf16.msra.mxu0 0
    %2768 = vmatprep.subr.bf16.mxu0 0
    %2769 = vmatpush2.bf16.msra.mxu0 0
    %2770 = vmatprep.subr.bf16.mxu0 0
    %2771 = vmatpush2.bf16.msra.mxu0 0
    %2772 = vmatprep.mubr.bf16.mxu0 0
    %2773 = vmatmul.mubr.bf16.gmra.mxu0 %v2739
    %v2774 = vpop.f32.mrf.mxu0
    %v2775 = vadd.f32 %v2236, %v2774
    %v2776 = vpop.f32.mrf.mxu0
    %v2777 = vadd.f32 %v2240, %v2776
    %v2778 = vpop.f32.mrf.mxu0
    %v2779 = vpop.f32.mrf.mxu0
    %2780 = vdwg.mxu0
    %2781 = vmatprep.subr.bf16.mxu0 0
    %2782 = vmatpush1.bf16.msra.mxu0 %v2403
    %2783 = vmatprep.subr.bf16.mxu0 0
    %2784 = vmatpush1.bf16.msra.mxu0 %v2400
    %2785 = vmatprep.subr.bf16.mxu0 0
    %2786 = vmatpush1.bf16.msra.mxu0 %v2397
    %2787 = vmatprep.subr.bf16.mxu0 0
    %2788 = vmatpush1.bf16.msra.mxu0 %v2394
    %2789 = vmatprep.subr.bf16.mxu0 0
    %2790 = vmatpush1.bf16.msra.mxu0 %v2391
    %2791 = vmatprep.subr.bf16.mxu0 0
    %2792 = vmatpush1.bf16.msra.mxu0 %v2388
    %2793 = vmatprep.subr.bf16.mxu0 0
    %2794 = vmatpush1.bf16.msra.mxu0 %v2385
    %2795 = vmatprep.subr.bf16.mxu0 0
    %2796 = vmatpush1.bf16.msra.mxu0 %v2382
    %2797 = vmatprep.subr.bf16.mxu0 0
    %2798 = vmatpush2.bf16.msra.mxu0 0
    %2799 = vmatprep.subr.bf16.mxu0 0
    %2800 = vmatpush2.bf16.msra.mxu0 0
    %2801 = vmatprep.subr.bf16.mxu0 0
    %2802 = vmatpush2.bf16.msra.mxu0 0
    %2803 = vmatprep.subr.bf16.mxu0 0
    %2804 = vmatpush2.bf16.msra.mxu0 0
    %2805 = vmatprep.subr.bf16.mxu0 0
    %2806 = vmatpush2.bf16.msra.mxu0 0
    %2807 = vmatprep.subr.bf16.mxu0 0
    %2808 = vmatpush2.bf16.msra.mxu0 0
    %2809 = vmatprep.subr.bf16.mxu0 0
    %2810 = vmatpush2.bf16.msra.mxu0 0
    %2811 = vmatprep.subr.bf16.mxu0 0
    %2812 = vmatpush2.bf16.msra.mxu0 0
    %2813 = vmatprep.mubr.bf16.mxu0 0
    %2814 = vmatmul.mubr.bf16.gmra.mxu0 %v2739
    %v2815 = vpop.f32.mrf.mxu0
    %v2816 = vadd.f32 %v2244, %v2815
    %v2817 = vpop.f32.mrf.mxu0
    %v2818 = vpop.f32.mrf.mxu0
    %v2819 = vpop.f32.mrf.mxu0
    %2820 = vdwg.mxu0
    %v2821 = vadd.f32 %v2736, %v2775
    %v2822 = vsub.f32 0.0, %v2821
    %v2823 = vmul.f32 %v2822, 1.442695
    %v2824 = vpow.pop %v2823
    %v2825 = vadd.f32 %v2824, 1.0
    %v2826 = vrcp.pop %v2825
    %v2827 = vadd.f32 %v2737, %v2777
    %v2828 = vsub.f32 0.0, %v2827
    %v2829 = vmul.f32 %v2828, 1.442695
    %v2830 = vpow.pop %v2829
    %v2831 = vadd.f32 %v2830, 1.0
    %v2832 = vrcp.pop %v2831
    %v2833 = vmul.f32 %v2826, %v2816
    %v2834 = vadd.f32 %v2738, %v2833
    %v2835 = vtanh.pop %v2834
    %v2836 = vsub.f32 1.0, %v2832
    %v2837 = vmul.f32 %v2836, %v2835
    %v2838 = vmul.f32 %v2832, %v2735
    %v2839 = vadd.f32 %v2837, %v2838
    %v2840 = vld [vmem:[#allocation2 + $0x60] sm:$0xff]
    %v2841 = vld [vmem:[#allocation2 + $0x68] sm:$0xff]
    %v2842 = vld [vmem:[#allocation2 + $0x70] sm:$0xff]
    %v2843 = vpack.c.bf16 %v2839, %v2839
    %2844 = vmatprep.subr.bf16.mxu0 %v2402
    %2845 = vmatpush1.bf16.msra.mxu0 %v2401
    %2846 = vmatprep.subr.bf16.mxu0 %v2399
    %2847 = vmatpush1.bf16.msra.mxu0 %v2398
    %2848 = vmatprep.subr.bf16.mxu0 %v2396
    %2849 = vmatpush1.bf16.msra.mxu0 %v2395
    %2850 = vmatprep.subr.bf16.mxu0 %v2393
    %2851 = vmatpush1.bf16.msra.mxu0 %v2392
    %2852 = vmatprep.subr.bf16.mxu0 %v2390
    %2853 = vmatpush1.bf16.msra.mxu0 %v2389
    %2854 = vmatprep.subr.bf16.mxu0 %v2387
    %2855 = vmatpush1.bf16.msra.mxu0 %v2386
    %2856 = vmatprep.subr.bf16.mxu0 %v2384
    %2857 = vmatpush1.bf16.msra.mxu0 %v2383
    %2858 = vmatprep.subr.bf16.mxu0 %v2381
    %2859 = vmatpush1.bf16.msra.mxu0 %v2380
    %2860 = vmatprep.subr.bf16.mxu0 0
    %2861 = vmatpush2.bf16.msra.mxu0 0
    %2862 = vmatprep.subr.bf16.mxu0 0
    %2863 = vmatpush2.bf16.msra.mxu0 0
    %2864 = vmatprep.subr.bf16.mxu0 0
    %2865 = vmatpush2.bf16.msra.mxu0 0
    %2866 = vmatprep.subr.bf16.mxu0 0
    %2867 = vmatpush2.bf16.msra.mxu0 0
    %2868 = vmatprep.subr.bf16.mxu0 0
    %2869 = vmatpush2.bf16.msra.mxu0 0
    %2870 = vmatprep.subr.bf16.mxu0 0
    %2871 = vmatpush2.bf16.msra.mxu0 0
    %2872 = vmatprep.subr.bf16.mxu0 0
    %2873 = vmatpush2.bf16.msra.mxu0 0
    %2874 = vmatprep.subr.bf16.mxu0 0
    %2875 = vmatpush2.bf16.msra.mxu0 0
    %2876 = vmatprep.mubr.bf16.mxu0 0
    %2877 = vmatmul.mubr.bf16.gmra.mxu0 %v2843
    %v2878 = vpop.f32.mrf.mxu0
    %v2879 = vadd.f32 %v2236, %v2878
    %v2880 = vpop.f32.mrf.mxu0
    %v2881 = vadd.f32 %v2240, %v2880
    %v2882 = vpop.f32.mrf.mxu0
    %v2883 = vpop.f32.mrf.mxu0
    %2884 = vdwg.mxu0
    %2885 = vmatprep.subr.bf16.mxu0 0
    %2886 = vmatpush1.bf16.msra.mxu0 %v2403
    %2887 = vmatprep.subr.bf16.mxu0 0
    %2888 = vmatpush1.bf16.msra.mxu0 %v2400
    %2889 = vmatprep.subr.bf16.mxu0 0
    %2890 = vmatpush1.bf16.msra.mxu0 %v2397
    %2891 = vmatprep.subr.bf16.mxu0 0
    %2892 = vmatpush1.bf16.msra.mxu0 %v2394
    %2893 = vmatprep.subr.bf16.mxu0 0
    %2894 = vmatpush1.bf16.msra.mxu0 %v2391
    %2895 = vmatprep.subr.bf16.mxu0 0
    %2896 = vmatpush1.bf16.msra.mxu0 %v2388
    %2897 = vmatprep.subr.bf16.mxu0 0
    %2898 = vmatpush1.bf16.msra.mxu0 %v2385
    %2899 = vmatprep.subr.bf16.mxu0 0
    %2900 = vmatpush1.bf16.msra.mxu0 %v2382
    %2901 = vmatprep.subr.bf16.mxu0 0
    %2902 = vmatpush2.bf16.msra.mxu0 0
    %2903 = vmatprep.subr.bf16.mxu0 0
    %2904 = vmatpush2.bf16.msra.mxu0 0
    %2905 = vmatprep.subr.bf16.mxu0 0
    %2906 = vmatpush2.bf16.msra.mxu0 0
    %2907 = vmatprep.subr.bf16.mxu0 0
    %2908 = vmatpush2.bf16.msra.mxu0 0
    %2909 = vmatprep.subr.bf16.mxu0 0
    %2910 = vmatpush2.bf16.msra.mxu0 0
    %2911 = vmatprep.subr.bf16.mxu0 0
    %2912 = vmatpush2.bf16.msra.mxu0 0
    %2913 = vmatprep.subr.bf16.mxu0 0
    %2914 = vmatpush2.bf16.msra.mxu0 0
    %2915 = vmatprep.subr.bf16.mxu0 0
    %2916 = vmatpush2.bf16.msra.mxu0 0
    %2917 = vmatprep.mubr.bf16.mxu0 0
    %2918 = vmatmul.mubr.bf16.gmra.mxu0 %v2843
    %v2919 = vpop.f32.mrf.mxu0
    %v2920 = vadd.f32 %v2244, %v2919
    %v2921 = vpop.f32.mrf.mxu0
    %v2922 = vpop.f32.mrf.mxu0
    %v2923 = vpop.f32.mrf.mxu0
    %2924 = vdwg.mxu0
    %v2925 = vadd.f32 %v2840, %v2879
    %v2926 = vsub.f32 0.0, %v2925
    %v2927 = vmul.f32 %v2926, 1.442695
    %v2928 = vpow.pop %v2927
    %v2929 = vadd.f32 %v2928, 1.0
    %v2930 = vrcp.pop %v2929
    %v2931 = vadd.f32 %v2841, %v2881
    %v2932 = vsub.f32 0.0, %v2931
    %v2933 = vmul.f32 %v2932, 1.442695
    %v2934 = vpow.pop %v2933
    %v2935 = vadd.f32 %v2934, 1.0
    %v2936 = vrcp.pop %v2935
    %v2937 = vmul.f32 %v2930, %v2920
    %v2938 = vadd.f32 %v2842, %v2937
    %v2939 = vtanh.pop %v2938
    %v2940 = vsub.f32 1.0, %v2936
    %v2941 = vmul.f32 %v2940, %v2939
    %v2942 = vmul.f32 %v2936, %v2839
    %v2943 = vadd.f32 %v2941, %v2942
    %v2944 = vld [vmem:[#allocation2 + $0x78] sm:$0xff]
    %v2945 = vld [vmem:[#allocation2 + $0x80] sm:$0xff]
    %v2946 = vld [vmem:[#allocation2 + $0x88] sm:$0xff]
    %v2947 = vpack.c.bf16 %v2943, %v2943
    %2948 = vmatprep.subr.bf16.mxu0 %v2402
    %2949 = vmatpush1.bf16.msra.mxu0 %v2401
    %2950 = vmatprep.subr.bf16.mxu0 %v2399
    %2951 = vmatpush1.bf16.msra.mxu0 %v2398
    %2952 = vmatprep.subr.bf16.mxu0 %v2396
    %2953 = vmatpush1.bf16.msra.mxu0 %v2395
    %2954 = vmatprep.subr.bf16.mxu0 %v2393
    %2955 = vmatpush1.bf16.msra.mxu0 %v2392
    %2956 = vmatprep.subr.bf16.mxu0 %v2390
    %2957 = vmatpush1.bf16.msra.mxu0 %v2389
    %2958 = vmatprep.subr.bf16.mxu0 %v2387
    %2959 = vmatpush1.bf16.msra.mxu0 %v2386
    %2960 = vmatprep.subr.bf16.mxu0 %v2384
    %2961 = vmatpush1.bf16.msra.mxu0 %v2383
    %2962 = vmatprep.subr.bf16.mxu0 %v2381
    %2963 = vmatpush1.bf16.msra.mxu0 %v2380
    %2964 = vmatprep.subr.bf16.mxu0 0
    %2965 = vmatpush2.bf16.msra.mxu0 0
    %2966 = vmatprep.subr.bf16.mxu0 0
    %2967 = vmatpush2.bf16.msra.mxu0 0
    %2968 = vmatprep.subr.bf16.mxu0 0
    %2969 = vmatpush2.bf16.msra.mxu0 0
    %2970 = vmatprep.subr.bf16.mxu0 0
    %2971 = vmatpush2.bf16.msra.mxu0 0
    %2972 = vmatprep.subr.bf16.mxu0 0
    %2973 = vmatpush2.bf16.msra.mxu0 0
    %2974 = vmatprep.subr.bf16.mxu0 0
    %2975 = vmatpush2.bf16.msra.mxu0 0
    %2976 = vmatprep.subr.bf16.mxu0 0
    %2977 = vmatpush2.bf16.msra.mxu0 0
    %2978 = vmatprep.subr.bf16.mxu0 0
    %2979 = vmatpush2.bf16.msra.mxu0 0
    %2980 = vmatprep.mubr.bf16.mxu0 0
    %2981 = vmatmul.mubr.bf16.gmra.mxu0 %v2947
    %v2982 = vpop.f32.mrf.mxu0
    %v2983 = vadd.f32 %v2236, %v2982
    %v2984 = vpop.f32.mrf.mxu0
    %v2985 = vadd.f32 %v2240, %v2984
    %v2986 = vpop.f32.mrf.mxu0
    %v2987 = vpop.f32.mrf.mxu0
    %2988 = vdwg.mxu0
    %2989 = vmatprep.subr.bf16.mxu0 0
    %2990 = vmatpush1.bf16.msra.mxu0 %v2403
    %2991 = vmatprep.subr.bf16.mxu0 0
    %2992 = vmatpush1.bf16.msra.mxu0 %v2400
    %2993 = vmatprep.subr.bf16.mxu0 0
    %2994 = vmatpush1.bf16.msra.mxu0 %v2397
    %2995 = vmatprep.subr.bf16.mxu0 0
    %2996 = vmatpush1.bf16.msra.mxu0 %v2394
    %2997 = vmatprep.subr.bf16.mxu0 0
    %2998 = vmatpush1.bf16.msra.mxu0 %v2391
    %2999 = vmatprep.subr.bf16.mxu0 0
    %3000 = vmatpush1.bf16.msra.mxu0 %v2388
    %3001 = vmatprep.subr.bf16.mxu0 0
    %3002 = vmatpush1.bf16.msra.mxu0 %v2385
    %3003 = vmatprep.subr.bf16.mxu0 0
    %3004 = vmatpush1.bf16.msra.mxu0 %v2382
    %3005 = vmatprep.subr.bf16.mxu0 0
    %3006 = vmatpush2.bf16.msra.mxu0 0
    %3007 = vmatprep.subr.bf16.mxu0 0
    %3008 = vmatpush2.bf16.msra.mxu0 0
    %3009 = vmatprep.subr.bf16.mxu0 0
    %3010 = vmatpush2.bf16.msra.mxu0 0
    %3011 = vmatprep.subr.bf16.mxu0 0
    %3012 = vmatpush2.bf16.msra.mxu0 0
    %3013 = vmatprep.subr.bf16.mxu0 0
    %3014 = vmatpush2.bf16.msra.mxu0 0
    %3015 = vmatprep.subr.bf16.mxu0 0
    %3016 = vmatpush2.bf16.msra.mxu0 0
    %3017 = vmatprep.subr.bf16.mxu0 0
    %3018 = vmatpush2.bf16.msra.mxu0 0
    %3019 = vmatprep.subr.bf16.mxu0 0
    %3020 = vmatpush2.bf16.msra.mxu0 0
    %3021 = vmatprep.mubr.bf16.mxu0 0
    %3022 = vmatmul.mubr.bf16.gmra.mxu0 %v2947
    %v3023 = vpop.f32.mrf.mxu0
    %v3024 = vadd.f32 %v2244, %v3023
    %v3025 = vpop.f32.mrf.mxu0
    %v3026 = vpop.f32.mrf.mxu0
    %v3027 = vpop.f32.mrf.mxu0
    %3028 = vdwg.mxu0
    %v3029 = vadd.f32 %v2944, %v2983
    %v3030 = vsub.f32 0.0, %v3029
    %v3031 = vmul.f32 %v3030, 1.442695
    %v3032 = vpow.pop %v3031
    %v3033 = vadd.f32 %v3032, 1.0
    %v3034 = vrcp.pop %v3033
    %v3035 = vadd.f32 %v2945, %v2985
    %v3036 = vsub.f32 0.0, %v3035
    %v3037 = vmul.f32 %v3036, 1.442695
    %v3038 = vpow.pop %v3037
    %v3039 = vadd.f32 %v3038, 1.0
    %v3040 = vrcp.pop %v3039
    %v3041 = vmul.f32 %v3034, %v3024
    %v3042 = vadd.f32 %v2946, %v3041
    %v3043 = vtanh.pop %v3042
    %v3044 = vsub.f32 1.0, %v3040
    %v3045 = vmul.f32 %v3044, %v3043
    %v3046 = vmul.f32 %v3040, %v2943
    %v3047 = vadd.f32 %v3045, %v3046
    %v3048 = vld [vmem:[#allocation2 + $0x108] sm:$0xff]
    %v3049 = vld [vmem:[#allocation2 + $0x110] sm:$0xff]
    %v3050 = vld [vmem:[#allocation2 + $0x118] sm:$0xff]
    %v3051 = vld [vmem:[#allocation10] sm:$0xff]
    %v3052 = vld [vmem:[#allocation10 + $0x8] sm:$0xf]
    %v3053 = vld [vmem:[#allocation10 + $0xc] sm:$0xff]
    %v3054 = vld [vmem:[#allocation10 + $0x14] sm:$0xf]
    %v3055 = vld [vmem:[#allocation10 + $0x18] sm:$0xff]
    %v3056 = vld [vmem:[#allocation10 + $0x20] sm:$0xf]
    %v3057 = vld [vmem:[#allocation10 + $0x24] sm:$0xff]
    %v3058 = vld [vmem:[#allocation10 + $0x2c] sm:$0xf]
    %v3059 = vld [vmem:[#allocation10 + $0x30] sm:$0xff]
    %v3060 = vld [vmem:[#allocation10 + $0x38] sm:$0xf]
    %v3061 = vld [vmem:[#allocation10 + $0x3c] sm:$0xff]
    %v3062 = vld [vmem:[#allocation10 + $0x44] sm:$0xf]
    %v3063 = vld [vmem:[#allocation10 + $0x48] sm:$0xff]
    %v3064 = vld [vmem:[#allocation10 + $0x50] sm:$0xf]
    %v3065 = vld [vmem:[#allocation10 + $0x54] sm:$0xff]
    %v3066 = vld [vmem:[#allocation10 + $0x5c] sm:$0xf]
    %v3067 = vld [vmem:[#allocation10 + $0x60] sm:$0xff]
    %v3068 = vld [vmem:[#allocation10 + $0x68] sm:$0xf]
    %v3069 = vld [vmem:[#allocation10 + $0x6c] sm:$0xff]
    %v3070 = vld [vmem:[#allocation10 + $0x74] sm:$0xf]
    %v3071 = vld [vmem:[#allocation10 + $0x78] sm:$0xff]
    %v3072 = vld [vmem:[#allocation10 + $0x80] sm:$0xf]
    %v3073 = vld [vmem:[#allocation10 + $0x84] sm:$0xff]
    %v3074 = vld [vmem:[#allocation10 + $0x8c] sm:$0xf]
    %v3075 = vld [vmem:[#allocation10 + $0x90] sm:$0xff]
    %v3076 = vld [vmem:[#allocation10 + $0x98] sm:$0xf]
    %v3077 = vld [vmem:[#allocation10 + $0x9c] sm:$0xff]
    %v3078 = vld [vmem:[#allocation10 + $0xa4] sm:$0xf]
    %v3079 = vld [vmem:[#allocation10 + $0xa8] sm:$0xff]
    %v3080 = vld [vmem:[#allocation10 + $0xb0] sm:$0xf]
    %v3081 = vld [vmem:[#allocation10 + $0xb4] sm:$0xff]
    %v3082 = vld [vmem:[#allocation10 + $0xbc] sm:$0xf]
    %v3115 = vunpack.c.l.b16 %v3051
    %v3116 = vunpack.c.h.b16 %v3051
    %v3117 = vunpack.c.l.b16 %v3052
    %v3118 = vunpack.c.l.b16 %v3053
    %v3119 = vunpack.c.h.b16 %v3053
    %v3120 = vunpack.c.l.b16 %v3054
    %v3121 = vunpack.c.l.b16 %v3055
    %v3122 = vunpack.c.h.b16 %v3055
    %v3123 = vunpack.c.l.b16 %v3056
    %v3124 = vunpack.c.l.b16 %v3057
    %v3125 = vunpack.c.h.b16 %v3057
    %v3126 = vunpack.c.l.b16 %v3058
    %v3127 = vunpack.c.l.b16 %v3059
    %v3128 = vunpack.c.h.b16 %v3059
    %v3129 = vunpack.c.l.b16 %v3060
    %v3130 = vunpack.c.l.b16 %v3061
    %v3131 = vunpack.c.h.b16 %v3061
    %v3132 = vunpack.c.l.b16 %v3062
    %v3133 = vunpack.c.l.b16 %v3063
    %v3134 = vunpack.c.h.b16 %v3063
    %v3135 = vunpack.c.l.b16 %v3064
    %v3136 = vunpack.c.l.b16 %v3065
    %v3137 = vunpack.c.h.b16 %v3065
    %v3138 = vunpack.c.l.b16 %v3066
    %v3139 = vunpack.c.l.b16 %v3067
    %v3140 = vunpack.c.h.b16 %v3067
    %v3141 = vunpack.c.l.b16 %v3068
    %v3142 = vunpack.c.l.b16 %v3069
    %v3143 = vunpack.c.h.b16 %v3069
    %v3144 = vunpack.c.l.b16 %v3070
    %v3145 = vunpack.c.l.b16 %v3071
    %v3146 = vunpack.c.h.b16 %v3071
    %v3147 = vunpack.c.l.b16 %v3072
    %v3148 = vunpack.c.l.b16 %v3073
    %v3149 = vunpack.c.h.b16 %v3073
    %v3150 = vunpack.c.l.b16 %v3074
    %v3151 = vunpack.c.l.b16 %v3075
    %v3152 = vunpack.c.h.b16 %v3075
    %v3153 = vunpack.c.l.b16 %v3076
    %v3154 = vunpack.c.l.b16 %v3077
    %v3155 = vunpack.c.h.b16 %v3077
    %v3156 = vunpack.c.l.b16 %v3078
    %v3157 = vunpack.c.l.b16 %v3079
    %v3158 = vunpack.c.h.b16 %v3079
    %v3159 = vunpack.c.l.b16 %v3080
    %v3160 = vunpack.c.l.b16 %v3081
    %v3161 = vunpack.c.h.b16 %v3081
    %v3162 = vunpack.c.l.b16 %v3082
    %v3163 = vpack.c.b16 %v3118, %v3115
    %v3164 = vpack.c.b16 %v3119, %v3116
    %v3165 = vpack.c.b16 %v3120, %v3117
    %v3166 = vpack.c.b16 %v3124, %v3121
    %v3167 = vpack.c.b16 %v3125, %v3122
    %v3168 = vpack.c.b16 %v3126, %v3123
    %v3169 = vpack.c.b16 %v3130, %v3127
    %v3170 = vpack.c.b16 %v3131, %v3128
    %v3171 = vpack.c.b16 %v3132, %v3129
    %v3172 = vpack.c.b16 %v3136, %v3133
    %v3173 = vpack.c.b16 %v3137, %v3134
    %v3174 = vpack.c.b16 %v3138, %v3135
    %v3175 = vpack.c.b16 %v3142, %v3139
    %v3176 = vpack.c.b16 %v3143, %v3140
    %v3177 = vpack.c.b16 %v3144, %v3141
    %v3178 = vpack.c.b16 %v3148, %v3145
    %v3179 = vpack.c.b16 %v3149, %v3146
    %v3180 = vpack.c.b16 %v3150, %v3147
    %v3181 = vpack.c.b16 %v3154, %v3151
    %v3182 = vpack.c.b16 %v3155, %v3152
    %v3183 = vpack.c.b16 %v3156, %v3153
    %v3184 = vpack.c.b16 %v3160, %v3157
    %v3185 = vpack.c.b16 %v3161, %v3158
    %v3186 = vpack.c.b16 %v3162, %v3159
    %3211 = vmatprep.subr.bf16.mxu0 %v3185
    %3212 = vmatpush1.bf16.msra.mxu0 %v3184
    %3213 = vmatprep.subr.bf16.mxu0 %v3182
    %3214 = vmatpush1.bf16.msra.mxu0 %v3181
    %3215 = vmatprep.subr.bf16.mxu0 %v3179
    %3216 = vmatpush1.bf16.msra.mxu0 %v3178
    %3217 = vmatprep.subr.bf16.mxu0 %v3176
    %3218 = vmatpush1.bf16.msra.mxu0 %v3175
    %3219 = vmatprep.subr.bf16.mxu0 %v3173
    %3220 = vmatpush1.bf16.msra.mxu0 %v3172
    %3221 = vmatprep.subr.bf16.mxu0 %v3170
    %3222 = vmatpush1.bf16.msra.mxu0 %v3169
    %3223 = vmatprep.subr.bf16.mxu0 %v3167
    %3224 = vmatpush1.bf16.msra.mxu0 %v3166
    %3225 = vmatprep.subr.bf16.mxu0 %v3164
    %3226 = vmatpush1.bf16.msra.mxu0 %v3163
    %3227 = vmatprep.subr.bf16.mxu0 0
    %3228 = vmatpush2.bf16.msra.mxu0 0
    %3229 = vmatprep.subr.bf16.mxu0 0
    %3230 = vmatpush2.bf16.msra.mxu0 0
    %3231 = vmatprep.subr.bf16.mxu0 0
    %3232 = vmatpush2.bf16.msra.mxu0 0
    %3233 = vmatprep.subr.bf16.mxu0 0
    %3234 = vmatpush2.bf16.msra.mxu0 0
    %3235 = vmatprep.subr.bf16.mxu0 0
    %3236 = vmatpush2.bf16.msra.mxu0 0
    %3237 = vmatprep.subr.bf16.mxu0 0
    %3238 = vmatpush2.bf16.msra.mxu0 0
    %3239 = vmatprep.subr.bf16.mxu0 0
    %3240 = vmatpush2.bf16.msra.mxu0 0
    %3241 = vmatprep.subr.bf16.mxu0 0
    %3242 = vmatpush2.bf16.msra.mxu0 0
    %3243 = vmatprep.mubr.bf16.mxu0 0
    %3244 = vmatmul.mubr.bf16.gmra.mxu0 0
    %v3245 = vpop.f32.mrf.mxu0
    %v3246 = vadd.f32 %v2253, %v3245
    %v3247 = vpop.f32.mrf.mxu0
    %v3248 = vadd.f32 %v2257, %v3247
    %v3249 = vpop.f32.mrf.mxu0
    %v3250 = vpop.f32.mrf.mxu0
    %3251 = vdwg.mxu0
    %3252 = vmatprep.subr.bf16.mxu0 0
    %3253 = vmatpush1.bf16.msra.mxu0 %v3186
    %3254 = vmatprep.subr.bf16.mxu0 0
    %3255 = vmatpush1.bf16.msra.mxu0 %v3183
    %3256 = vmatprep.subr.bf16.mxu0 0
    %3257 = vmatpush1.bf16.msra.mxu0 %v3180
    %3258 = vmatprep.subr.bf16.mxu0 0
    %3259 = vmatpush1.bf16.msra.mxu0 %v3177
    %3260 = vmatprep.subr.bf16.mxu0 0
    %3261 = vmatpush1.bf16.msra.mxu0 %v3174
    %3262 = vmatprep.subr.bf16.mxu0 0
    %3263 = vmatpush1.bf16.msra.mxu0 %v3171
    %3264 = vmatprep.subr.bf16.mxu0 0
    %3265 = vmatpush1.bf16.msra.mxu0 %v3168
    %3266 = vmatprep.subr.bf16.mxu0 0
    %3267 = vmatpush1.bf16.msra.mxu0 %v3165
    %3268 = vmatprep.subr.bf16.mxu0 0
    %3269 = vmatpush2.bf16.msra.mxu0 0
    %3270 = vmatprep.subr.bf16.mxu0 0
    %3271 = vmatpush2.bf16.msra.mxu0 0
    %3272 = vmatprep.subr.bf16.mxu0 0
    %3273 = vmatpush2.bf16.msra.mxu0 0
    %3274 = vmatprep.subr.bf16.mxu0 0
    %3275 = vmatpush2.bf16.msra.mxu0 0
    %3276 = vmatprep.subr.bf16.mxu0 0
    %3277 = vmatpush2.bf16.msra.mxu0 0
    %3278 = vmatprep.subr.bf16.mxu0 0
    %3279 = vmatpush2.bf16.msra.mxu0 0
    %3280 = vmatprep.subr.bf16.mxu0 0
    %3281 = vmatpush2.bf16.msra.mxu0 0
    %3282 = vmatprep.subr.bf16.mxu0 0
    %3283 = vmatpush2.bf16.msra.mxu0 0
    %3284 = vmatprep.mubr.bf16.mxu0 0
    %3285 = vmatmul.mubr.bf16.gmra.mxu0 0
    %v3286 = vpop.f32.mrf.mxu0
    %v3287 = vadd.f32 %v2261, %v3286
    %v3288 = vpop.f32.mrf.mxu0
    %v3289 = vpop.f32.mrf.mxu0
    %v3290 = vpop.f32.mrf.mxu0
    %3291 = vdwg.mxu0
    %v3292 = vadd.f32 %v3048, %v3246
    %v3293 = vsub.f32 0.0, %v3292
    %v3294 = vmul.f32 %v3293, 1.442695
    %v3295 = vpow.pop %v3294
    %v3296 = vadd.f32 %v3295, 1.0
    %v3297 = vrcp.pop %v3296
    %v3298 = vadd.f32 %v3049, %v3248
    %v3299 = vsub.f32 0.0, %v3298
    %v3300 = vmul.f32 %v3299, 1.442695
    %v3301 = vpow.pop %v3300
    %v3302 = vadd.f32 %v3301, 1.0
    %v3303 = vrcp.pop %v3302
    %v3304 = vmul.f32 %v3297, %v3287
    %v3305 = vadd.f32 %v3050, %v3304
    %v3306 = vtanh.pop %v3305
    %v3307 = vsub.f32 1.0, %v3303
    %v3308 = vmul.f32 %v3307, %v3306
    %v3309 = vmul.f32 %v3303, 0.0
    %v3310 = vadd.f32 %v3308, %v3309
    %v3311 = vld [vmem:[#allocation2 + $0xf0] sm:$0xff]
    %v3312 = vld [vmem:[#allocation2 + $0xf8] sm:$0xff]
    %v3313 = vld [vmem:[#allocation2 + $0x100] sm:$0xff]
    %v3314 = vpack.c.bf16 %v3310, %v3310
    %3315 = vmatprep.subr.bf16.mxu0 %v3185
    %3316 = vmatpush1.bf16.msra.mxu0 %v3184
    %3317 = vmatprep.subr.bf16.mxu0 %v3182
    %3318 = vmatpush1.bf16.msra.mxu0 %v3181
    %3319 = vmatprep.subr.bf16.mxu0 %v3179
    %3320 = vmatpush1.bf16.msra.mxu0 %v3178
    %3321 = vmatprep.subr.bf16.mxu0 %v3176
    %3322 = vmatpush1.bf16.msra.mxu0 %v3175
    %3323 = vmatprep.subr.bf16.mxu0 %v3173
    %3324 = vmatpush1.bf16.msra.mxu0 %v3172
    %3325 = vmatprep.subr.bf16.mxu0 %v3170
    %3326 = vmatpush1.bf16.msra.mxu0 %v3169
    %3327 = vmatprep.subr.bf16.mxu0 %v3167
    %3328 = vmatpush1.bf16.msra.mxu0 %v3166
    %3329 = vmatprep.subr.bf16.mxu0 %v3164
    %3330 = vmatpush1.bf16.msra.mxu0 %v3163
    %3331 = vmatprep.subr.bf16.mxu0 0
    %3332 = vmatpush2.bf16.msra.mxu0 0
    %3333 = vmatprep.subr.bf16.mxu0 0
    %3334 = vmatpush2.bf16.msra.mxu0 0
    %3335 = vmatprep.subr.bf16.mxu0 0
    %3336 = vmatpush2.bf16.msra.mxu0 0
    %3337 = vmatprep.subr.bf16.mxu0 0
    %3338 = vmatpush2.bf16.msra.mxu0 0
    %3339 = vmatprep.subr.bf16.mxu0 0
    %3340 = vmatpush2.bf16.msra.mxu0 0
    %3341 = vmatprep.subr.bf16.mxu0 0
    %3342 = vmatpush2.bf16.msra.mxu0 0
    %3343 = vmatprep.subr.bf16.mxu0 0
    %3344 = vmatpush2.bf16.msra.mxu0 0
    %3345 = vmatprep.subr.bf16.mxu0 0
    %3346 = vmatpush2.bf16.msra.mxu0 0
    %3347 = vmatprep.mubr.bf16.mxu0 0
    %3348 = vmatmul.mubr.bf16.gmra.mxu0 %v3314
    %v3349 = vpop.f32.mrf.mxu0
    %v3350 = vadd.f32 %v2253, %v3349
    %v3351 = vpop.f32.mrf.mxu0
    %v3352 = vadd.f32 %v2257, %v3351
    %v3353 = vpop.f32.mrf.mxu0
    %v3354 = vpop.f32.mrf.mxu0
    %3355 = vdwg.mxu0
    %3356 = vmatprep.subr.bf16.mxu0 0
    %3357 = vmatpush1.bf16.msra.mxu0 %v3186
    %3358 = vmatprep.subr.bf16.mxu0 0
    %3359 = vmatpush1.bf16.msra.mxu0 %v3183
    %3360 = vmatprep.subr.bf16.mxu0 0
    %3361 = vmatpush1.bf16.msra.mxu0 %v3180
    %3362 = vmatprep.subr.bf16.mxu0 0
    %3363 = vmatpush1.bf16.msra.mxu0 %v3177
    %3364 = vmatprep.subr.bf16.mxu0 0
    %3365 = vmatpush1.bf16.msra.mxu0 %v3174
    %3366 = vmatprep.subr.bf16.mxu0 0
    %3367 = vmatpush1.bf16.msra.mxu0 %v3171
    %3368 = vmatprep.subr.bf16.mxu0 0
    %3369 = vmatpush1.bf16.msra.mxu0 %v3168
    %3370 = vmatprep.subr.bf16.mxu0 0
    %3371 = vmatpush1.bf16.msra.mxu0 %v3165
    %3372 = vmatprep.subr.bf16.mxu0 0
    %3373 = vmatpush2.bf16.msra.mxu0 0
    %3374 = vmatprep.subr.bf16.mxu0 0
    %3375 = vmatpush2.bf16.msra.mxu0 0
    %3376 = vmatprep.subr.bf16.mxu0 0
    %3377 = vmatpush2.bf16.msra.mxu0 0
    %3378 = vmatprep.subr.bf16.mxu0 0
    %3379 = vmatpush2.bf16.msra.mxu0 0
    %3380 = vmatprep.subr.bf16.mxu0 0
    %3381 = vmatpush2.bf16.msra.mxu0 0
    %3382 = vmatprep.subr.bf16.mxu0 0
    %3383 = vmatpush2.bf16.msra.mxu0 0
    %3384 = vmatprep.subr.bf16.mxu0 0
    %3385 = vmatpush2.bf16.msra.mxu0 0
    %3386 = vmatprep.subr.bf16.mxu0 0
    %3387 = vmatpush2.bf16.msra.mxu0 0
    %3388 = vmatprep.mubr.bf16.mxu0 0
    %3389 = vmatmul.mubr.bf16.gmra.mxu0 %v3314
    %v3390 = vpop.f32.mrf.mxu0
    %v3391 = vadd.f32 %v2261, %v3390
    %v3392 = vpop.f32.mrf.mxu0
    %v3393 = vpop.f32.mrf.mxu0
    %v3394 = vpop.f32.mrf.mxu0
    %3395 = vdwg.mxu0
    %v3396 = vadd.f32 %v3311, %v3350
    %v3397 = vsub.f32 0.0, %v3396
    %v3398 = vmul.f32 %v3397, 1.442695
    %v3399 = vpow.pop %v3398
    %v3400 = vadd.f32 %v3399, 1.0
    %v3401 = vrcp.pop %v3400
    %v3402 = vadd.f32 %v3312, %v3352
    %v3403 = vsub.f32 0.0, %v3402
    %v3404 = vmul.f32 %v3403, 1.442695
    %v3405 = vpow.pop %v3404
    %v3406 = vadd.f32 %v3405, 1.0
    %v3407 = vrcp.pop %v3406
    %v3408 = vmul.f32 %v3401, %v3391
    %v3409 = vadd.f32 %v3313, %v3408
    %v3410 = vtanh.pop %v3409
    %v3411 = vsub.f32 1.0, %v3407
    %v3412 = vmul.f32 %v3411, %v3410
    %v3413 = vmul.f32 %v3407, %v3310
    %v3414 = vadd.f32 %v3412, %v3413
    %v3415 = vld [vmem:[#allocation2 + $0xd8] sm:$0xff]
    %v3416 = vld [vmem:[#allocation2 + $0xe0] sm:$0xff]
    %v3417 = vld [vmem:[#allocation2 + $0xe8] sm:$0xff]
    %v3418 = vpack.c.bf16 %v3414, %v3414
    %3419 = vmatprep.subr.bf16.mxu0 %v3185
    %3420 = vmatpush1.bf16.msra.mxu0 %v3184
    %3421 = vmatprep.subr.bf16.mxu0 %v3182
    %3422 = vmatpush1.bf16.msra.mxu0 %v3181
    %3423 = vmatprep.subr.bf16.mxu0 %v3179
    %3424 = vmatpush1.bf16.msra.mxu0 %v3178
    %3425 = vmatprep.subr.bf16.mxu0 %v3176
    %3426 = vmatpush1.bf16.msra.mxu0 %v3175
    %3427 = vmatprep.subr.bf16.mxu0 %v3173
    %3428 = vmatpush1.bf16.msra.mxu0 %v3172
    %3429 = vmatprep.subr.bf16.mxu0 %v3170
    %3430 = vmatpush1.bf16.msra.mxu0 %v3169
    %3431 = vmatprep.subr.bf16.mxu0 %v3167
    %3432 = vmatpush1.bf16.msra.mxu0 %v3166
    %3433 = vmatprep.subr.bf16.mxu0 %v3164
    %3434 = vmatpush1.bf16.msra.mxu0 %v3163
    %3435 = vmatprep.subr.bf16.mxu0 0
    %3436 = vmatpush2.bf16.msra.mxu0 0
    %3437 = vmatprep.subr.bf16.mxu0 0
    %3438 = vmatpush2.bf16.msra.mxu0 0
    %3439 = vmatprep.subr.bf16.mxu0 0
    %3440 = vmatpush2.bf16.msra.mxu0 0
    %3441 = vmatprep.subr.bf16.mxu0 0
    %3442 = vmatpush2.bf16.msra.mxu0 0
    %3443 = vmatprep.subr.bf16.mxu0 0
    %3444 = vmatpush2.bf16.msra.mxu0 0
    %3445 = vmatprep.subr.bf16.mxu0 0
    %3446 = vmatpush2.bf16.msra.mxu0 0
    %3447 = vmatprep.subr.bf16.mxu0 0
    %3448 = vmatpush2.bf16.msra.mxu0 0
    %3449 = vmatprep.subr.bf16.mxu0 0
    %3450 = vmatpush2.bf16.msra.mxu0 0
    %3451 = vmatprep.mubr.bf16.mxu0 0
    %3452 = vmatmul.mubr.bf16.gmra.mxu0 %v3418
    %v3453 = vpop.f32.mrf.mxu0
    %v3454 = vadd.f32 %v2253, %v3453
    %v3455 = vpop.f32.mrf.mxu0
    %v3456 = vadd.f32 %v2257, %v3455
    %v3457 = vpop.f32.mrf.mxu0
    %v3458 = vpop.f32.mrf.mxu0
    %3459 = vdwg.mxu0
    %3460 = vmatprep.subr.bf16.mxu0 0
    %3461 = vmatpush1.bf16.msra.mxu0 %v3186
    %3462 = vmatprep.subr.bf16.mxu0 0
    %3463 = vmatpush1.bf16.msra.mxu0 %v3183
    %3464 = vmatprep.subr.bf16.mxu0 0
    %3465 = vmatpush1.bf16.msra.mxu0 %v3180
    %3466 = vmatprep.subr.bf16.mxu0 0
    %3467 = vmatpush1.bf16.msra.mxu0 %v3177
    %3468 = vmatprep.subr.bf16.mxu0 0
    %3469 = vmatpush1.bf16.msra.mxu0 %v3174
    %3470 = vmatprep.subr.bf16.mxu0 0
    %3471 = vmatpush1.bf16.msra.mxu0 %v3171
    %3472 = vmatprep.subr.bf16.mxu0 0
    %3473 = vmatpush1.bf16.msra.mxu0 %v3168
    %3474 = vmatprep.subr.bf16.mxu0 0
    %3475 = vmatpush1.bf16.msra.mxu0 %v3165
    %3476 = vmatprep.subr.bf16.mxu0 0
    %3477 = vmatpush2.bf16.msra.mxu0 0
    %3478 = vmatprep.subr.bf16.mxu0 0
    %3479 = vmatpush2.bf16.msra.mxu0 0
    %3480 = vmatprep.subr.bf16.mxu0 0
    %3481 = vmatpush2.bf16.msra.mxu0 0
    %3482 = vmatprep.subr.bf16.mxu0 0
    %3483 = vmatpush2.bf16.msra.mxu0 0
    %3484 = vmatprep.subr.bf16.mxu0 0
    %3485 = vmatpush2.bf16.msra.mxu0 0
    %3486 = vmatprep.subr.bf16.mxu0 0
    %3487 = vmatpush2.bf16.msra.mxu0 0
    %3488 = vmatprep.subr.bf16.mxu0 0
    %3489 = vmatpush2.bf16.msra.mxu0 0
    %3490 = vmatprep.subr.bf16.mxu0 0
    %3491 = vmatpush2.bf16.msra.mxu0 0
    %3492 = vmatprep.mubr.bf16.mxu0 0
    %3493 = vmatmul.mubr.bf16.gmra.mxu0 %v3418
    %v3494 = vpop.f32.mrf.mxu0
    %v3495 = vadd.f32 %v2261, %v3494
    %v3496 = vpop.f32.mrf.mxu0
    %v3497 = vpop.f32.mrf.mxu0
    %v3498 = vpop.f32.mrf.mxu0
    %3499 = vdwg.mxu0
    %v3500 = vadd.f32 %v3415, %v3454
    %v3501 = vsub.f32 0.0, %v3500
    %v3502 = vmul.f32 %v3501, 1.442695
    %v3503 = vpow.pop %v3502
    %v3504 = vadd.f32 %v3503, 1.0
    %v3505 = vrcp.pop %v3504
    %v3506 = vadd.f32 %v3416, %v3456
    %v3507 = vsub.f32 0.0, %v3506
    %v3508 = vmul.f32 %v3507, 1.442695
    %v3509 = vpow.pop %v3508
    %v3510 = vadd.f32 %v3509, 1.0
    %v3511 = vrcp.pop %v3510
    %v3512 = vmul.f32 %v3505, %v3495
    %v3513 = vadd.f32 %v3417, %v3512
    %v3514 = vtanh.pop %v3513
    %v3515 = vsub.f32 1.0, %v3511
    %v3516 = vmul.f32 %v3515, %v3514
    %v3517 = vmul.f32 %v3511, %v3414
    %v3518 = vadd.f32 %v3516, %v3517
    %v3519 = vld [vmem:[#allocation2 + $0xc0] sm:$0xff]
    %v3520 = vld [vmem:[#allocation2 + $0xc8] sm:$0xff]
    %v3521 = vld [vmem:[#allocation2 + $0xd0] sm:$0xff]
    %v3522 = vpack.c.bf16 %v3518, %v3518
    %3523 = vmatprep.subr.bf16.mxu0 %v3185
    %3524 = vmatpush1.bf16.msra.mxu0 %v3184
    %3525 = vmatprep.subr.bf16.mxu0 %v3182
    %3526 = vmatpush1.bf16.msra.mxu0 %v3181
    %3527 = vmatprep.subr.bf16.mxu0 %v3179
    %3528 = vmatpush1.bf16.msra.mxu0 %v3178
    %3529 = vmatprep.subr.bf16.mxu0 %v3176
    %3530 = vmatpush1.bf16.msra.mxu0 %v3175
    %3531 = vmatprep.subr.bf16.mxu0 %v3173
    %3532 = vmatpush1.bf16.msra.mxu0 %v3172
    %3533 = vmatprep.subr.bf16.mxu0 %v3170
    %3534 = vmatpush1.bf16.msra.mxu0 %v3169
    %3535 = vmatprep.subr.bf16.mxu0 %v3167
    %3536 = vmatpush1.bf16.msra.mxu0 %v3166
    %3537 = vmatprep.subr.bf16.mxu0 %v3164
    %3538 = vmatpush1.bf16.msra.mxu0 %v3163
    %3539 = vmatprep.subr.bf16.mxu0 0
    %3540 = vmatpush2.bf16.msra.mxu0 0
    %3541 = vmatprep.subr.bf16.mxu0 0
    %3542 = vmatpush2.bf16.msra.mxu0 0
    %3543 = vmatprep.subr.bf16.mxu0 0
    %3544 = vmatpush2.bf16.msra.mxu0 0
    %3545 = vmatprep.subr.bf16.mxu0 0
    %3546 = vmatpush2.bf16.msra.mxu0 0
    %3547 = vmatprep.subr.bf16.mxu0 0
    %3548 = vmatpush2.bf16.msra.mxu0 0
    %3549 = vmatprep.subr.bf16.mxu0 0
    %3550 = vmatpush2.bf16.msra.mxu0 0
    %3551 = vmatprep.subr.bf16.mxu0 0
    %3552 = vmatpush2.bf16.msra.mxu0 0
    %3553 = vmatprep.subr.bf16.mxu0 0
    %3554 = vmatpush2.bf16.msra.mxu0 0
    %3555 = vmatprep.mubr.bf16.mxu0 0
    %3556 = vmatmul.mubr.bf16.gmra.mxu0 %v3522
    %v3557 = vpop.f32.mrf.mxu0
    %v3558 = vadd.f32 %v2253, %v3557
    %v3559 = vpop.f32.mrf.mxu0
    %v3560 = vadd.f32 %v2257, %v3559
    %v3561 = vpop.f32.mrf.mxu0
    %v3562 = vpop.f32.mrf.mxu0
    %3563 = vdwg.mxu0
    %3564 = vmatprep.subr.bf16.mxu0 0
    %3565 = vmatpush1.bf16.msra.mxu0 %v3186
    %3566 = vmatprep.subr.bf16.mxu0 0
    %3567 = vmatpush1.bf16.msra.mxu0 %v3183
    %3568 = vmatprep.subr.bf16.mxu0 0
    %3569 = vmatpush1.bf16.msra.mxu0 %v3180
    %3570 = vmatprep.subr.bf16.mxu0 0
    %3571 = vmatpush1.bf16.msra.mxu0 %v3177
    %3572 = vmatprep.subr.bf16.mxu0 0
    %3573 = vmatpush1.bf16.msra.mxu0 %v3174
    %3574 = vmatprep.subr.bf16.mxu0 0
    %3575 = vmatpush1.bf16.msra.mxu0 %v3171
    %3576 = vmatprep.subr.bf16.mxu0 0
    %3577 = vmatpush1.bf16.msra.mxu0 %v3168
    %3578 = vmatprep.subr.bf16.mxu0 0
    %3579 = vmatpush1.bf16.msra.mxu0 %v3165
    %3580 = vmatprep.subr.bf16.mxu0 0
    %3581 = vmatpush2.bf16.msra.mxu0 0
    %3582 = vmatprep.subr.bf16.mxu0 0
    %3583 = vmatpush2.bf16.msra.mxu0 0
    %3584 = vmatprep.subr.bf16.mxu0 0
    %3585 = vmatpush2.bf16.msra.mxu0 0
    %3586 = vmatprep.subr.bf16.mxu0 0
    %3587 = vmatpush2.bf16.msra.mxu0 0
    %3588 = vmatprep.subr.bf16.mxu0 0
    %3589 = vmatpush2.bf16.msra.mxu0 0
    %3590 = vmatprep.subr.bf16.mxu0 0
    %3591 = vmatpush2.bf16.msra.mxu0 0
    %3592 = vmatprep.subr.bf16.mxu0 0
    %3593 = vmatpush2.bf16.msra.mxu0 0
    %3594 = vmatprep.subr.bf16.mxu0 0
    %3595 = vmatpush2.bf16.msra.mxu0 0
    %3596 = vmatprep.mubr.bf16.mxu0 0
    %3597 = vmatmul.mubr.bf16.gmra.mxu0 %v3522
    %v3598 = vpop.f32.mrf.mxu0
    %v3599 = vadd.f32 %v2261, %v3598
    %v3600 = vpop.f32.mrf.mxu0
    %v3601 = vpop.f32.mrf.mxu0
    %v3602 = vpop.f32.mrf.mxu0
    %3603 = vdwg.mxu0
    %v3604 = vadd.f32 %v3519, %v3558
    %v3605 = vsub.f32 0.0, %v3604
    %v3606 = vmul.f32 %v3605, 1.442695
    %v3607 = vpow.pop %v3606
    %v3608 = vadd.f32 %v3607, 1.0
    %v3609 = vrcp.pop %v3608
    %v3610 = vadd.f32 %v3520, %v3560
    %v3611 = vsub.f32 0.0, %v3610
    %v3612 = vmul.f32 %v3611, 1.442695
    %v3613 = vpow.pop %v3612
    %v3614 = vadd.f32 %v3613, 1.0
    %v3615 = vrcp.pop %v3614
    %v3616 = vmul.f32 %v3609, %v3599
    %v3617 = vadd.f32 %v3521, %v3616
    %v3618 = vtanh.pop %v3617
    %v3619 = vsub.f32 1.0, %v3615
    %v3620 = vmul.f32 %v3619, %v3618
    %v3621 = vmul.f32 %v3615, %v3518
    %v3622 = vadd.f32 %v3620, %v3621
    %v3623 = vld [vmem:[#allocation2 + $0xa8] sm:$0xff]
    %v3624 = vld [vmem:[#allocation2 + $0xb0] sm:$0xff]
    %v3625 = vld [vmem:[#allocation2 + $0xb8] sm:$0xff]
    %v3626 = vpack.c.bf16 %v3622, %v3622
    %3627 = vmatprep.subr.bf16.mxu0 %v3185
    %3628 = vmatpush1.bf16.msra.mxu0 %v3184
    %3629 = vmatprep.subr.bf16.mxu0 %v3182
    %3630 = vmatpush1.bf16.msra.mxu0 %v3181
    %3631 = vmatprep.subr.bf16.mxu0 %v3179
    %3632 = vmatpush1.bf16.msra.mxu0 %v3178
    %3633 = vmatprep.subr.bf16.mxu0 %v3176
    %3634 = vmatpush1.bf16.msra.mxu0 %v3175
    %3635 = vmatprep.subr.bf16.mxu0 %v3173
    %3636 = vmatpush1.bf16.msra.mxu0 %v3172
    %3637 = vmatprep.subr.bf16.mxu0 %v3170
    %3638 = vmatpush1.bf16.msra.mxu0 %v3169
    %3639 = vmatprep.subr.bf16.mxu0 %v3167
    %3640 = vmatpush1.bf16.msra.mxu0 %v3166
    %3641 = vmatprep.subr.bf16.mxu0 %v3164
    %3642 = vmatpush1.bf16.msra.mxu0 %v3163
    %3643 = vmatprep.subr.bf16.mxu0 0
    %3644 = vmatpush2.bf16.msra.mxu0 0
    %3645 = vmatprep.subr.bf16.mxu0 0
    %3646 = vmatpush2.bf16.msra.mxu0 0
    %3647 = vmatprep.subr.bf16.mxu0 0
    %3648 = vmatpush2.bf16.msra.mxu0 0
    %3649 = vmatprep.subr.bf16.mxu0 0
    %3650 = vmatpush2.bf16.msra.mxu0 0
    %3651 = vmatprep.subr.bf16.mxu0 0
    %3652 = vmatpush2.bf16.msra.mxu0 0
    %3653 = vmatprep.subr.bf16.mxu0 0
    %3654 = vmatpush2.bf16.msra.mxu0 0
    %3655 = vmatprep.subr.bf16.mxu0 0
    %3656 = vmatpush2.bf16.msra.mxu0 0
    %3657 = vmatprep.subr.bf16.mxu0 0
    %3658 = vmatpush2.bf16.msra.mxu0 0
    %3659 = vmatprep.mubr.bf16.mxu0 0
    %3660 = vmatmul.mubr.bf16.gmra.mxu0 %v3626
    %v3661 = vpop.f32.mrf.mxu0
    %v3662 = vadd.f32 %v2253, %v3661
    %v3663 = vpop.f32.mrf.mxu0
    %v3664 = vadd.f32 %v2257, %v3663
    %v3665 = vpop.f32.mrf.mxu0
    %v3666 = vpop.f32.mrf.mxu0
    %3667 = vdwg.mxu0
    %3668 = vmatprep.subr.bf16.mxu0 0
    %3669 = vmatpush1.bf16.msra.mxu0 %v3186
    %3670 = vmatprep.subr.bf16.mxu0 0
    %3671 = vmatpush1.bf16.msra.mxu0 %v3183
    %3672 = vmatprep.subr.bf16.mxu0 0
    %3673 = vmatpush1.bf16.msra.mxu0 %v3180
    %3674 = vmatprep.subr.bf16.mxu0 0
    %3675 = vmatpush1.bf16.msra.mxu0 %v3177
    %3676 = vmatprep.subr.bf16.mxu0 0
    %3677 = vmatpush1.bf16.msra.mxu0 %v3174
    %3678 = vmatprep.subr.bf16.mxu0 0
    %3679 = vmatpush1.bf16.msra.mxu0 %v3171
    %3680 = vmatprep.subr.bf16.mxu0 0
    %3681 = vmatpush1.bf16.msra.mxu0 %v3168
    %3682 = vmatprep.subr.bf16.mxu0 0
    %3683 = vmatpush1.bf16.msra.mxu0 %v3165
    %3684 = vmatprep.subr.bf16.mxu0 0
    %3685 = vmatpush2.bf16.msra.mxu0 0
    %3686 = vmatprep.subr.bf16.mxu0 0
    %3687 = vmatpush2.bf16.msra.mxu0 0
    %3688 = vmatprep.subr.bf16.mxu0 0
    %3689 = vmatpush2.bf16.msra.mxu0 0
    %3690 = vmatprep.subr.bf16.mxu0 0
    %3691 = vmatpush2.bf16.msra.mxu0 0
    %3692 = vmatprep.subr.bf16.mxu0 0
    %3693 = vmatpush2.bf16.msra.mxu0 0
    %3694 = vmatprep.subr.bf16.mxu0 0
    %3695 = vmatpush2.bf16.msra.mxu0 0
    %3696 = vmatprep.subr.bf16.mxu0 0
    %3697 = vmatpush2.bf16.msra.mxu0 0
    %3698 = vmatprep.subr.bf16.mxu0 0
    %3699 = vmatpush2.bf16.msra.mxu0 0
    %3700 = vmatprep.mubr.bf16.mxu0 0
    %3701 = vmatmul.mubr.bf16.gmra.mxu0 %v3626
    %v3702 = vpop.f32.mrf.mxu0
    %v3703 = vadd.f32 %v2261, %v3702
    %v3704 = vpop.f32.mrf.mxu0
    %v3705 = vpop.f32.mrf.mxu0
    %v3706 = vpop.f32.mrf.mxu0
    %3707 = vdwg.mxu0
    %v3708 = vadd.f32 %v3623, %v3662
    %v3709 = vsub.f32 0.0, %v3708
    %v3710 = vmul.f32 %v3709, 1.442695
    %v3711 = vpow.pop %v3710
    %v3712 = vadd.f32 %v3711, 1.0
    %v3713 = vrcp.pop %v3712
    %v3714 = vadd.f32 %v3624, %v3664
    %v3715 = vsub.f32 0.0, %v3714
    %v3716 = vmul.f32 %v3715, 1.442695
    %v3717 = vpow.pop %v3716
    %v3718 = vadd.f32 %v3717, 1.0
    %v3719 = vrcp.pop %v3718
    %v3720 = vmul.f32 %v3713, %v3703
    %v3721 = vadd.f32 %v3625, %v3720
    %v3722 = vtanh.pop %v3721
    %v3723 = vsub.f32 1.0, %v3719
    %v3724 = vmul.f32 %v3723, %v3722
    %v3725 = vmul.f32 %v3719, %v3622
    %v3726 = vadd.f32 %v3724, %v3725
    %v3727 = vld [vmem:[#allocation2 + $0x90] sm:$0xff]
    %v3728 = vld [vmem:[#allocation2 + $0x98] sm:$0xff]
    %v3729 = vld [vmem:[#allocation2 + $0xa0] sm:$0xff]
    %v3730 = vpack.c.bf16 %v3726, %v3726
    %3731 = vmatprep.subr.bf16.mxu0 %v3185
    %3732 = vmatpush1.bf16.msra.mxu0 %v3184
    %3733 = vmatprep.subr.bf16.mxu0 %v3182
    %3734 = vmatpush1.bf16.msra.mxu0 %v3181
    %3735 = vmatprep.subr.bf16.mxu0 %v3179
    %3736 = vmatpush1.bf16.msra.mxu0 %v3178
    %3737 = vmatprep.subr.bf16.mxu0 %v3176
    %3738 = vmatpush1.bf16.msra.mxu0 %v3175
    %3739 = vmatprep.subr.bf16.mxu0 %v3173
    %3740 = vmatpush1.bf16.msra.mxu0 %v3172
    %3741 = vmatprep.subr.bf16.mxu0 %v3170
    %3742 = vmatpush1.bf16.msra.mxu0 %v3169
    %3743 = vmatprep.subr.bf16.mxu0 %v3167
    %3744 = vmatpush1.bf16.msra.mxu0 %v3166
    %3745 = vmatprep.subr.bf16.mxu0 %v3164
    %3746 = vmatpush1.bf16.msra.mxu0 %v3163
    %3747 = vmatprep.subr.bf16.mxu0 0
    %3748 = vmatpush2.bf16.msra.mxu0 0
    %3749 = vmatprep.subr.bf16.mxu0 0
    %3750 = vmatpush2.bf16.msra.mxu0 0
    %3751 = vmatprep.subr.bf16.mxu0 0
    %3752 = vmatpush2.bf16.msra.mxu0 0
    %3753 = vmatprep.subr.bf16.mxu0 0
    %3754 = vmatpush2.bf16.msra.mxu0 0
    %3755 = vmatprep.subr.bf16.mxu0 0
    %3756 = vmatpush2.bf16.msra.mxu0 0
    %3757 = vmatprep.subr.bf16.mxu0 0
    %3758 = vmatpush2.bf16.msra.mxu0 0
    %3759 = vmatprep.subr.bf16.mxu0 0
    %3760 = vmatpush2.bf16.msra.mxu0 0
    %3761 = vmatprep.subr.bf16.mxu0 0
    %3762 = vmatpush2.bf16.msra.mxu0 0
    %3763 = vmatprep.mubr.bf16.mxu0 0
    %3764 = vmatmul.mubr.bf16.gmra.mxu0 %v3730
    %v3765 = vpop.f32.mrf.mxu0
    %v3766 = vadd.f32 %v2253, %v3765
    %v3767 = vpop.f32.mrf.mxu0
    %v3768 = vadd.f32 %v2257, %v3767
    %v3769 = vpop.f32.mrf.mxu0
    %v3770 = vpop.f32.mrf.mxu0
    %3771 = vdwg.mxu0
    %3772 = vmatprep.subr.bf16.mxu0 0
    %3773 = vmatpush1.bf16.msra.mxu0 %v3186
    %3774 = vmatprep.subr.bf16.mxu0 0
    %3775 = vmatpush1.bf16.msra.mxu0 %v3183
    %3776 = vmatprep.subr.bf16.mxu0 0
    %3777 = vmatpush1.bf16.msra.mxu0 %v3180
    %3778 = vmatprep.subr.bf16.mxu0 0
    %3779 = vmatpush1.bf16.msra.mxu0 %v3177
    %3780 = vmatprep.subr.bf16.mxu0 0
    %3781 = vmatpush1.bf16.msra.mxu0 %v3174
    %3782 = vmatprep.subr.bf16.mxu0 0
    %3783 = vmatpush1.bf16.msra.mxu0 %v3171
    %3784 = vmatprep.subr.bf16.mxu0 0
    %3785 = vmatpush1.bf16.msra.mxu0 %v3168
    %3786 = vmatprep.subr.bf16.mxu0 0
    %3787 = vmatpush1.bf16.msra.mxu0 %v3165
    %3788 = vmatprep.subr.bf16.mxu0 0
    %3789 = vmatpush2.bf16.msra.mxu0 0
    %3790 = vmatprep.subr.bf16.mxu0 0
    %3791 = vmatpush2.bf16.msra.mxu0 0
    %3792 = vmatprep.subr.bf16.mxu0 0
    %3793 = vmatpush2.bf16.msra.mxu0 0
    %3794 = vmatprep.subr.bf16.mxu0 0
    %3795 = vmatpush2.bf16.msra.mxu0 0
    %3796 = vmatprep.subr.bf16.mxu0 0
    %3797 = vmatpush2.bf16.msra.mxu0 0
    %3798 = vmatprep.subr.bf16.mxu0 0
    %3799 = vmatpush2.bf16.msra.mxu0 0
    %3800 = vmatprep.subr.bf16.mxu0 0
    %3801 = vmatpush2.bf16.msra.mxu0 0
    %3802 = vmatprep.subr.bf16.mxu0 0
    %3803 = vmatpush2.bf16.msra.mxu0 0
    %3804 = vmatprep.mubr.bf16.mxu0 0
    %3805 = vmatmul.mubr.bf16.gmra.mxu0 %v3730
    %v3806 = vpop.f32.mrf.mxu0
    %v3807 = vadd.f32 %v2261, %v3806
    %v3808 = vpop.f32.mrf.mxu0
    %v3809 = vpop.f32.mrf.mxu0
    %v3810 = vpop.f32.mrf.mxu0
    %3811 = vdwg.mxu0
    %v3812 = vadd.f32 %v3727, %v3766
    %v3813 = vsub.f32 0.0, %v3812
    %v3814 = vmul.f32 %v3813, 1.442695
    %v3815 = vpow.pop %v3814
    %v3816 = vadd.f32 %v3815, 1.0
    %v3817 = vrcp.pop %v3816
    %v3818 = vadd.f32 %v3728, %v3768
    %v3819 = vsub.f32 0.0, %v3818
    %v3820 = vmul.f32 %v3819, 1.442695
    %v3821 = vpow.pop %v3820
    %v3822 = vadd.f32 %v3821, 1.0
    %v3823 = vrcp.pop %v3822
    %v3824 = vmul.f32 %v3817, %v3807
    %v3825 = vadd.f32 %v3729, %v3824
    %v3826 = vtanh.pop %v3825
    %v3827 = vsub.f32 1.0, %v3823
    %v3828 = vmul.f32 %v3827, %v3826
    %v3829 = vmul.f32 %v3823, %v3726
    %v3830 = vadd.f32 %v3828, %v3829
    %v3831 = vld [vmem:[#allocation13] sm:$0xff]
    %v3832 = vld [vmem:[#allocation13 + $0x8] sm:$0xff]
    %v3833 = vld [vmem:[#allocation13 + $0x10] sm:$0xff]
    %v3834 = vld [vmem:[#allocation13 + $0x18] sm:$0xff]
    %v3835 = vld [vmem:[#allocation13 + $0x20] sm:$0xff]
    %v3836 = vld [vmem:[#allocation13 + $0x28] sm:$0xff]
    %v3837 = vld [vmem:[#allocation13 + $0x30] sm:$0xff]
    %v3838 = vld [vmem:[#allocation13 + $0x38] sm:$0xff]
    %v3839 = vld [vmem:[#allocation13 + $0x40] sm:$0xff]
    %v3840 = vld [vmem:[#allocation13 + $0x48] sm:$0xff]
    %v3841 = vld [vmem:[#allocation13 + $0x50] sm:$0xff]
    %v3842 = vld [vmem:[#allocation13 + $0x58] sm:$0xff]
    %v3843 = vld [vmem:[#allocation13 + $0x60] sm:$0xff]
    %v3844 = vld [vmem:[#allocation13 + $0x68] sm:$0xff]
    %v3845 = vld [vmem:[#allocation13 + $0x70] sm:$0xff]
    %v3846 = vld [vmem:[#allocation13 + $0x78] sm:$0xff]
    %v3847 = vld [vmem:[#allocation14] sm:$0xff]
    %v3848 = vld [vmem:[#allocation14 + $0x8] sm:$0xff]
    %v3849 = vld [vmem:[#allocation14 + $0x10] sm:$0xff]
    %v3850 = vld [vmem:[#allocation14 + $0x18] sm:$0xff]
    %v3851 = vld [vmem:[#allocation14 + $0x20] sm:$0xff]
    %v3852 = vld [vmem:[#allocation14 + $0x28] sm:$0xff]
    %v3853 = vld [vmem:[#allocation14 + $0x30] sm:$0xff]
    %v3854 = vld [vmem:[#allocation14 + $0x38] sm:$0xff]
    %v3855 = vld [vmem:[#allocation14 + $0x40] sm:$0xff]
    %v3856 = vld [vmem:[#allocation14 + $0x48] sm:$0xff]
    %v3857 = vld [vmem:[#allocation14 + $0x50] sm:$0xff]
    %v3858 = vld [vmem:[#allocation14 + $0x58] sm:$0xff]
    %v3859 = vld [vmem:[#allocation14 + $0x60] sm:$0xff]
    %v3860 = vld [vmem:[#allocation14 + $0x68] sm:$0xff]
    %v3861 = vld [vmem:[#allocation14 + $0x70] sm:$0xff]
    %v3862 = vld [vmem:[#allocation14 + $0x78] sm:$0xff]
    %3863 = vmatprep.subr.mxu0 0.0
    %3864 = vmatpush1.msra.mxu0 %v3862
    %3865 = vmatprep.subr.mxu0 0.0
    %3866 = vmatpush1.msra.mxu0 %v3861
    %3867 = vmatprep.subr.mxu0 0.0
    %3868 = vmatpush1.msra.mxu0 %v3860
    %3869 = vmatprep.subr.mxu0 0.0
    %3870 = vmatpush1.msra.mxu0 %v3859
    %3871 = vmatprep.subr.mxu0 0.0
    %3872 = vmatpush1.msra.mxu0 %v3858
    %3873 = vmatprep.subr.mxu0 0.0
    %3874 = vmatpush1.msra.mxu0 %v3857
    %3875 = vmatprep.subr.mxu0 0.0
    %3876 = vmatpush1.msra.mxu0 %v3856
    %3877 = vmatprep.subr.mxu0 0.0
    %3878 = vmatpush1.msra.mxu0 %v3855
    %3879 = vmatprep.subr.mxu0 0.0
    %3880 = vmatpush1.msra.mxu0 %v3854
    %3881 = vmatprep.subr.mxu0 0.0
    %3882 = vmatpush1.msra.mxu0 %v3853
    %3883 = vmatprep.subr.mxu0 0.0
    %3884 = vmatpush1.msra.mxu0 %v3852
    %3885 = vmatprep.subr.mxu0 0.0
    %3886 = vmatpush1.msra.mxu0 %v3851
    %3887 = vmatprep.subr.mxu0 0.0
    %3888 = vmatpush1.msra.mxu0 %v3850
    %3889 = vmatprep.subr.mxu0 0.0
    %3890 = vmatpush1.msra.mxu0 %v3849
    %3891 = vmatprep.subr.mxu0 0.0
    %3892 = vmatpush1.msra.mxu0 %v3848
    %3893 = vmatprep.subr.mxu0 0.0
    %3894 = vmatpush1.msra.mxu0 %v3847
    %3895 = vmatprep.subr.mxu0 0.0
    %3896 = vmatpush2.msra.mxu0 0.0
    %3897 = vmatprep.subr.mxu0 0.0
    %3898 = vmatpush2.msra.mxu0 0.0
    %3899 = vmatprep.subr.mxu0 0.0
    %3900 = vmatpush2.msra.mxu0 0.0
    %3901 = vmatprep.subr.mxu0 0.0
    %3902 = vmatpush2.msra.mxu0 0.0
    %3903 = vmatprep.subr.mxu0 0.0
    %3904 = vmatpush2.msra.mxu0 0.0
    %3905 = vmatprep.subr.mxu0 0.0
    %3906 = vmatpush2.msra.mxu0 0.0
    %3907 = vmatprep.subr.mxu0 0.0
    %3908 = vmatpush2.msra.mxu0 0.0
    %3909 = vmatprep.subr.mxu0 0.0
    %3910 = vmatpush2.msra.mxu0 0.0
    %3911 = vmatprep.subr.mxu0 0.0
    %3912 = vmatpush2.msra.mxu0 0.0
    %3913 = vmatprep.subr.mxu0 0.0
    %3914 = vmatpush2.msra.mxu0 0.0
    %3915 = vmatprep.subr.mxu0 0.0
    %3916 = vmatpush2.msra.mxu0 0.0
    %3917 = vmatprep.subr.mxu0 0.0
    %3918 = vmatpush2.msra.mxu0 0.0
    %3919 = vmatprep.subr.mxu0 0.0
    %3920 = vmatpush2.msra.mxu0 0.0
    %3921 = vmatprep.subr.mxu0 0.0
    %3922 = vmatpush2.msra.mxu0 0.0
    %3923 = vmatprep.subr.mxu0 0.0
    %3924 = vmatpush2.msra.mxu0 0.0
    %3925 = vmatprep.subr.mxu0 0.0
    %3926 = vmatpush2.msra.mxu0 0.0
    %3927 = vmatprep.mubr.f32.mxu0 0.0
    %3928 = vmatmul.mubr.f32.gmra.mxu0 %v3830
    %v3929 = vpop.f32.mrf.mxu0
    %v3930 = vadd.f32 0.0, %v3929
    %v3931 = vpop.f32.mrf.mxu0
    %3932 = vmatprep.mubr.f32.mxu0 0.0
    %3933 = vmatmul.mubr.f32.gmra.mxu0 %v3726
    %v3934 = vpop.f32.mrf.mxu0
    %v3935 = vadd.f32 0.0, %v3934
    %v3936 = vpop.f32.mrf.mxu0
    %3937 = vmatprep.mubr.f32.mxu0 0.0
    %3938 = vmatmul.mubr.f32.gmra.mxu0 %v3622
    %v3939 = vpop.f32.mrf.mxu0
    %v3940 = vadd.f32 0.0, %v3939
    %v3941 = vpop.f32.mrf.mxu0
    %3942 = vmatprep.mubr.f32.mxu0 0.0
    %3943 = vmatmul.mubr.f32.gmra.mxu0 %v3518
    %v3944 = vpop.f32.mrf.mxu0
    %v3945 = vadd.f32 0.0, %v3944
    %v3946 = vpop.f32.mrf.mxu0
    %3947 = vmatprep.mubr.f32.mxu0 0.0
    %3948 = vmatmul.mubr.f32.gmra.mxu0 %v3414
    %v3949 = vpop.f32.mrf.mxu0
    %v3950 = vadd.f32 0.0, %v3949
    %v3951 = vpop.f32.mrf.mxu0
    %3952 = vmatprep.mubr.f32.mxu0 0.0
    %3953 = vmatmul.mubr.f32.gmra.mxu0 %v3310
    %v3954 = vpop.f32.mrf.mxu0
    %v3955 = vadd.f32 0.0, %v3954
    %v3956 = vpop.f32.mrf.mxu0
    %3957 = vdwg.mxu0
    %3958 = vmatprep.subr.mxu0 0.0
    %3959 = vmatpush1.msra.mxu0 %v3846
    %3960 = vmatprep.subr.mxu0 0.0
    %3961 = vmatpush1.msra.mxu0 %v3845
    %3962 = vmatprep.subr.mxu0 0.0
    %3963 = vmatpush1.msra.mxu0 %v3844
    %3964 = vmatprep.subr.mxu0 0.0
    %3965 = vmatpush1.msra.mxu0 %v3843
    %3966 = vmatprep.subr.mxu0 0.0
    %3967 = vmatpush1.msra.mxu0 %v3842
    %3968 = vmatprep.subr.mxu0 0.0
    %3969 = vmatpush1.msra.mxu0 %v3841
    %3970 = vmatprep.subr.mxu0 0.0
    %3971 = vmatpush1.msra.mxu0 %v3840
    %3972 = vmatprep.subr.mxu0 0.0
    %3973 = vmatpush1.msra.mxu0 %v3839
    %3974 = vmatprep.subr.mxu0 0.0
    %3975 = vmatpush1.msra.mxu0 %v3838
    %3976 = vmatprep.subr.mxu0 0.0
    %3977 = vmatpush1.msra.mxu0 %v3837
    %3978 = vmatprep.subr.mxu0 0.0
    %3979 = vmatpush1.msra.mxu0 %v3836
    %3980 = vmatprep.subr.mxu0 0.0
    %3981 = vmatpush1.msra.mxu0 %v3835
    %3982 = vmatprep.subr.mxu0 0.0
    %3983 = vmatpush1.msra.mxu0 %v3834
    %3984 = vmatprep.subr.mxu0 0.0
    %3985 = vmatpush1.msra.mxu0 %v3833
    %3986 = vmatprep.subr.mxu0 0.0
    %3987 = vmatpush1.msra.mxu0 %v3832
    %3988 = vmatprep.subr.mxu0 0.0
    %3989 = vmatpush1.msra.mxu0 %v3831
    %3990 = vmatprep.subr.mxu0 0.0
    %3991 = vmatpush2.msra.mxu0 0.0
    %3992 = vmatprep.subr.mxu0 0.0
    %3993 = vmatpush2.msra.mxu0 0.0
    %3994 = vmatprep.subr.mxu0 0.0
    %3995 = vmatpush2.msra.mxu0 0.0
    %3996 = vmatprep.subr.mxu0 0.0
    %3997 = vmatpush2.msra.mxu0 0.0
    %3998 = vmatprep.subr.mxu0 0.0
    %3999 = vmatpush2.msra.mxu0 0.0
    %4000 = vmatprep.subr.mxu0 0.0
    %4001 = vmatpush2.msra.mxu0 0.0
    %4002 = vmatprep.subr.mxu0 0.0
    %4003 = vmatpush2.msra.mxu0 0.0
    %4004 = vmatprep.subr.mxu0 0.0
    %4005 = vmatpush2.msra.mxu0 0.0
    %4006 = vmatprep.subr.mxu0 0.0
    %4007 = vmatpush2.msra.mxu0 0.0
    %4008 = vmatprep.subr.mxu0 0.0
    %4009 = vmatpush2.msra.mxu0 0.0
    %4010 = vmatprep.subr.mxu0 0.0
    %4011 = vmatpush2.msra.mxu0 0.0
    %4012 = vmatprep.subr.mxu0 0.0
    %4013 = vmatpush2.msra.mxu0 0.0
    %4014 = vmatprep.subr.mxu0 0.0
    %4015 = vmatpush2.msra.mxu0 0.0
    %4016 = vmatprep.subr.mxu0 0.0
    %4017 = vmatpush2.msra.mxu0 0.0
    %4018 = vmatprep.subr.mxu0 0.0
    %4019 = vmatpush2.msra.mxu0 0.0
    %4020 = vmatprep.subr.mxu0 0.0
    %4021 = vmatpush2.msra.mxu0 0.0
    %4022 = vmatprep.mubr.f32.mxu0 0.0
    %4023 = vmatmul.mubr.f32.gmra.mxu0 %v2527
    %v4024 = vpop.f32.mrf.mxu0
    %v4025 = vadd.f32 %v3930, %v4024
    %v4026 = vpop.f32.mrf.mxu0
    %4027 = vmatprep.mubr.f32.mxu0 0.0
    %4028 = vmatmul.mubr.f32.gmra.mxu0 %v2631
    %v4029 = vpop.f32.mrf.mxu0
    %v4030 = vadd.f32 %v3935, %v4029
    %v4031 = vpop.f32.mrf.mxu0
    %4032 = vmatprep.mubr.f32.mxu0 0.0
    %4033 = vmatmul.mubr.f32.gmra.mxu0 %v2735
    %v4034 = vpop.f32.mrf.mxu0
    %v4035 = vadd.f32 %v3940, %v4034
    %v4036 = vpop.f32.mrf.mxu0
    %4037 = vmatprep.mubr.f32.mxu0 0.0
    %4038 = vmatmul.mubr.f32.gmra.mxu0 %v2839
    %v4039 = vpop.f32.mrf.mxu0
    %v4040 = vadd.f32 %v3945, %v4039
    %v4041 = vpop.f32.mrf.mxu0
    %4042 = vmatprep.mubr.f32.mxu0 0.0
    %4043 = vmatmul.mubr.f32.gmra.mxu0 %v2943
    %v4044 = vpop.f32.mrf.mxu0
    %v4045 = vadd.f32 %v3950, %v4044
    %v4046 = vpop.f32.mrf.mxu0
    %4047 = vmatprep.mubr.f32.mxu0 0.0
    %4048 = vmatmul.mubr.f32.gmra.mxu0 %v3047
    %v4049 = vpop.f32.mrf.mxu0
    %v4050 = vadd.f32 %v3955, %v4049
    %v4051 = vpop.f32.mrf.mxu0
    %4052 = vdwg.mxu0
    %v4053 = vld [vmem:[#allocation16] sm:$0x1]
    %v4055 = vlaneseq
    %v4056 = vshrl.u32 %v4055, 7
    %v4057 = vsub.s32 0, %v4056
    %v4058 = vrot.slane %v4053, %v4057
    %v4060 = vadd.f32 %v4025, %v4058
    %v4061 = vadd.f32 %v4030, %v4058
    %v4062 = vadd.f32 %v4035, %v4058
    %v4063 = vadd.f32 %v4040, %v4058
    %v4064 = vadd.f32 %v4045, %v4058
    %v4065 = vadd.f32 %v4050, %v4058
    %4066 = vst [vmem:[%s10] sm:$0xff] %v4060
    %4067 = vst [vmem:[%s10 + $0x8] sm:$0xff] %v4061
    %4068 = vst [vmem:[%s10 + $0x10] sm:$0xff] %v4062
    %4069 = vst [vmem:[%s10 + $0x18] sm:$0xff] %v4063
    %4070 = vst [vmem:[%s10 + $0x20] sm:$0xff] %v4064
    %4071 = vst [vmem:[%s10 + $0x28] sm:$0xff] %v4065
    // Predicated region
    $region78: #{recurrent_router_forward.1} parent=1 // pred_check
      _
    $region79: #{recurrent_router_forward.1} parent=1 // pred_check_branch
      %4073 = sbr.rel (0) target = $region81
    $region80: #{recurrent_router_forward.1} parent=1 // pred_region
      _
    $region81: #{recurrent_router_forward.1} parent=1 // pred_fallthru
      _
    // Predicated region
    $region82: #{recurrent_router_forward.1} parent=1 // pred_check
      _
    $region83: #{recurrent_router_forward.1} parent=1 // pred_check_branch
      %4075 = sbr.rel (0) target = $region85
    $region84: #{recurrent_router_forward.1} parent=1 // pred_region
      _
    $region85: #{recurrent_router_forward.1} parent=1 // pred_fallthru
      _
    %4076 = vsyncpa [#allocation4], 1
    %4077 = vsyncpa [#allocation6], 1
    %4078 = vsyncpa [#allocation9], 1
    %4079 = vsyncpa [#allocation12], 1
    %4080 = vsyncpa [#allocation15], 1

</llo_original>
